<compile_context>
chip_gen: v7x
topology: tpu7x:2x2x1
jax: 0.10.0
libtpu: 0.0.40
codegen_flags: <defaults>
</compile_context>

<pallas_src>
import jax
import jax.numpy as jnp
from jax.experimental import pallas as pl
from jax.experimental.pallas import tpu as pltpu


def leonet_head_kernel(x_ref,
                       w1_ref, b1_ref,
                       w2_ref, b2_ref,
                       w3_ref, b3_ref,
                       w4_ref, b4_ref,
                       w5_ref, b5_ref,
                       o_ref):
    def dense(h, w_ref, b_ref):
        # bf16 x bf16 on the MXU, accumulate in f32, add f32 bias.
        return jnp.dot(h.astype(jnp.bfloat16), w_ref[...],
                       preferred_element_type=jnp.float32) + b_ref[...]

    h = x_ref[...]                                     # (tb, 1024) bf16
    h = jnp.maximum(dense(h, w1_ref, b1_ref), 0.0)     # (tb, 512)
    h = jnp.maximum(dense(h, w2_ref, b2_ref), 0.0)     # (tb, 256)
    h = jnp.maximum(dense(h, w3_ref, b3_ref), 0.0)     # (tb, 64)
    h = jax.nn.sigmoid(dense(h, w4_ref, b4_ref))       # (tb, 16) f32

    # fc5 (16 -> 1), produced directly in lane-dense layout:
    # (1,16) @ (tb,16)^T -> (1, tb); tiny MXU dot, avoids any transpose.
    z5 = jnp.einsum("ok,bk->ob", w5_ref[...], h,
                    preferred_element_type=jnp.float32) + b5_ref[...]
    y = jax.nn.sigmoid(z5)                             # (1, tb)

    o_ref[...] = y.reshape(o_ref.shape)                # (1, 1, tb) packed row


def leonet_head(x, params, *, block_b=1024):
    """x: [B, 1024] features. params: dict (w1..w4 bf16, w5/biases f32)."""
    B, D = x.shape
    assert D == 1024

    # Sublane-aligned batch tile, capped at half the batch so the grid keeps
    # >= 2 steps (v7x: shard the "parallel" batch axis across 2 TensorCores).
    b8 = pl.cdiv(B, 8) * 8
    tb = min(block_b, b8)
    half = pl.cdiv(pl.cdiv(B, 2), 8) * 8
    if half >= 8 and tb > half:
        tb = half
    b_pad = pl.cdiv(B, tb) * tb
    g = b_pad // tb

    # Stream activations as bf16: halves the dominant HBM read + x VMEM tile.
    x = x.astype(jnp.bfloat16)
    if b_pad != B:
        x = jnp.pad(x, ((0, b_pad - B), (0, 0)))

    weight_args = (
        params["w1"], params["b1"],
        params["w2"], params["b2"],
        params["w3"], params["b3"],
        params["w4"], params["b4"],
        params["w5"], params["b5"],
    )
    # Constant index_map -> weights/biases fetched once, VMEM-resident across
    # all batch-grid steps.
    weight_specs = [pl.BlockSpec(w.shape, lambda i: (0, 0)) for w in weight_args]

    out = pl.pallas_call(
        leonet_head_kernel,
        out_shape=jax.ShapeDtypeStruct((g, 1, tb), jnp.float32),
        grid=(g,),
        in_specs=[pl.BlockSpec((tb, D), lambda i: (i, 0))] + weight_specs,
        out_specs=pl.BlockSpec((1, 1, tb), lambda i: (i, 0, 0)),
        compiler_params=pltpu.CompilerParams(
            dimension_semantics=("parallel",),        # v7x: 2-TC batch split
            vmem_limit_bytes=48 * 1024 * 1024),       # headroom for tb=1024 on v5e
    )(x, *weight_args)

    # (g, 1, tb) rows -> (B, 1) column, drop padded rows.
    return out.reshape(b_pad, 1)[:B]


def init_params(key):
    """nn.Linear-style init (uniform +-1/sqrt(fan_in)); w1..w4 cast to bf16
    once here so every call pays the halved weight DMA."""
    dims = [(1024, 512), (512, 256), (256, 64), (64, 16), (16, 1)]
    params = {}
    keys = jax.random.split(key, 2 * len(dims))
    for i, (fan_in, fan_out) in enumerate(dims):
        bound = 1.0 / jnp.sqrt(jnp.float32(fan_in))
        w = jax.random.uniform(keys[2 * i], (fan_in, fan_out),
                               minval=-bound, maxval=bound, dtype=jnp.float32)
        b = jax.random.uniform(keys[2 * i + 1], (1, fan_out),
                               minval=-bound, maxval=bound, dtype=jnp.float32)
        if i < 4:
            params[f"w{i + 1}"] = w.astype(jnp.bfloat16)
            params[f"b{i + 1}"] = b
        else:
            params["w5"] = w.reshape(1, fan_in)   # (1, 16) f32 row vector
            params["b5"] = b                      # (1, 1)  f32
    return params


def leonet_head_ref(x, params):
    """Pure-JAX reference doing the same bf16-weight math (sanity check)."""
    def dense(h, w, b):
        return jnp.dot(h.astype(jnp.bfloat16), w,
                       preferred_element_type=jnp.float32) + b
    h = jnp.maximum(dense(x, params["w1"], params["b1"]), 0.0)
    h = jnp.maximum(dense(h, params["w2"], params["b2"]), 0.0)
    h = jnp.maximum(dense(h, params["w3"], params["b3"]), 0.0)
    h = jax.nn.sigmoid(dense(h, params["w4"], params["b4"]))
    z = jnp.dot(h, params["w5"].T,
                preferred_element_type=jnp.float32) + params["b5"]
    return jax.nn.sigmoid(z)


if __name__ == "__main__":
    key = jax.random.PRNGKey(0)
    k_params, k_x = jax.random.split(key)

    params = init_params(k_params)
    # 256 feature vectors -> 2 batch-grid steps of 128 rows each (keeps the
    # grid >= 2 so the v7x 2-TC split is exercised even at this small size).
    B = 256
    x = jax.random.normal(k_x, (B, 1024), dtype=jnp.float32)

    out = leonet_head(x, params)
    out = jax.block_until_ready(out)

    ref = leonet_head_ref(x, params)
    assert out.shape == (B, 1)
    assert jnp.allclose(out, ref, atol=1e-3, rtol=1e-3)

    print("KERNEL_OK")
</pallas_src>

<mosaic_0001>
module attributes {stable_mosaic.version = 11 : i64} {
  func.func @leonet_head_kernel(%arg0: i32, %arg1: memref<128x1024xbf16, #tpu.memory_space<vmem>>, %arg2: memref<1024x512xbf16, #tpu.memory_space<vmem>>, %arg3: memref<1x512xf32, #tpu.memory_space<vmem>>, %arg4: memref<512x256xbf16, #tpu.memory_space<vmem>>, %arg5: memref<1x256xf32, #tpu.memory_space<vmem>>, %arg6: memref<256x64xbf16, #tpu.memory_space<vmem>>, %arg7: memref<1x64xf32, #tpu.memory_space<vmem>>, %arg8: memref<64x16xbf16, #tpu.memory_space<vmem>>, %arg9: memref<1x16xf32, #tpu.memory_space<vmem>>, %arg10: memref<1x16xf32, #tpu.memory_space<vmem>>, %arg11: memref<1x1xf32, #tpu.memory_space<vmem>>, %arg12: memref<1x1x128xf32, #tpu.memory_space<vmem>>) attributes {dimension_semantics = [#tpu.dimension_semantics<parallel>], iteration_bounds = array<i64: 2>, scalar_prefetch = 0 : i64, scratch_operands = 0 : i64, tpu.core_type = #tpu.core_type<tc>, window_params = [{transform_indices = @transform_0, window_bounds = array<i64: 128, 1024>}, {pipeline_mode = #tpu.pipeline_mode<synchronous>, transform_indices = @transform_1, window_bounds = array<i64: 1024, 512>}, {pipeline_mode = #tpu.pipeline_mode<synchronous>, transform_indices = @transform_2, window_bounds = array<i64: 1, 512>}, {pipeline_mode = #tpu.pipeline_mode<synchronous>, transform_indices = @transform_3, window_bounds = array<i64: 512, 256>}, {pipeline_mode = #tpu.pipeline_mode<synchronous>, transform_indices = @transform_4, window_bounds = array<i64: 1, 256>}, {pipeline_mode = #tpu.pipeline_mode<synchronous>, transform_indices = @transform_5, window_bounds = array<i64: 256, 64>}, {pipeline_mode = #tpu.pipeline_mode<synchronous>, transform_indices = @transform_6, window_bounds = array<i64: 1, 64>}, {pipeline_mode = #tpu.pipeline_mode<synchronous>, transform_indices = @transform_7, window_bounds = array<i64: 64, 16>}, {pipeline_mode = #tpu.pipeline_mode<synchronous>, transform_indices = @transform_8, window_bounds = array<i64: 1, 16>}, {pipeline_mode = #tpu.pipeline_mode<synchronous>, transform_indices = @transform_9, window_bounds = array<i64: 1, 16>}, {pipeline_mode = #tpu.pipeline_mode<synchronous>, transform_indices = @transform_10, window_bounds = array<i64: 1, 1>}, {transform_indices = @transform_11, window_bounds = array<i64: 1, 1, 128>}]} {
    %c0 = arith.constant 0 : index
    %c0_0 = arith.constant 0 : index
    %0 = vector.load %arg1[%c0, %c0_0] : memref<128x1024xbf16, #tpu.memory_space<vmem>>, vector<128x1024xbf16>
    %c0_1 = arith.constant 0 : index
    %c0_2 = arith.constant 0 : index
    %1 = vector.load %arg2[%c0_1, %c0_2] : memref<1024x512xbf16, #tpu.memory_space<vmem>>, vector<1024x512xbf16>
    %cst = arith.constant dense<0.000000e+00> : vector<128x512xf32>
    %2 = tpu.matmul %0, %1, %cst {dimension_numbers = #tpu.dot_dimension_numbers<[1], [0], [0], [1], [0, 0, 1, 1], [], []>} : vector<128x1024xbf16>, vector<1024x512xbf16>, vector<128x512xf32> -> vector<128x512xf32>
    %c0_3 = arith.constant 0 : index
    %c0_4 = arith.constant 0 : index
    %3 = vector.load %arg3[%c0_3, %c0_4] : memref<1x512xf32, #tpu.memory_space<vmem>>, vector<1x512xf32>
    %4 = vector.broadcast %3 : vector<1x512xf32> to vector<128x512xf32>
    %5 = arith.addf %2, %4 : vector<128x512xf32>
    %cst_5 = arith.constant 0.000000e+00 : f32
    %6 = vector.broadcast %cst_5 : f32 to vector<128x512xf32>
    %7 = arith.maximumf %5, %6 : vector<128x512xf32>
    %8 = arith.truncf %7 : vector<128x512xf32> to vector<128x512xbf16>
    %c0_6 = arith.constant 0 : index
    %c0_7 = arith.constant 0 : index
    %9 = vector.load %arg4[%c0_6, %c0_7] : memref<512x256xbf16, #tpu.memory_space<vmem>>, vector<512x256xbf16>
    %cst_8 = arith.constant dense<0.000000e+00> : vector<128x256xf32>
    %10 = tpu.matmul %8, %9, %cst_8 {dimension_numbers = #tpu.dot_dimension_numbers<[1], [0], [0], [1], [0, 0, 1, 1], [], []>} : vector<128x512xbf16>, vector<512x256xbf16>, vector<128x256xf32> -> vector<128x256xf32>
    %c0_9 = arith.constant 0 : index
    %c0_10 = arith.constant 0 : index
    %11 = vector.load %arg5[%c0_9, %c0_10] : memref<1x256xf32, #tpu.memory_space<vmem>>, vector<1x256xf32>
    %12 = vector.broadcast %11 : vector<1x256xf32> to vector<128x256xf32>
    %13 = arith.addf %10, %12 : vector<128x256xf32>
    %cst_11 = arith.constant 0.000000e+00 : f32
    %14 = vector.broadcast %cst_11 : f32 to vector<128x256xf32>
    %15 = arith.maximumf %13, %14 : vector<128x256xf32>
    %16 = arith.truncf %15 : vector<128x256xf32> to vector<128x256xbf16>
    %c0_12 = arith.constant 0 : index
    %c0_13 = arith.constant 0 : index
    %17 = vector.load %arg6[%c0_12, %c0_13] : memref<256x64xbf16, #tpu.memory_space<vmem>>, vector<256x64xbf16>
    %cst_14 = arith.constant dense<0.000000e+00> : vector<128x64xf32>
    %18 = tpu.matmul %16, %17, %cst_14 {dimension_numbers = #tpu.dot_dimension_numbers<[1], [0], [0], [1], [0, 0, 1, 1], [], []>} : vector<128x256xbf16>, vector<256x64xbf16>, vector<128x64xf32> -> vector<128x64xf32>
    %c0_15 = arith.constant 0 : index
    %c0_16 = arith.constant 0 : index
    %19 = vector.load %arg7[%c0_15, %c0_16] : memref<1x64xf32, #tpu.memory_space<vmem>>, vector<1x64xf32>
    %20 = vector.broadcast %19 : vector<1x64xf32> to vector<128x64xf32>
    %21 = arith.addf %18, %20 : vector<128x64xf32>
    %cst_17 = arith.constant 0.000000e+00 : f32
    %22 = vector.broadcast %cst_17 : f32 to vector<128x64xf32>
    %23 = arith.maximumf %21, %22 : vector<128x64xf32>
    %24 = arith.truncf %23 : vector<128x64xf32> to vector<128x64xbf16>
    %c0_18 = arith.constant 0 : index
    %c0_19 = arith.constant 0 : index
    %25 = vector.load %arg8[%c0_18, %c0_19] : memref<64x16xbf16, #tpu.memory_space<vmem>>, vector<64x16xbf16>
    %cst_20 = arith.constant dense<0.000000e+00> : vector<128x16xf32>
    %26 = tpu.matmul %24, %25, %cst_20 {dimension_numbers = #tpu.dot_dimension_numbers<[1], [0], [0], [1], [0, 0, 1, 1], [], []>} : vector<128x64xbf16>, vector<64x16xbf16>, vector<128x16xf32> -> vector<128x16xf32>
    %c0_21 = arith.constant 0 : index
    %c0_22 = arith.constant 0 : index
    %27 = vector.load %arg9[%c0_21, %c0_22] : memref<1x16xf32, #tpu.memory_space<vmem>>, vector<1x16xf32>
    %28 = vector.broadcast %27 : vector<1x16xf32> to vector<128x16xf32>
    %29 = arith.addf %26, %28 : vector<128x16xf32>
    %30 = arith.negf %29 : vector<128x16xf32>
    %31 = math.exp %30 : vector<128x16xf32>
    %cst_23 = arith.constant 1.000000e+00 : f32
    %32 = vector.broadcast %cst_23 : f32 to vector<128x16xf32>
    %33 = arith.addf %32, %31 : vector<128x16xf32>
    %34 = arith.divf %32, %33 : vector<128x16xf32>
    %c0_24 = arith.constant 0 : index
    %c0_25 = arith.constant 0 : index
    %35 = vector.load %arg10[%c0_24, %c0_25] : memref<1x16xf32, #tpu.memory_space<vmem>>, vector<1x16xf32>
    "tpu.trace_start"() <{level = 10 : i32, message = "ok,bk->ob"}> : () -> ()
    %cst_26 = arith.constant dense<0.000000e+00> : vector<1x128xf32>
    %36 = tpu.matmul %35, %34, %cst_26 {dimension_numbers = #tpu.dot_dimension_numbers<[1], [1], [0], [0], [0, 0, 1, 0], [], []>} : vector<1x16xf32>, vector<128x16xf32>, vector<1x128xf32> -> vector<1x128xf32>
    "tpu.trace_stop"() : () -> ()
    %c0_27 = arith.constant 0 : index
    %c0_28 = arith.constant 0 : index
    %37 = vector.load %arg11[%c0_27, %c0_28] : memref<1x1xf32, #tpu.memory_space<vmem>>, vector<1x1xf32>
    %38 = vector.broadcast %37 : vector<1x1xf32> to vector<1x128xf32>
    %39 = arith.addf %36, %38 : vector<1x128xf32>
    %40 = arith.negf %39 : vector<1x128xf32>
    %41 = math.exp %40 : vector<1x128xf32>
    %cst_29 = arith.constant 1.000000e+00 : f32
    %42 = vector.broadcast %cst_29 : f32 to vector<1x128xf32>
    %43 = arith.addf %42, %41 : vector<1x128xf32>
    %44 = arith.divf %42, %43 : vector<1x128xf32>
    %45 = vector.shape_cast %44 : vector<1x128xf32> to vector<1x1x128xf32>
    %c0_30 = arith.constant 0 : index
    %c0_31 = arith.constant 0 : index
    %c0_32 = arith.constant 0 : index
    %46 = vector.load %arg12[%c0_30, %c0_31, %c0_32] : memref<1x1x128xf32, #tpu.memory_space<vmem>>, vector<1x1x128xf32>
    tpu.vector_store %arg12[%c0_30, %c0_31, %c0_32], %45 {strides = array<i32>} : memref<1x1x128xf32, #tpu.memory_space<vmem>>, vector<1x1x128xf32>,
    return
  }
  func.func @transform_0(%arg0: i32) -> (i32, i32) {
    %c0_i32 = arith.constant 0 : i32
    %c0_i32_0 = arith.constant 0 : i32
    return %arg0, %c0_i32 : i32, i32
  }
  func.func @transform_1(%arg0: i32) -> (i32, i32) {
    %c0_i32 = arith.constant 0 : i32
    %c0_i32_0 = arith.constant 0 : i32
    %c0_i32_1 = arith.constant 0 : i32
    return %c0_i32, %c0_i32_0 : i32, i32
  }
  func.func @transform_2(%arg0: i32) -> (i32, i32) {
    %c0_i32 = arith.constant 0 : i32
    %c0_i32_0 = arith.constant 0 : i32
    %c0_i32_1 = arith.constant 0 : i32
    return %c0_i32, %c0_i32_0 : i32, i32
  }
  func.func @transform_3(%arg0: i32) -> (i32, i32) {
    %c0_i32 = arith.constant 0 : i32
    %c0_i32_0 = arith.constant 0 : i32
    %c0_i32_1 = arith.constant 0 : i32
    return %c0_i32, %c0_i32_0 : i32, i32
  }
  func.func @transform_4(%arg0: i32) -> (i32, i32) {
    %c0_i32 = arith.constant 0 : i32
    %c0_i32_0 = arith.constant 0 : i32
    %c0_i32_1 = arith.constant 0 : i32
    return %c0_i32, %c0_i32_0 : i32, i32
  }
  func.func @transform_5(%arg0: i32) -> (i32, i32) {
    %c0_i32 = arith.constant 0 : i32
    %c0_i32_0 = arith.constant 0 : i32
    %c0_i32_1 = arith.constant 0 : i32
    return %c0_i32, %c0_i32_0 : i32, i32
  }
  func.func @transform_6(%arg0: i32) -> (i32, i32) {
    %c0_i32 = arith.constant 0 : i32
    %c0_i32_0 = arith.constant 0 : i32
    %c0_i32_1 = arith.constant 0 : i32
    return %c0_i32, %c0_i32_0 : i32, i32
  }
  func.func @transform_7(%arg0: i32) -> (i32, i32) {
    %c0_i32 = arith.constant 0 : i32
    %c0_i32_0 = arith.constant 0 : i32
    %c0_i32_1 = arith.constant 0 : i32
    return %c0_i32, %c0_i32_0 : i32, i32
  }
  func.func @transform_8(%arg0: i32) -> (i32, i32) {
    %c0_i32 = arith.constant 0 : i32
    %c0_i32_0 = arith.constant 0 : i32
    %c0_i32_1 = arith.constant 0 : i32
    return %c0_i32, %c0_i32_0 : i32, i32
  }
  func.func @transform_9(%arg0: i32) -> (i32, i32) {
    %c0_i32 = arith.constant 0 : i32
    %c0_i32_0 = arith.constant 0 : i32
    %c0_i32_1 = arith.constant 0 : i32
    return %c0_i32, %c0_i32_0 : i32, i32
  }
  func.func @transform_10(%arg0: i32) -> (i32, i32) {
    %c0_i32 = arith.constant 0 : i32
    %c0_i32_0 = arith.constant 0 : i32
    %c0_i32_1 = arith.constant 0 : i32
    return %c0_i32, %c0_i32_0 : i32, i32
  }
  func.func @transform_11(%arg0: i32) -> (i32, i32, i32) {
    %c0_i32 = arith.constant 0 : i32
    %c0_i32_0 = arith.constant 0 : i32
    %c0_i32_1 = arith.constant 0 : i32
    return %arg0, %c0_i32, %c0_i32_0 : i32, i32, i32
  }
}

</mosaic_0001>

<llo_original>
// kernel: tpu_custom_call.1
$region0: #{tpu_custom_call.1}
  #allocation0 [shape = 'u32[]', space=smem, size = 0x4, offset = 0x4, fixed_abs, tag = 'smem constant byte address 0x4 - core index']
  #allocation1 [shape = 'u32[144,128]{1,0:T(1,128)}', space=vmem, size = 0x12000, scoped, tag = 'internal scratch']
  #allocation2 [shape = 'f32[1,1]{1,0:T(1,128)S(1)}', space=vmem, size = 0x200, scoped, tag = 'scoped memory for tpu_custom_call.1']
  %s0 = inlined_call_operand.hbm [shape: bf16[256,1024], index: 0, kind: input, shape index: {}]
  %s1 = inlined_call_operand.hbm [shape: bf16[1024,512], index: 1, kind: input, shape index: {}]
  %s2 = inlined_call_operand.vmem [shape: f32[1,512], index: 2, kind: input, shape index: {}]
  %s3 = inlined_call_operand.hbm [shape: bf16[512,256], index: 3, kind: input, shape index: {}]
  %s4 = inlined_call_operand.vmem [shape: f32[1,256], index: 4, kind: input, shape index: {}]
  %s5 = inlined_call_operand.vmem [shape: bf16[256,64], index: 5, kind: input, shape index: {}]
  %s6 = inlined_call_operand.vmem [shape: f32[1,64], index: 6, kind: input, shape index: {}]
  %s7 = inlined_call_operand.vmem [shape: bf16[64,16], index: 7, kind: input, shape index: {}]
  %s8 = inlined_call_operand.vmem [shape: f32[1,16], index: 8, kind: input, shape index: {}]
  %s9 = inlined_call_operand.vmem [shape: f32[1,16], index: 9, kind: input, shape index: {}]
  %s10 = inlined_call_operand.<no memory space> [shape: f32[1,1], index: 10, kind: input, shape index: {}]
  %s11 = inlined_call_operand.hbm [shape: f32[2,1,128], index: 11, kind: output, shape index: {}]
  %s12 = sld [smem:[#allocation0]]
  $region89: #{tpu_custom_call.1} parent=0
    _
  %s14 = ssub.s32 1, %s12
  %s15 = scalar_select 0, %s14, %s12
  %v16 = vstv %s10
  %17 = vst [vmem:[#allocation2] sm:$0x1] %v16
  $region1: #{tpu_custom_call.1} parent=0
    #allocation3 [shape = 'u8[524288]{0}', space=vmem, size = 0x80000, scoped, tag = 'input window, operand 0']
    #allocation4 [shape = 's32[2]{0}', space=sflag, size = 0x8, scoped, tag = 'scoped memory for tpu_custom_call.1']
    #allocation5 [shape = 's32[2]{0}', space=sflag, size = 0x8, scoped, tag = 'scoped memory for tpu_custom_call.1']
    #allocation6 [shape = 'u8[1048576]{0}', space=vmem, size = 0x100000, scoped, tag = 'input window, operand 1, single buffered']
    #allocation7 [shape = 's32[1]{0}', space=sflag, size = 0x4, scoped, tag = 'scoped memory for tpu_custom_call.1']
    #allocation8 [shape = 'u8[262144]{0}', space=vmem, size = 0x40000, scoped, tag = 'input window, operand 3, single buffered']
    #allocation9 [shape = 'u8[1024]{0}', space=vmem, size = 0x400, scoped, tag = 'output window, operand 0']
    %18 = vsyncpa [#allocation4], 0
    %s19 = scalar_lea.sflag [#allocation4], 1
    %20 = vsyncpa %s19, 0
    %21 = vsyncpa [#allocation7], 0
    %22 = vsyncpa [#allocation5], 0
    %s23 = scalar_lea.sflag [#allocation5], 1
    %24 = vsyncpa %s23, 0
    loop: start=0, step=1, limit=4
    $region2: #{tpu_custom_call.1} parent=1 // loop_pre_header
      _
    $region3: #{tpu_custom_call.1} parent=1 // loop_header
      %s26 = sphi 0, %s30
      %p27 = scmp.ge.s32.totalorder %s26, 4
      %s36 = sphi 0, %s38
      %s39 = sphi 0, %s36
      %s40 = sphi 0, %s39
      %s56 = sphi 0, %s40
      %s60 = sphi 0, %s60
      %s62 = sphi 0, %s60
      %s63 = sphi 0, %s62
      %s77 = sphi 0, %s63
      %s81 = sphi 0, %s81
      %s83 = sphi 0, %s81
      %s84 = sphi 0, %s83
      %s98 = sphi 0, %s84
      %s102 = sphi 0, %s102
      %s104 = sphi 0, %s102
      %s105 = sphi 0, %s104
      %s119 = sphi 0, %s105
      %s123 = sphi 0, %s123
      %s125 = sphi 0, %s123
      %s126 = sphi 0, %s125
      %s140 = sphi 0, %s126
      %s144 = sphi 0, %s144
      %s146 = sphi 0, %s144
      %s147 = sphi 0, %s146
      %s161 = sphi 0, %s147
      %s165 = sphi 0, %s165
      %s167 = sphi 0, %s165
      %s168 = sphi 0, %s167
      %s182 = sphi 0, %s168
      %s186 = sphi 0, %s186
      %s188 = sphi 0, %s186
      %s189 = sphi 0, %s188
      %s203 = sphi 0, %s189
      %s207 = sphi 0, %s207
      %s209 = sphi 0, %s207
      %s210 = sphi 0, %s209
      %s224 = sphi 0, %s210
      %s228 = sphi 0, %s228
      %s230 = sphi 0, %s228
      %s231 = sphi 0, %s230
      %s245 = sphi 0, %s231
      %s249 = sphi 0, %s249
      %s251 = sphi 0, %s249
      %s252 = sphi 0, %s251
      %s266 = sphi 0, %s252
      %s272 = sphi 0, %s274
      %s275 = sphi 0, %s272
      %s276 = sphi 0, %s275
      %s292 = sphi 0, %s276
    $region4: #{tpu_custom_call.1} parent=1 // loop_header_branch
      %29 = sbr.rel (%p27) target = $region8
    $region5: #{tpu_custom_call.1} parent=1 // loop_body
      %s31 = ssub.s32 %s26, 1
      %s32 = ssub.s32 %s26, 2
      %s33 = sadd.s32 %s26, 1
      %s34 = ssub.s32 %s26, %s33
      %p35 = scmp.eq.s32.totalorder %s34, 0
      %s37 = sadd.s32 %s36, 1
      %s38 = scalar_select %p35, %s36, %s37
      %p41 = pneg %p35
      %p42 = scmp.eq.s32.totalorder %s26, 1
      %p43 = por %p41, %p42
      %p44 = scmp.ne.s32.totalorder %s36, %s39
      %p45 = scmp.eq.s32.totalorder %s26, 0
      %p46 = por %p44, %p45
      %p47 = scmp.ne.s32.totalorder %s36, %s39
      %p48 = scmp.eq.s32.totalorder %s31, 1
      %p49 = por %p47, %p48
      %p50 = scmp.ne.s32.totalorder %s39, %s40
      %p51 = scmp.eq.s32.totalorder %s31, 0
      %p52 = por %p50, %p51
      %p53 = scmp.ne.s32.totalorder %s39, %s40
      %p54 = scmp.eq.s32.totalorder %s32, 1
      %p55 = por %p53, %p54
      %p57 = scmp.ne.s32.totalorder %s40, %s56
      %p58 = scmp.eq.s32.totalorder %s32, 0
      %p59 = por %p57, %p58
      %s61 = sadd.s32 %s60, 1
      %p64 = scmp.eq.s32.totalorder %s26, 1
      %p65 = scmp.ne.s32.totalorder %s60, %s62
      %p66 = scmp.eq.s32.totalorder %s26, 0
      %p67 = por %p65, %p66
      %p68 = scmp.ne.s32.totalorder %s60, %s62
      %p69 = scmp.eq.s32.totalorder %s31, 1
      %p70 = por %p68, %p69
      %p71 = scmp.ne.s32.totalorder %s62, %s63
      %p72 = scmp.eq.s32.totalorder %s31, 0
      %p73 = por %p71, %p72
      %p74 = scmp.ne.s32.totalorder %s62, %s63
      %p75 = scmp.eq.s32.totalorder %s32, 1
      %p76 = por %p74, %p75
      %p78 = scmp.ne.s32.totalorder %s63, %s77
      %p79 = scmp.eq.s32.totalorder %s32, 0
      %p80 = por %p78, %p79
      %s82 = sadd.s32 %s81, 1
      %p85 = scmp.eq.s32.totalorder %s26, 1
      %p86 = scmp.ne.s32.totalorder %s81, %s83
      %p87 = scmp.eq.s32.totalorder %s26, 0
      %p88 = por %p86, %p87
      %p89 = scmp.ne.s32.totalorder %s81, %s83
      %p90 = scmp.eq.s32.totalorder %s31, 1
      %p91 = por %p89, %p90
      %p92 = scmp.ne.s32.totalorder %s83, %s84
      %p93 = scmp.eq.s32.totalorder %s31, 0
      %p94 = por %p92, %p93
      %p95 = scmp.ne.s32.totalorder %s83, %s84
      %p96 = scmp.eq.s32.totalorder %s32, 1
      %p97 = por %p95, %p96
      %p99 = scmp.ne.s32.totalorder %s84, %s98
      %p100 = scmp.eq.s32.totalorder %s32, 0
      %p101 = por %p99, %p100
      %s103 = sadd.s32 %s102, 1
      %p106 = scmp.eq.s32.totalorder %s26, 1
      %p107 = scmp.ne.s32.totalorder %s102, %s104
      %p108 = scmp.eq.s32.totalorder %s26, 0
      %p109 = por %p107, %p108
      %p110 = scmp.ne.s32.totalorder %s102, %s104
      %p111 = scmp.eq.s32.totalorder %s31, 1
      %p112 = por %p110, %p111
      %p113 = scmp.ne.s32.totalorder %s104, %s105
      %p114 = scmp.eq.s32.totalorder %s31, 0
      %p115 = por %p113, %p114
      %p116 = scmp.ne.s32.totalorder %s104, %s105
      %p117 = scmp.eq.s32.totalorder %s32, 1
      %p118 = por %p116, %p117
      %p120 = scmp.ne.s32.totalorder %s105, %s119
      %p121 = scmp.eq.s32.totalorder %s32, 0
      %p122 = por %p120, %p121
      %s124 = sadd.s32 %s123, 1
      %p127 = scmp.eq.s32.totalorder %s26, 1
      %p128 = scmp.ne.s32.totalorder %s123, %s125
      %p129 = scmp.eq.s32.totalorder %s26, 0
      %p130 = por %p128, %p129
      %p131 = scmp.ne.s32.totalorder %s123, %s125
      %p132 = scmp.eq.s32.totalorder %s31, 1
      %p133 = por %p131, %p132
      %p134 = scmp.ne.s32.totalorder %s125, %s126
      %p135 = scmp.eq.s32.totalorder %s31, 0
      %p136 = por %p134, %p135
      %p137 = scmp.ne.s32.totalorder %s125, %s126
      %p138 = scmp.eq.s32.totalorder %s32, 1
      %p139 = por %p137, %p138
      %p141 = scmp.ne.s32.totalorder %s126, %s140
      %p142 = scmp.eq.s32.totalorder %s32, 0
      %p143 = por %p141, %p142
      %s145 = sadd.s32 %s144, 1
      %p148 = scmp.eq.s32.totalorder %s26, 1
      %p149 = scmp.ne.s32.totalorder %s144, %s146
      %p150 = scmp.eq.s32.totalorder %s26, 0
      %p151 = por %p149, %p150
      %p152 = scmp.ne.s32.totalorder %s144, %s146
      %p153 = scmp.eq.s32.totalorder %s31, 1
      %p154 = por %p152, %p153
      %p155 = scmp.ne.s32.totalorder %s146, %s147
      %p156 = scmp.eq.s32.totalorder %s31, 0
      %p157 = por %p155, %p156
      %p158 = scmp.ne.s32.totalorder %s146, %s147
      %p159 = scmp.eq.s32.totalorder %s32, 1
      %p160 = por %p158, %p159
      %p162 = scmp.ne.s32.totalorder %s147, %s161
      %p163 = scmp.eq.s32.totalorder %s32, 0
      %p164 = por %p162, %p163
      %s166 = sadd.s32 %s165, 1
      %p169 = scmp.eq.s32.totalorder %s26, 1
      %p170 = scmp.ne.s32.totalorder %s165, %s167
      %p171 = scmp.eq.s32.totalorder %s26, 0
      %p172 = por %p170, %p171
      %p173 = scmp.ne.s32.totalorder %s165, %s167
      %p174 = scmp.eq.s32.totalorder %s31, 1
      %p175 = por %p173, %p174
      %p176 = scmp.ne.s32.totalorder %s167, %s168
      %p177 = scmp.eq.s32.totalorder %s31, 0
      %p178 = por %p176, %p177
      %p179 = scmp.ne.s32.totalorder %s167, %s168
      %p180 = scmp.eq.s32.totalorder %s32, 1
      %p181 = por %p179, %p180
      %p183 = scmp.ne.s32.totalorder %s168, %s182
      %p184 = scmp.eq.s32.totalorder %s32, 0
      %p185 = por %p183, %p184
      %s187 = sadd.s32 %s186, 1
      %p190 = scmp.eq.s32.totalorder %s26, 1
      %p191 = scmp.ne.s32.totalorder %s186, %s188
      %p192 = scmp.eq.s32.totalorder %s26, 0
      %p193 = por %p191, %p192
      %p194 = scmp.ne.s32.totalorder %s186, %s188
      %p195 = scmp.eq.s32.totalorder %s31, 1
      %p196 = por %p194, %p195
      %p197 = scmp.ne.s32.totalorder %s188, %s189
      %p198 = scmp.eq.s32.totalorder %s31, 0
      %p199 = por %p197, %p198
      %p200 = scmp.ne.s32.totalorder %s188, %s189
      %p201 = scmp.eq.s32.totalorder %s32, 1
      %p202 = por %p200, %p201
      %p204 = scmp.ne.s32.totalorder %s189, %s203
      %p205 = scmp.eq.s32.totalorder %s32, 0
      %p206 = por %p204, %p205
      %s208 = sadd.s32 %s207, 1
      %p211 = scmp.eq.s32.totalorder %s26, 1
      %p212 = scmp.ne.s32.totalorder %s207, %s209
      %p213 = scmp.eq.s32.totalorder %s26, 0
      %p214 = por %p212, %p213
      %p215 = scmp.ne.s32.totalorder %s207, %s209
      %p216 = scmp.eq.s32.totalorder %s31, 1
      %p217 = por %p215, %p216
      %p218 = scmp.ne.s32.totalorder %s209, %s210
      %p219 = scmp.eq.s32.totalorder %s31, 0
      %p220 = por %p218, %p219
      %p221 = scmp.ne.s32.totalorder %s209, %s210
      %p222 = scmp.eq.s32.totalorder %s32, 1
      %p223 = por %p221, %p222
      %p225 = scmp.ne.s32.totalorder %s210, %s224
      %p226 = scmp.eq.s32.totalorder %s32, 0
      %p227 = por %p225, %p226
      %s229 = sadd.s32 %s228, 1
      %p232 = scmp.eq.s32.totalorder %s26, 1
      %p233 = scmp.ne.s32.totalorder %s228, %s230
      %p234 = scmp.eq.s32.totalorder %s26, 0
      %p235 = por %p233, %p234
      %p236 = scmp.ne.s32.totalorder %s228, %s230
      %p237 = scmp.eq.s32.totalorder %s31, 1
      %p238 = por %p236, %p237
      %p239 = scmp.ne.s32.totalorder %s230, %s231
      %p240 = scmp.eq.s32.totalorder %s31, 0
      %p241 = por %p239, %p240
      %p242 = scmp.ne.s32.totalorder %s230, %s231
      %p243 = scmp.eq.s32.totalorder %s32, 1
      %p244 = por %p242, %p243
      %p246 = scmp.ne.s32.totalorder %s231, %s245
      %p247 = scmp.eq.s32.totalorder %s32, 0
      %p248 = por %p246, %p247
      %s250 = sadd.s32 %s249, 1
      %p253 = scmp.eq.s32.totalorder %s26, 1
      %p254 = scmp.ne.s32.totalorder %s249, %s251
      %p255 = scmp.eq.s32.totalorder %s26, 0
      %p256 = por %p254, %p255
      %p257 = scmp.ne.s32.totalorder %s249, %s251
      %p258 = scmp.eq.s32.totalorder %s31, 1
      %p259 = por %p257, %p258
      %p260 = scmp.ne.s32.totalorder %s251, %s252
      %p261 = scmp.eq.s32.totalorder %s31, 0
      %p262 = por %p260, %p261
      %p263 = scmp.ne.s32.totalorder %s251, %s252
      %p264 = scmp.eq.s32.totalorder %s32, 1
      %p265 = por %p263, %p264
      %p267 = scmp.ne.s32.totalorder %s252, %s266
      %p268 = scmp.eq.s32.totalorder %s32, 0
      %p269 = por %p267, %p268
      %s270 = ssub.s32 %s26, %s33
      %p271 = scmp.eq.s32.totalorder %s270, 0
      %s273 = sadd.s32 %s272, 1
      %s274 = scalar_select %p271, %s272, %s273
      %p277 = pneg %p271
      %p278 = scmp.eq.s32.totalorder %s26, 1
      %p279 = por %p277, %p278
      %p280 = scmp.ne.s32.totalorder %s272, %s275
      %p281 = scmp.eq.s32.totalorder %s26, 0
      %p282 = por %p280, %p281
      %p283 = scmp.ne.s32.totalorder %s272, %s275
      %p284 = scmp.eq.s32.totalorder %s31, 1
      %p285 = por %p283, %p284
      %p286 = scmp.ne.s32.totalorder %s275, %s276
      %p287 = scmp.eq.s32.totalorder %s31, 0
      %p288 = por %p286, %p287
      %p289 = scmp.ne.s32.totalorder %s275, %s276
      %p290 = scmp.eq.s32.totalorder %s32, 1
      %p291 = por %p289, %p290
      %p293 = scmp.ne.s32.totalorder %s276, %s292
      %p294 = scmp.eq.s32.totalorder %s32, 0
      %p295 = por %p293, %p294
      %p296 = scmp.le.s32.totalorder 1, %s26
      %p297 = scmp.lt.s32.totalorder %s26, 3
      %p298 = pnand %p296, %p297
      %p299 = pneg %p298
      // Predicated region
      $region9: #{tpu_custom_call.1} parent=5 // pred_check
        _
      $region10: #{tpu_custom_call.1} parent=5 // pred_check_branch
        %301 = sbr.rel (%p298) target = $region12
      $region11: #{tpu_custom_call.1} parent=5 // pred_region
        %s302 = ssub.s32 %s26, 1
        // Predicated region
        $region13: #{tpu_custom_call.1} parent=11 // pred_check
          %p303 = pneg %p73
        $region14: #{tpu_custom_call.1} parent=11 // pred_check_branch
          %305 = sbr.rel (%p303) target = $region16
        $region15: #{tpu_custom_call.1} parent=11 // pred_region
          %s307 = ssub.s32 32768, 32768
          %308 = vsyncadd [#allocation7], %s307
          %s309 = sshll.u32 [#allocation6], 4
          %s310 = int_to_ptr.vmem [resolvable:$true] %s309
          %315 = dma.hbm_to_vmem [thread:$0]  %s1, 32768, %s310, [#allocation7], 256, 256, 16
        $region16: #{tpu_custom_call.1} parent=11 // pred_fallthru
          _
        // Predicated region
        $region17: #{tpu_custom_call.1} parent=11 // pred_check
          %p316 = pneg %p94
        $region18: #{tpu_custom_call.1} parent=11 // pred_check_branch
          %318 = sbr.rel (%p316) target = $region20
        $region19: #{tpu_custom_call.1} parent=11 // pred_region
          _
        $region20: #{tpu_custom_call.1} parent=11 // pred_fallthru
          _
        // Predicated region
        $region21: #{tpu_custom_call.1} parent=11 // pred_check
          %p319 = pneg %p115
        $region22: #{tpu_custom_call.1} parent=11 // pred_check_branch
          %321 = sbr.rel (%p319) target = $region24
        $region23: #{tpu_custom_call.1} parent=11 // pred_region
          %s323 = ssub.s32 8192, 8192
          %324 = vsyncadd [#allocation7], %s323
          %s325 = sshll.u32 [#allocation8], 4
          %s326 = int_to_ptr.vmem [resolvable:$true] %s325
          %331 = dma.hbm_to_vmem [thread:$0]  %s3, 8192, %s326, [#allocation7], 128, 128, 8
        $region24: #{tpu_custom_call.1} parent=11 // pred_fallthru
          _
        // Predicated region
        $region25: #{tpu_custom_call.1} parent=11 // pred_check
          %p332 = pneg %p136
        $region26: #{tpu_custom_call.1} parent=11 // pred_check_branch
          %334 = sbr.rel (%p332) target = $region28
        $region27: #{tpu_custom_call.1} parent=11 // pred_region
          _
        $region28: #{tpu_custom_call.1} parent=11 // pred_fallthru
          _
        // Predicated region
        $region29: #{tpu_custom_call.1} parent=11 // pred_check
          %p335 = pneg %p157
        $region30: #{tpu_custom_call.1} parent=11 // pred_check_branch
          %337 = sbr.rel (%p335) target = $region32
        $region31: #{tpu_custom_call.1} parent=11 // pred_region
          _
        $region32: #{tpu_custom_call.1} parent=11 // pred_fallthru
          _
        // Predicated region
        $region33: #{tpu_custom_call.1} parent=11 // pred_check
          %p338 = pneg %p178
        $region34: #{tpu_custom_call.1} parent=11 // pred_check_branch
          %340 = sbr.rel (%p338) target = $region36
        $region35: #{tpu_custom_call.1} parent=11 // pred_region
          _
        $region36: #{tpu_custom_call.1} parent=11 // pred_fallthru
          _
        // Predicated region
        $region37: #{tpu_custom_call.1} parent=11 // pred_check
          %p341 = pneg %p199
        $region38: #{tpu_custom_call.1} parent=11 // pred_check_branch
          %343 = sbr.rel (%p341) target = $region40
        $region39: #{tpu_custom_call.1} parent=11 // pred_region
          _
        $region40: #{tpu_custom_call.1} parent=11 // pred_fallthru
          _
        // Predicated region
        $region41: #{tpu_custom_call.1} parent=11 // pred_check
          %p344 = pneg %p220
        $region42: #{tpu_custom_call.1} parent=11 // pred_check_branch
          %346 = sbr.rel (%p344) target = $region44
        $region43: #{tpu_custom_call.1} parent=11 // pred_region
          _
        $region44: #{tpu_custom_call.1} parent=11 // pred_fallthru
          _
        // Predicated region
        $region45: #{tpu_custom_call.1} parent=11 // pred_check
          %p347 = pneg %p241
        $region46: #{tpu_custom_call.1} parent=11 // pred_check_branch
          %349 = sbr.rel (%p347) target = $region48
        $region47: #{tpu_custom_call.1} parent=11 // pred_region
          _
        $region48: #{tpu_custom_call.1} parent=11 // pred_fallthru
          _
        // Predicated region
        $region49: #{tpu_custom_call.1} parent=11 // pred_check
          %p350 = pneg %p262
        $region50: #{tpu_custom_call.1} parent=11 // pred_check_branch
          %352 = sbr.rel (%p350) target = $region52
        $region51: #{tpu_custom_call.1} parent=11 // pred_region
          _
        $region52: #{tpu_custom_call.1} parent=11 // pred_fallthru
          _
      $region12: #{tpu_custom_call.1} parent=5 // pred_fallthru
        _
      %p353 = scmp.lt.s32.totalorder %s26, 2
      // Predicated region
      $region53: #{tpu_custom_call.1} parent=5 // pred_check
        %p354 = pneg %p353
      $region54: #{tpu_custom_call.1} parent=5 // pred_check_branch
        %356 = sbr.rel (%p354) target = $region56
      $region55: #{tpu_custom_call.1} parent=5 // pred_region
        // Predicated region
        $region57: #{tpu_custom_call.1} parent=55 // pred_check
          %p357 = pneg %p46
        $region58: #{tpu_custom_call.1} parent=55 // pred_check_branch
          %359 = sbr.rel (%p357) target = $region60
        $region59: #{tpu_custom_call.1} parent=55 // pred_region
          %s360 = sand.u32 %s36, 1
          %s361 = scalar_lea.sflag [#allocation4], %s360
          %s362 = sand.u32 %s36, 1
          %s363 = smul.addr %s362, 512
          %s364 = scalar_lea.vmem [#allocation3], %s363
          %s365 = smul.u32 16, %s26
          %s367 = ssub.s32 8192, 8192
          %368 = vsyncadd %s361, %s367
          %s369 = smul.addr %s365, 8
          %s370 = smul.addr %s369, 64
          %s371 = scalar_lea.hbm %s0, %s370
          %s372 = sshll.u32 %s364, 4
          %s373 = int_to_ptr.vmem [resolvable:$true] %s372
          %378 = dma.hbm_to_vmem [thread:$0]  %s371, 8192, %s373, %s361, 512, 512, 32
        $region60: #{tpu_custom_call.1} parent=55 // pred_fallthru
          _
      $region56: #{tpu_custom_call.1} parent=5 // pred_fallthru
        _
      %p379 = scmp.le.s32.totalorder 1, %s26
      %p380 = scmp.lt.s32.totalorder %s26, 3
      %p381 = pnand %p379, %p380
      %p382 = pneg %p381
      // Predicated region
      $region61: #{tpu_custom_call.1} parent=5 // pred_check
        _
      $region62: #{tpu_custom_call.1} parent=5 // pred_check_branch
        %384 = sbr.rel (%p381) target = $region64
      $region63: #{tpu_custom_call.1} parent=5 // pred_region
        %s385 = ssub.s32 %s26, 1
        %s386 = sand.u32 %s39, 1
        %s387 = scalar_lea.sflag [#allocation4], %s386
        %s388 = sand.u32 %s39, 1
        %s389 = smul.addr %s388, 512
        %s390 = scalar_lea.vmem [#allocation3], %s389
        // Predicated region
        $region65: #{tpu_custom_call.1} parent=63 // pred_check
          %p391 = pneg %p52
        $region66: #{tpu_custom_call.1} parent=63 // pred_check_branch
          %393 = sbr.rel (%p391) target = $region68
        $region67: #{tpu_custom_call.1} parent=63 // pred_region
          %394 = dma.done %s387, 8192
        $region68: #{tpu_custom_call.1} parent=63 // pred_fallthru
          _
        // Predicated region
        $region69: #{tpu_custom_call.1} parent=63 // pred_check
          %p395 = pneg %p73
        $region70: #{tpu_custom_call.1} parent=63 // pred_check_branch
          %397 = sbr.rel (%p395) target = $region72
        $region71: #{tpu_custom_call.1} parent=63 // pred_region
          %398 = dma.done [#allocation7], 32768
        $region72: #{tpu_custom_call.1} parent=63 // pred_fallthru
          _
        // Predicated region
        $region73: #{tpu_custom_call.1} parent=63 // pred_check
          %p399 = pneg %p115
        $region74: #{tpu_custom_call.1} parent=63 // pred_check_branch
          %401 = sbr.rel (%p399) target = $region76
        $region75: #{tpu_custom_call.1} parent=63 // pred_region
          %402 = dma.done [#allocation7], 8192
        $region76: #{tpu_custom_call.1} parent=63 // pred_fallthru
          _
        %s403 = sand.u32 %s39, 1
        %s404 = scalar_lea.sflag [#allocation4], %s403
        %s405 = sand.u32 %s39, 1
        %s406 = smul.addr %s405, 512
        %s407 = scalar_lea.vmem [#allocation3], %s406
        %p408 = pneg %p52
        %p409 = pneg %p49
        %p410 = pneg %p73
        %p411 = pneg %p70
        %p412 = pneg %p94
        %p413 = pneg %p91
        %p414 = pneg %p115
        %p415 = pneg %p112
        %p416 = pneg %p136
        %p417 = pneg %p133
        %p418 = pneg %p157
        %p419 = pneg %p154
        %p420 = pneg %p178
        %p421 = pneg %p175
        %p422 = pneg %p199
        %p423 = pneg %p196
        %p424 = pneg %p220
        %p425 = pneg %p217
        %p426 = pneg %p241
        %p427 = pneg %p238
        %p428 = pneg %p262
        %p429 = pneg %p259
        %p430 = pneg %p288
        %p431 = pneg %p285
        %s432 = sand.u32 %s275, 1
        %s433 = scalar_lea.sflag [#allocation5], %s432
        %s434 = sand.u32 %s275, 1
        %s435 = scalar_lea.vmem [#allocation9], %s434
        %s436 = smul.u32 16, %s31
        %v438 = vld [vmem:[%s390] sm:$0xff]
        %v439 = vld [vmem:[%s390 + $0x8] sm:$0xff]
        %v440 = vld [vmem:[%s390 + $0x10] sm:$0xff]
        %v441 = vld [vmem:[%s390 + $0x18] sm:$0xff]
        %v442 = vld [vmem:[%s390 + $0x20] sm:$0xff]
        %v443 = vld [vmem:[%s390 + $0x28] sm:$0xff]
        %v444 = vld [vmem:[%s390 + $0x30] sm:$0xff]
        %v445 = vld [vmem:[%s390 + $0x38] sm:$0xff]
        %v446 = vld [vmem:[%s390 + $0x40] sm:$0xff]
        %v447 = vld [vmem:[%s390 + $0x48] sm:$0xff]
        %v448 = vld [vmem:[%s390 + $0x50] sm:$0xff]
        %v449 = vld [vmem:[%s390 + $0x58] sm:$0xff]
        %v450 = vld [vmem:[%s390 + $0x60] sm:$0xff]
        %v451 = vld [vmem:[%s390 + $0x68] sm:$0xff]
        %v452 = vld [vmem:[%s390 + $0x70] sm:$0xff]
        %v453 = vld [vmem:[%s390 + $0x78] sm:$0xff]
        %v454 = vld [vmem:[%s390 + $0x80] sm:$0xff]
        %v455 = vld [vmem:[%s390 + $0x88] sm:$0xff]
        %v456 = vld [vmem:[%s390 + $0x90] sm:$0xff]
        %v457 = vld [vmem:[%s390 + $0x98] sm:$0xff]
        %v458 = vld [vmem:[%s390 + $0xa0] sm:$0xff]
        %v459 = vld [vmem:[%s390 + $0xa8] sm:$0xff]
        %v460 = vld [vmem:[%s390 + $0xb0] sm:$0xff]
        %v461 = vld [vmem:[%s390 + $0xb8] sm:$0xff]
        %v462 = vld [vmem:[%s390 + $0xc0] sm:$0xff]
        %v463 = vld [vmem:[%s390 + $0xc8] sm:$0xff]
        %v464 = vld [vmem:[%s390 + $0xd0] sm:$0xff]
        %v465 = vld [vmem:[%s390 + $0xd8] sm:$0xff]
        %v466 = vld [vmem:[%s390 + $0xe0] sm:$0xff]
        %v467 = vld [vmem:[%s390 + $0xe8] sm:$0xff]
        %v468 = vld [vmem:[%s390 + $0xf0] sm:$0xff]
        %v469 = vld [vmem:[%s390 + $0xf8] sm:$0xff]
        %v470 = vld [vmem:[%s390 + $0x100] sm:$0xff]
        %v471 = vld [vmem:[%s390 + $0x108] sm:$0xff]
        %v472 = vld [vmem:[%s390 + $0x110] sm:$0xff]
        %v473 = vld [vmem:[%s390 + $0x118] sm:$0xff]
        %v474 = vld [vmem:[%s390 + $0x120] sm:$0xff]
        %v475 = vld [vmem:[%s390 + $0x128] sm:$0xff]
        %v476 = vld [vmem:[%s390 + $0x130] sm:$0xff]
        %v477 = vld [vmem:[%s390 + $0x138] sm:$0xff]
        %v478 = vld [vmem:[%s390 + $0x140] sm:$0xff]
        %v479 = vld [vmem:[%s390 + $0x148] sm:$0xff]
        %v480 = vld [vmem:[%s390 + $0x150] sm:$0xff]
        %v481 = vld [vmem:[%s390 + $0x158] sm:$0xff]
        %v482 = vld [vmem:[%s390 + $0x160] sm:$0xff]
        %v483 = vld [vmem:[%s390 + $0x168] sm:$0xff]
        %v484 = vld [vmem:[%s390 + $0x170] sm:$0xff]
        %v485 = vld [vmem:[%s390 + $0x178] sm:$0xff]
        %v486 = vld [vmem:[%s390 + $0x180] sm:$0xff]
        %v487 = vld [vmem:[%s390 + $0x188] sm:$0xff]
        %v488 = vld [vmem:[%s390 + $0x190] sm:$0xff]
        %v489 = vld [vmem:[%s390 + $0x198] sm:$0xff]
        %v490 = vld [vmem:[%s390 + $0x1a0] sm:$0xff]
        %v491 = vld [vmem:[%s390 + $0x1a8] sm:$0xff]
        %v492 = vld [vmem:[%s390 + $0x1b0] sm:$0xff]
        %v493 = vld [vmem:[%s390 + $0x1b8] sm:$0xff]
        %v494 = vld [vmem:[%s390 + $0x1c0] sm:$0xff]
        %v495 = vld [vmem:[%s390 + $0x1c8] sm:$0xff]
        %v496 = vld [vmem:[%s390 + $0x1d0] sm:$0xff]
        %v497 = vld [vmem:[%s390 + $0x1d8] sm:$0xff]
        %v498 = vld [vmem:[%s390 + $0x1e0] sm:$0xff]
        %v499 = vld [vmem:[%s390 + $0x1e8] sm:$0xff]
        %v500 = vld [vmem:[%s390 + $0x1f0] sm:$0xff]
        %v501 = vld [vmem:[%s390 + $0x1f8] sm:$0xff]
        %v502 = vld [vmem:[#allocation6] sm:$0xff]
        %v503 = vld [vmem:[#allocation6 + $0x8] sm:$0xff]
        %v504 = vld [vmem:[#allocation6 + $0x10] sm:$0xff]
        %v505 = vld [vmem:[#allocation6 + $0x18] sm:$0xff]
        %v506 = vld [vmem:[#allocation6 + $0x20] sm:$0xff]
        %v507 = vld [vmem:[#allocation6 + $0x28] sm:$0xff]
        %v508 = vld [vmem:[#allocation6 + $0x30] sm:$0xff]
        %v509 = vld [vmem:[#allocation6 + $0x38] sm:$0xff]
        %v510 = vld [vmem:[#allocation6 + $0x40] sm:$0xff]
        %v511 = vld [vmem:[#allocation6 + $0x48] sm:$0xff]
        %v512 = vld [vmem:[#allocation6 + $0x50] sm:$0xff]
        %v513 = vld [vmem:[#allocation6 + $0x58] sm:$0xff]
        %v514 = vld [vmem:[#allocation6 + $0x60] sm:$0xff]
        %v515 = vld [vmem:[#allocation6 + $0x68] sm:$0xff]
        %v516 = vld [vmem:[#allocation6 + $0x70] sm:$0xff]
        %v517 = vld [vmem:[#allocation6 + $0x78] sm:$0xff]
        %v518 = vld [vmem:[#allocation6 + $0x80] sm:$0xff]
        %v519 = vld [vmem:[#allocation6 + $0x88] sm:$0xff]
        %v520 = vld [vmem:[#allocation6 + $0x90] sm:$0xff]
        %v521 = vld [vmem:[#allocation6 + $0x98] sm:$0xff]
        %v522 = vld [vmem:[#allocation6 + $0xa0] sm:$0xff]
        %v523 = vld [vmem:[#allocation6 + $0xa8] sm:$0xff]
        %v524 = vld [vmem:[#allocation6 + $0xb0] sm:$0xff]
        %v525 = vld [vmem:[#allocation6 + $0xb8] sm:$0xff]
        %v526 = vld [vmem:[#allocation6 + $0xc0] sm:$0xff]
        %v527 = vld [vmem:[#allocation6 + $0xc8] sm:$0xff]
        %v528 = vld [vmem:[#allocation6 + $0xd0] sm:$0xff]
        %v529 = vld [vmem:[#allocation6 + $0xd8] sm:$0xff]
        %v530 = vld [vmem:[#allocation6 + $0xe0] sm:$0xff]
        %v531 = vld [vmem:[#allocation6 + $0xe8] sm:$0xff]
        %v532 = vld [vmem:[#allocation6 + $0xf0] sm:$0xff]
        %v533 = vld [vmem:[#allocation6 + $0xf8] sm:$0xff]
        %v534 = vld [vmem:[#allocation6 + $0x100] sm:$0xff]
        %v535 = vld [vmem:[#allocation6 + $0x108] sm:$0xff]
        %v536 = vld [vmem:[#allocation6 + $0x110] sm:$0xff]
        %v537 = vld [vmem:[#allocation6 + $0x118] sm:$0xff]
        %v538 = vld [vmem:[#allocation6 + $0x120] sm:$0xff]
        %v539 = vld [vmem:[#allocation6 + $0x128] sm:$0xff]
        %v540 = vld [vmem:[#allocation6 + $0x130] sm:$0xff]
        %v541 = vld [vmem:[#allocation6 + $0x138] sm:$0xff]
        %v542 = vld [vmem:[#allocation6 + $0x140] sm:$0xff]
        %v543 = vld [vmem:[#allocation6 + $0x148] sm:$0xff]
        %v544 = vld [vmem:[#allocation6 + $0x150] sm:$0xff]
        %v545 = vld [vmem:[#allocation6 + $0x158] sm:$0xff]
        %v546 = vld [vmem:[#allocation6 + $0x160] sm:$0xff]
        %v547 = vld [vmem:[#allocation6 + $0x168] sm:$0xff]
        %v548 = vld [vmem:[#allocation6 + $0x170] sm:$0xff]
        %v549 = vld [vmem:[#allocation6 + $0x178] sm:$0xff]
        %v550 = vld [vmem:[#allocation6 + $0x180] sm:$0xff]
        %v551 = vld [vmem:[#allocation6 + $0x188] sm:$0xff]
        %v552 = vld [vmem:[#allocation6 + $0x190] sm:$0xff]
        %v553 = vld [vmem:[#allocation6 + $0x198] sm:$0xff]
        %v554 = vld [vmem:[#allocation6 + $0x1a0] sm:$0xff]
        %v555 = vld [vmem:[#allocation6 + $0x1a8] sm:$0xff]
        %v556 = vld [vmem:[#allocation6 + $0x1b0] sm:$0xff]
        %v557 = vld [vmem:[#allocation6 + $0x1b8] sm:$0xff]
        %v558 = vld [vmem:[#allocation6 + $0x1c0] sm:$0xff]
        %v559 = vld [vmem:[#allocation6 + $0x1c8] sm:$0xff]
        %v560 = vld [vmem:[#allocation6 + $0x1d0] sm:$0xff]
        %v561 = vld [vmem:[#allocation6 + $0x1d8] sm:$0xff]
        %v562 = vld [vmem:[#allocation6 + $0x1e0] sm:$0xff]
        %v563 = vld [vmem:[#allocation6 + $0x1e8] sm:$0xff]
        %v564 = vld [vmem:[#allocation6 + $0x1f0] sm:$0xff]
        %v565 = vld [vmem:[#allocation6 + $0x1f8] sm:$0xff]
        %v566 = vld [vmem:[#allocation6 + $0x200] sm:$0xff]
        %v567 = vld [vmem:[#allocation6 + $0x208] sm:$0xff]
        %v568 = vld [vmem:[#allocation6 + $0x210] sm:$0xff]
        %v569 = vld [vmem:[#allocation6 + $0x218] sm:$0xff]
        %v570 = vld [vmem:[#allocation6 + $0x220] sm:$0xff]
        %v571 = vld [vmem:[#allocation6 + $0x228] sm:$0xff]
        %v572 = vld [vmem:[#allocation6 + $0x230] sm:$0xff]
        %v573 = vld [vmem:[#allocation6 + $0x238] sm:$0xff]
        %v574 = vld [vmem:[#allocation6 + $0x240] sm:$0xff]
        %v575 = vld [vmem:[#allocation6 + $0x248] sm:$0xff]
        %v576 = vld [vmem:[#allocation6 + $0x250] sm:$0xff]
        %v577 = vld [vmem:[#allocation6 + $0x258] sm:$0xff]
        %v578 = vld [vmem:[#allocation6 + $0x260] sm:$0xff]
        %v579 = vld [vmem:[#allocation6 + $0x268] sm:$0xff]
        %v580 = vld [vmem:[#allocation6 + $0x270] sm:$0xff]
        %v581 = vld [vmem:[#allocation6 + $0x278] sm:$0xff]
        %v582 = vld [vmem:[#allocation6 + $0x280] sm:$0xff]
        %v583 = vld [vmem:[#allocation6 + $0x288] sm:$0xff]
        %v584 = vld [vmem:[#allocation6 + $0x290] sm:$0xff]
        %v585 = vld [vmem:[#allocation6 + $0x298] sm:$0xff]
        %v586 = vld [vmem:[#allocation6 + $0x2a0] sm:$0xff]
        %v587 = vld [vmem:[#allocation6 + $0x2a8] sm:$0xff]
        %v588 = vld [vmem:[#allocation6 + $0x2b0] sm:$0xff]
        %v589 = vld [vmem:[#allocation6 + $0x2b8] sm:$0xff]
        %v590 = vld [vmem:[#allocation6 + $0x2c0] sm:$0xff]
        %v591 = vld [vmem:[#allocation6 + $0x2c8] sm:$0xff]
        %v592 = vld [vmem:[#allocation6 + $0x2d0] sm:$0xff]
        %v593 = vld [vmem:[#allocation6 + $0x2d8] sm:$0xff]
        %v594 = vld [vmem:[#allocation6 + $0x2e0] sm:$0xff]
        %v595 = vld [vmem:[#allocation6 + $0x2e8] sm:$0xff]
        %v596 = vld [vmem:[#allocation6 + $0x2f0] sm:$0xff]
        %v597 = vld [vmem:[#allocation6 + $0x2f8] sm:$0xff]
        %v598 = vld [vmem:[#allocation6 + $0x300] sm:$0xff]
        %v599 = vld [vmem:[#allocation6 + $0x308] sm:$0xff]
        %v600 = vld [vmem:[#allocation6 + $0x310] sm:$0xff]
        %v601 = vld [vmem:[#allocation6 + $0x318] sm:$0xff]
        %v602 = vld [vmem:[#allocation6 + $0x320] sm:$0xff]
        %v603 = vld [vmem:[#allocation6 + $0x328] sm:$0xff]
        %v604 = vld [vmem:[#allocation6 + $0x330] sm:$0xff]
        %v605 = vld [vmem:[#allocation6 + $0x338] sm:$0xff]
        %v606 = vld [vmem:[#allocation6 + $0x340] sm:$0xff]
        %v607 = vld [vmem:[#allocation6 + $0x348] sm:$0xff]
        %v608 = vld [vmem:[#allocation6 + $0x350] sm:$0xff]
        %v609 = vld [vmem:[#allocation6 + $0x358] sm:$0xff]
        %v610 = vld [vmem:[#allocation6 + $0x360] sm:$0xff]
        %v611 = vld [vmem:[#allocation6 + $0x368] sm:$0xff]
        %v612 = vld [vmem:[#allocation6 + $0x370] sm:$0xff]
        %v613 = vld [vmem:[#allocation6 + $0x378] sm:$0xff]
        %v614 = vld [vmem:[#allocation6 + $0x380] sm:$0xff]
        %v615 = vld [vmem:[#allocation6 + $0x388] sm:$0xff]
        %v616 = vld [vmem:[#allocation6 + $0x390] sm:$0xff]
        %v617 = vld [vmem:[#allocation6 + $0x398] sm:$0xff]
        %v618 = vld [vmem:[#allocation6 + $0x3a0] sm:$0xff]
        %v619 = vld [vmem:[#allocation6 + $0x3a8] sm:$0xff]
        %v620 = vld [vmem:[#allocation6 + $0x3b0] sm:$0xff]
        %v621 = vld [vmem:[#allocation6 + $0x3b8] sm:$0xff]
        %v622 = vld [vmem:[#allocation6 + $0x3c0] sm:$0xff]
        %v623 = vld [vmem:[#allocation6 + $0x3c8] sm:$0xff]
        %v624 = vld [vmem:[#allocation6 + $0x3d0] sm:$0xff]
        %v625 = vld [vmem:[#allocation6 + $0x3d8] sm:$0xff]
        %v626 = vld [vmem:[#allocation6 + $0x3e0] sm:$0xff]
        %v627 = vld [vmem:[#allocation6 + $0x3e8] sm:$0xff]
        %v628 = vld [vmem:[#allocation6 + $0x3f0] sm:$0xff]
        %v629 = vld [vmem:[#allocation6 + $0x3f8] sm:$0xff]
        %v630 = vld [vmem:[#allocation6 + $0x400] sm:$0xff]
        %v631 = vld [vmem:[#allocation6 + $0x408] sm:$0xff]
        %v632 = vld [vmem:[#allocation6 + $0x410] sm:$0xff]
        %v633 = vld [vmem:[#allocation6 + $0x418] sm:$0xff]
        %v634 = vld [vmem:[#allocation6 + $0x420] sm:$0xff]
        %v635 = vld [vmem:[#allocation6 + $0x428] sm:$0xff]
        %v636 = vld [vmem:[#allocation6 + $0x430] sm:$0xff]
        %v637 = vld [vmem:[#allocation6 + $0x438] sm:$0xff]
        %v638 = vld [vmem:[#allocation6 + $0x440] sm:$0xff]
        %v639 = vld [vmem:[#allocation6 + $0x448] sm:$0xff]
        %v640 = vld [vmem:[#allocation6 + $0x450] sm:$0xff]
        %v641 = vld [vmem:[#allocation6 + $0x458] sm:$0xff]
        %v642 = vld [vmem:[#allocation6 + $0x460] sm:$0xff]
        %v643 = vld [vmem:[#allocation6 + $0x468] sm:$0xff]
        %v644 = vld [vmem:[#allocation6 + $0x470] sm:$0xff]
        %v645 = vld [vmem:[#allocation6 + $0x478] sm:$0xff]
        %v646 = vld [vmem:[#allocation6 + $0x480] sm:$0xff]
        %v647 = vld [vmem:[#allocation6 + $0x488] sm:$0xff]
        %v648 = vld [vmem:[#allocation6 + $0x490] sm:$0xff]
        %v649 = vld [vmem:[#allocation6 + $0x498] sm:$0xff]
        %v650 = vld [vmem:[#allocation6 + $0x4a0] sm:$0xff]
        %v651 = vld [vmem:[#allocation6 + $0x4a8] sm:$0xff]
        %v652 = vld [vmem:[#allocation6 + $0x4b0] sm:$0xff]
        %v653 = vld [vmem:[#allocation6 + $0x4b8] sm:$0xff]
        %v654 = vld [vmem:[#allocation6 + $0x4c0] sm:$0xff]
        %v655 = vld [vmem:[#allocation6 + $0x4c8] sm:$0xff]
        %v656 = vld [vmem:[#allocation6 + $0x4d0] sm:$0xff]
        %v657 = vld [vmem:[#allocation6 + $0x4d8] sm:$0xff]
        %v658 = vld [vmem:[#allocation6 + $0x4e0] sm:$0xff]
        %v659 = vld [vmem:[#allocation6 + $0x4e8] sm:$0xff]
        %v660 = vld [vmem:[#allocation6 + $0x4f0] sm:$0xff]
        %v661 = vld [vmem:[#allocation6 + $0x4f8] sm:$0xff]
        %v662 = vld [vmem:[#allocation6 + $0x500] sm:$0xff]
        %v663 = vld [vmem:[#allocation6 + $0x508] sm:$0xff]
        %v664 = vld [vmem:[#allocation6 + $0x510] sm:$0xff]
        %v665 = vld [vmem:[#allocation6 + $0x518] sm:$0xff]
        %v666 = vld [vmem:[#allocation6 + $0x520] sm:$0xff]
        %v667 = vld [vmem:[#allocation6 + $0x528] sm:$0xff]
        %v668 = vld [vmem:[#allocation6 + $0x530] sm:$0xff]
        %v669 = vld [vmem:[#allocation6 + $0x538] sm:$0xff]
        %v670 = vld [vmem:[#allocation6 + $0x540] sm:$0xff]
        %v671 = vld [vmem:[#allocation6 + $0x548] sm:$0xff]
        %v672 = vld [vmem:[#allocation6 + $0x550] sm:$0xff]
        %v673 = vld [vmem:[#allocation6 + $0x558] sm:$0xff]
        %v674 = vld [vmem:[#allocation6 + $0x560] sm:$0xff]
        %v675 = vld [vmem:[#allocation6 + $0x568] sm:$0xff]
        %v676 = vld [vmem:[#allocation6 + $0x570] sm:$0xff]
        %v677 = vld [vmem:[#allocation6 + $0x578] sm:$0xff]
        %v678 = vld [vmem:[#allocation6 + $0x580] sm:$0xff]
        %v679 = vld [vmem:[#allocation6 + $0x588] sm:$0xff]
        %v680 = vld [vmem:[#allocation6 + $0x590] sm:$0xff]
        %v681 = vld [vmem:[#allocation6 + $0x598] sm:$0xff]
        %v682 = vld [vmem:[#allocation6 + $0x5a0] sm:$0xff]
        %v683 = vld [vmem:[#allocation6 + $0x5a8] sm:$0xff]
        %v684 = vld [vmem:[#allocation6 + $0x5b0] sm:$0xff]
        %v685 = vld [vmem:[#allocation6 + $0x5b8] sm:$0xff]
        %v686 = vld [vmem:[#allocation6 + $0x5c0] sm:$0xff]
        %v687 = vld [vmem:[#allocation6 + $0x5c8] sm:$0xff]
        %v688 = vld [vmem:[#allocation6 + $0x5d0] sm:$0xff]
        %v689 = vld [vmem:[#allocation6 + $0x5d8] sm:$0xff]
        %v690 = vld [vmem:[#allocation6 + $0x5e0] sm:$0xff]
        %v691 = vld [vmem:[#allocation6 + $0x5e8] sm:$0xff]
        %v692 = vld [vmem:[#allocation6 + $0x5f0] sm:$0xff]
        %v693 = vld [vmem:[#allocation6 + $0x5f8] sm:$0xff]
        %v694 = vld [vmem:[#allocation6 + $0x600] sm:$0xff]
        %v695 = vld [vmem:[#allocation6 + $0x608] sm:$0xff]
        %v696 = vld [vmem:[#allocation6 + $0x610] sm:$0xff]
        %v697 = vld [vmem:[#allocation6 + $0x618] sm:$0xff]
        %v698 = vld [vmem:[#allocation6 + $0x620] sm:$0xff]
        %v699 = vld [vmem:[#allocation6 + $0x628] sm:$0xff]
        %v700 = vld [vmem:[#allocation6 + $0x630] sm:$0xff]
        %v701 = vld [vmem:[#allocation6 + $0x638] sm:$0xff]
        %v702 = vld [vmem:[#allocation6 + $0x640] sm:$0xff]
        %v703 = vld [vmem:[#allocation6 + $0x648] sm:$0xff]
        %v704 = vld [vmem:[#allocation6 + $0x650] sm:$0xff]
        %v705 = vld [vmem:[#allocation6 + $0x658] sm:$0xff]
        %v706 = vld [vmem:[#allocation6 + $0x660] sm:$0xff]
        %v707 = vld [vmem:[#allocation6 + $0x668] sm:$0xff]
        %v708 = vld [vmem:[#allocation6 + $0x670] sm:$0xff]
        %v709 = vld [vmem:[#allocation6 + $0x678] sm:$0xff]
        %v710 = vld [vmem:[#allocation6 + $0x680] sm:$0xff]
        %v711 = vld [vmem:[#allocation6 + $0x688] sm:$0xff]
        %v712 = vld [vmem:[#allocation6 + $0x690] sm:$0xff]
        %v713 = vld [vmem:[#allocation6 + $0x698] sm:$0xff]
        %v714 = vld [vmem:[#allocation6 + $0x6a0] sm:$0xff]
        %v715 = vld [vmem:[#allocation6 + $0x6a8] sm:$0xff]
        %v716 = vld [vmem:[#allocation6 + $0x6b0] sm:$0xff]
        %v717 = vld [vmem:[#allocation6 + $0x6b8] sm:$0xff]
        %v718 = vld [vmem:[#allocation6 + $0x6c0] sm:$0xff]
        %v719 = vld [vmem:[#allocation6 + $0x6c8] sm:$0xff]
        %v720 = vld [vmem:[#allocation6 + $0x6d0] sm:$0xff]
        %v721 = vld [vmem:[#allocation6 + $0x6d8] sm:$0xff]
        %v722 = vld [vmem:[#allocation6 + $0x6e0] sm:$0xff]
        %v723 = vld [vmem:[#allocation6 + $0x6e8] sm:$0xff]
        %v724 = vld [vmem:[#allocation6 + $0x6f0] sm:$0xff]
        %v725 = vld [vmem:[#allocation6 + $0x6f8] sm:$0xff]
        %v726 = vld [vmem:[#allocation6 + $0x700] sm:$0xff]
        %v727 = vld [vmem:[#allocation6 + $0x708] sm:$0xff]
        %v728 = vld [vmem:[#allocation6 + $0x710] sm:$0xff]
        %v729 = vld [vmem:[#allocation6 + $0x718] sm:$0xff]
        %v730 = vld [vmem:[#allocation6 + $0x720] sm:$0xff]
        %v731 = vld [vmem:[#allocation6 + $0x728] sm:$0xff]
        %v732 = vld [vmem:[#allocation6 + $0x730] sm:$0xff]
        %v733 = vld [vmem:[#allocation6 + $0x738] sm:$0xff]
        %v734 = vld [vmem:[#allocation6 + $0x740] sm:$0xff]
        %v735 = vld [vmem:[#allocation6 + $0x748] sm:$0xff]
        %v736 = vld [vmem:[#allocation6 + $0x750] sm:$0xff]
        %v737 = vld [vmem:[#allocation6 + $0x758] sm:$0xff]
        %v738 = vld [vmem:[#allocation6 + $0x760] sm:$0xff]
        %v739 = vld [vmem:[#allocation6 + $0x768] sm:$0xff]
        %v740 = vld [vmem:[#allocation6 + $0x770] sm:$0xff]
        %v741 = vld [vmem:[#allocation6 + $0x778] sm:$0xff]
        %v742 = vld [vmem:[#allocation6 + $0x780] sm:$0xff]
        %v743 = vld [vmem:[#allocation6 + $0x788] sm:$0xff]
        %v744 = vld [vmem:[#allocation6 + $0x790] sm:$0xff]
        %v745 = vld [vmem:[#allocation6 + $0x798] sm:$0xff]
        %v746 = vld [vmem:[#allocation6 + $0x7a0] sm:$0xff]
        %v747 = vld [vmem:[#allocation6 + $0x7a8] sm:$0xff]
        %v748 = vld [vmem:[#allocation6 + $0x7b0] sm:$0xff]
        %v749 = vld [vmem:[#allocation6 + $0x7b8] sm:$0xff]
        %v750 = vld [vmem:[#allocation6 + $0x7c0] sm:$0xff]
        %v751 = vld [vmem:[#allocation6 + $0x7c8] sm:$0xff]
        %v752 = vld [vmem:[#allocation6 + $0x7d0] sm:$0xff]
        %v753 = vld [vmem:[#allocation6 + $0x7d8] sm:$0xff]
        %v754 = vld [vmem:[#allocation6 + $0x7e0] sm:$0xff]
        %v755 = vld [vmem:[#allocation6 + $0x7e8] sm:$0xff]
        %v756 = vld [vmem:[#allocation6 + $0x7f0] sm:$0xff]
        %v757 = vld [vmem:[#allocation6 + $0x7f8] sm:$0xff]
        %v758 = vld [vmem:[%s2] sm:$0xf]
        %v760 = vlaneseq
        %v761 = vshrl.u32 %v760, 7
        %v762 = vsub.s32 0, %v761
        %v763 = vrot.slane %v758, %v762
        %v764 = vlaneseq
        %v765 = vshrl.u32 %v764, 7
        %v766 = vsub.s32 1, %v765
        %v767 = vrot.slane %v758, %v766
        %v768 = vlaneseq
        %v769 = vshrl.u32 %v768, 7
        %v770 = vsub.s32 2, %v769
        %v771 = vrot.slane %v758, %v770
        %v772 = vlaneseq
        %v773 = vshrl.u32 %v772, 7
        %v774 = vsub.s32 3, %v773
        %v775 = vrot.slane %v758, %v774
        %v844 = vunpack.c.l.b16 %v438
        %v845 = vunpack.c.h.b16 %v438
        %v846 = vunpack.c.l.b16 %v439
        %v847 = vunpack.c.h.b16 %v439
        %v848 = vunpack.c.l.b16 %v440
        %v849 = vunpack.c.h.b16 %v440
        %v850 = vunpack.c.l.b16 %v441
        %v851 = vunpack.c.h.b16 %v441
        %v852 = vunpack.c.l.b16 %v442
        %v853 = vunpack.c.h.b16 %v442
        %v854 = vunpack.c.l.b16 %v443
        %v855 = vunpack.c.h.b16 %v443
        %v856 = vunpack.c.l.b16 %v444
        %v857 = vunpack.c.h.b16 %v444
        %v858 = vunpack.c.l.b16 %v445
        %v859 = vunpack.c.h.b16 %v445
        %v860 = vunpack.c.l.b16 %v446
        %v861 = vunpack.c.h.b16 %v446
        %v862 = vunpack.c.l.b16 %v447
        %v863 = vunpack.c.h.b16 %v447
        %v864 = vunpack.c.l.b16 %v448
        %v865 = vunpack.c.h.b16 %v448
        %v866 = vunpack.c.l.b16 %v449
        %v867 = vunpack.c.h.b16 %v449
        %v868 = vunpack.c.l.b16 %v450
        %v869 = vunpack.c.h.b16 %v450
        %v870 = vunpack.c.l.b16 %v451
        %v871 = vunpack.c.h.b16 %v451
        %v872 = vunpack.c.l.b16 %v452
        %v873 = vunpack.c.h.b16 %v452
        %v874 = vunpack.c.l.b16 %v453
        %v875 = vunpack.c.h.b16 %v453
        %v876 = vunpack.c.l.b16 %v454
        %v877 = vunpack.c.h.b16 %v454
        %v878 = vunpack.c.l.b16 %v455
        %v879 = vunpack.c.h.b16 %v455
        %v880 = vunpack.c.l.b16 %v456
        %v881 = vunpack.c.h.b16 %v456
        %v882 = vunpack.c.l.b16 %v457
        %v883 = vunpack.c.h.b16 %v457
        %v884 = vunpack.c.l.b16 %v458
        %v885 = vunpack.c.h.b16 %v458
        %v886 = vunpack.c.l.b16 %v459
        %v887 = vunpack.c.h.b16 %v459
        %v888 = vunpack.c.l.b16 %v460
        %v889 = vunpack.c.h.b16 %v460
        %v890 = vunpack.c.l.b16 %v461
        %v891 = vunpack.c.h.b16 %v461
        %v892 = vunpack.c.l.b16 %v462
        %v893 = vunpack.c.h.b16 %v462
        %v894 = vunpack.c.l.b16 %v463
        %v895 = vunpack.c.h.b16 %v463
        %v896 = vunpack.c.l.b16 %v464
        %v897 = vunpack.c.h.b16 %v464
        %v898 = vunpack.c.l.b16 %v465
        %v899 = vunpack.c.h.b16 %v465
        %v900 = vunpack.c.l.b16 %v466
        %v901 = vunpack.c.h.b16 %v466
        %v902 = vunpack.c.l.b16 %v467
        %v903 = vunpack.c.h.b16 %v467
        %v904 = vunpack.c.l.b16 %v468
        %v905 = vunpack.c.h.b16 %v468
        %v906 = vunpack.c.l.b16 %v469
        %v907 = vunpack.c.h.b16 %v469
        %v908 = vunpack.c.l.b16 %v470
        %v909 = vunpack.c.h.b16 %v470
        %v910 = vunpack.c.l.b16 %v471
        %v911 = vunpack.c.h.b16 %v471
        %v912 = vunpack.c.l.b16 %v472
        %v913 = vunpack.c.h.b16 %v472
        %v914 = vunpack.c.l.b16 %v473
        %v915 = vunpack.c.h.b16 %v473
        %v916 = vunpack.c.l.b16 %v474
        %v917 = vunpack.c.h.b16 %v474
        %v918 = vunpack.c.l.b16 %v475
        %v919 = vunpack.c.h.b16 %v475
        %v920 = vunpack.c.l.b16 %v476
        %v921 = vunpack.c.h.b16 %v476
        %v922 = vunpack.c.l.b16 %v477
        %v923 = vunpack.c.h.b16 %v477
        %v924 = vunpack.c.l.b16 %v478
        %v925 = vunpack.c.h.b16 %v478
        %v926 = vunpack.c.l.b16 %v479
        %v927 = vunpack.c.h.b16 %v479
        %v928 = vunpack.c.l.b16 %v480
        %v929 = vunpack.c.h.b16 %v480
        %v930 = vunpack.c.l.b16 %v481
        %v931 = vunpack.c.h.b16 %v481
        %v932 = vunpack.c.l.b16 %v482
        %v933 = vunpack.c.h.b16 %v482
        %v934 = vunpack.c.l.b16 %v483
        %v935 = vunpack.c.h.b16 %v483
        %v936 = vunpack.c.l.b16 %v484
        %v937 = vunpack.c.h.b16 %v484
        %v938 = vunpack.c.l.b16 %v485
        %v939 = vunpack.c.h.b16 %v485
        %v940 = vunpack.c.l.b16 %v486
        %v941 = vunpack.c.h.b16 %v486
        %v942 = vunpack.c.l.b16 %v487
        %v943 = vunpack.c.h.b16 %v487
        %v944 = vunpack.c.l.b16 %v488
        %v945 = vunpack.c.h.b16 %v488
        %v946 = vunpack.c.l.b16 %v489
        %v947 = vunpack.c.h.b16 %v489
        %v948 = vunpack.c.l.b16 %v490
        %v949 = vunpack.c.h.b16 %v490
        %v950 = vunpack.c.l.b16 %v491
        %v951 = vunpack.c.h.b16 %v491
        %v952 = vunpack.c.l.b16 %v492
        %v953 = vunpack.c.h.b16 %v492
        %v954 = vunpack.c.l.b16 %v493
        %v955 = vunpack.c.h.b16 %v493
        %v956 = vunpack.c.l.b16 %v494
        %v957 = vunpack.c.h.b16 %v494
        %v958 = vunpack.c.l.b16 %v495
        %v959 = vunpack.c.h.b16 %v495
        %v960 = vunpack.c.l.b16 %v496
        %v961 = vunpack.c.h.b16 %v496
        %v962 = vunpack.c.l.b16 %v497
        %v963 = vunpack.c.h.b16 %v497
        %v964 = vunpack.c.l.b16 %v498
        %v965 = vunpack.c.h.b16 %v498
        %v966 = vunpack.c.l.b16 %v499
        %v967 = vunpack.c.h.b16 %v499
        %v968 = vunpack.c.l.b16 %v500
        %v969 = vunpack.c.h.b16 %v500
        %v970 = vunpack.c.l.b16 %v501
        %v971 = vunpack.c.h.b16 %v501
        %v972 = vpack.c.b16 %v852, %v844
        %v973 = vpack.c.b16 %v853, %v845
        %v974 = vpack.c.b16 %v854, %v846
        %v975 = vpack.c.b16 %v855, %v847
        %v976 = vpack.c.b16 %v856, %v848
        %v977 = vpack.c.b16 %v857, %v849
        %v978 = vpack.c.b16 %v858, %v850
        %v979 = vpack.c.b16 %v859, %v851
        %v980 = vpack.c.b16 %v868, %v860
        %v981 = vpack.c.b16 %v869, %v861
        %v982 = vpack.c.b16 %v870, %v862
        %v983 = vpack.c.b16 %v871, %v863
        %v984 = vpack.c.b16 %v872, %v864
        %v985 = vpack.c.b16 %v873, %v865
        %v986 = vpack.c.b16 %v874, %v866
        %v987 = vpack.c.b16 %v875, %v867
        %v988 = vpack.c.b16 %v884, %v876
        %v989 = vpack.c.b16 %v885, %v877
        %v990 = vpack.c.b16 %v886, %v878
        %v991 = vpack.c.b16 %v887, %v879
        %v992 = vpack.c.b16 %v888, %v880
        %v993 = vpack.c.b16 %v889, %v881
        %v994 = vpack.c.b16 %v890, %v882
        %v995 = vpack.c.b16 %v891, %v883
        %v996 = vpack.c.b16 %v900, %v892
        %v997 = vpack.c.b16 %v901, %v893
        %v998 = vpack.c.b16 %v902, %v894
        %v999 = vpack.c.b16 %v903, %v895
        %v1000 = vpack.c.b16 %v904, %v896
        %v1001 = vpack.c.b16 %v905, %v897
        %v1002 = vpack.c.b16 %v906, %v898
        %v1003 = vpack.c.b16 %v907, %v899
        %v1004 = vpack.c.b16 %v916, %v908
        %v1005 = vpack.c.b16 %v917, %v909
        %v1006 = vpack.c.b16 %v918, %v910
        %v1007 = vpack.c.b16 %v919, %v911
        %v1008 = vpack.c.b16 %v920, %v912
        %v1009 = vpack.c.b16 %v921, %v913
        %v1010 = vpack.c.b16 %v922, %v914
        %v1011 = vpack.c.b16 %v923, %v915
        %v1012 = vpack.c.b16 %v932, %v924
        %v1013 = vpack.c.b16 %v933, %v925
        %v1014 = vpack.c.b16 %v934, %v926
        %v1015 = vpack.c.b16 %v935, %v927
        %v1016 = vpack.c.b16 %v936, %v928
        %v1017 = vpack.c.b16 %v937, %v929
        %v1018 = vpack.c.b16 %v938, %v930
        %v1019 = vpack.c.b16 %v939, %v931
        %v1020 = vpack.c.b16 %v948, %v940
        %v1021 = vpack.c.b16 %v949, %v941
        %v1022 = vpack.c.b16 %v950, %v942
        %v1023 = vpack.c.b16 %v951, %v943
        %v1024 = vpack.c.b16 %v952, %v944
        %v1025 = vpack.c.b16 %v953, %v945
        %v1026 = vpack.c.b16 %v954, %v946
        %v1027 = vpack.c.b16 %v955, %v947
        %v1028 = vpack.c.b16 %v964, %v956
        %v1029 = vpack.c.b16 %v965, %v957
        %v1030 = vpack.c.b16 %v966, %v958
        %v1031 = vpack.c.b16 %v967, %v959
        %v1032 = vpack.c.b16 %v968, %v960
        %v1033 = vpack.c.b16 %v969, %v961
        %v1034 = vpack.c.b16 %v970, %v962
        %v1035 = vpack.c.b16 %v971, %v963
        %v1356 = vunpack.c.l.b16 %v502
        %v1357 = vunpack.c.h.b16 %v502
        %v1358 = vunpack.c.l.b16 %v503
        %v1359 = vunpack.c.h.b16 %v503
        %v1360 = vunpack.c.l.b16 %v504
        %v1361 = vunpack.c.h.b16 %v504
        %v1362 = vunpack.c.l.b16 %v505
        %v1363 = vunpack.c.h.b16 %v505
        %v1364 = vunpack.c.l.b16 %v506
        %v1365 = vunpack.c.h.b16 %v506
        %v1366 = vunpack.c.l.b16 %v507
        %v1367 = vunpack.c.h.b16 %v507
        %v1368 = vunpack.c.l.b16 %v508
        %v1369 = vunpack.c.h.b16 %v508
        %v1370 = vunpack.c.l.b16 %v509
        %v1371 = vunpack.c.h.b16 %v509
        %v1372 = vunpack.c.l.b16 %v510
        %v1373 = vunpack.c.h.b16 %v510
        %v1374 = vunpack.c.l.b16 %v511
        %v1375 = vunpack.c.h.b16 %v511
        %v1376 = vunpack.c.l.b16 %v512
        %v1377 = vunpack.c.h.b16 %v512
        %v1378 = vunpack.c.l.b16 %v513
        %v1379 = vunpack.c.h.b16 %v513
        %v1380 = vunpack.c.l.b16 %v514
        %v1381 = vunpack.c.h.b16 %v514
        %v1382 = vunpack.c.l.b16 %v515
        %v1383 = vunpack.c.h.b16 %v515
        %v1384 = vunpack.c.l.b16 %v516
        %v1385 = vunpack.c.h.b16 %v516
        %v1386 = vunpack.c.l.b16 %v517
        %v1387 = vunpack.c.h.b16 %v517
        %v1388 = vunpack.c.l.b16 %v518
        %v1389 = vunpack.c.h.b16 %v518
        %v1390 = vunpack.c.l.b16 %v519
        %v1391 = vunpack.c.h.b16 %v519
        %v1392 = vunpack.c.l.b16 %v520
        %v1393 = vunpack.c.h.b16 %v520
        %v1394 = vunpack.c.l.b16 %v521
        %v1395 = vunpack.c.h.b16 %v521
        %v1396 = vunpack.c.l.b16 %v522
        %v1397 = vunpack.c.h.b16 %v522
        %v1398 = vunpack.c.l.b16 %v523
        %v1399 = vunpack.c.h.b16 %v523
        %v1400 = vunpack.c.l.b16 %v524
        %v1401 = vunpack.c.h.b16 %v524
        %v1402 = vunpack.c.l.b16 %v525
        %v1403 = vunpack.c.h.b16 %v525
        %v1404 = vunpack.c.l.b16 %v526
        %v1405 = vunpack.c.h.b16 %v526
        %v1406 = vunpack.c.l.b16 %v527
        %v1407 = vunpack.c.h.b16 %v527
        %v1408 = vunpack.c.l.b16 %v528
        %v1409 = vunpack.c.h.b16 %v528
        %v1410 = vunpack.c.l.b16 %v529
        %v1411 = vunpack.c.h.b16 %v529
        %v1412 = vunpack.c.l.b16 %v530
        %v1413 = vunpack.c.h.b16 %v530
        %v1414 = vunpack.c.l.b16 %v531
        %v1415 = vunpack.c.h.b16 %v531
        %v1416 = vunpack.c.l.b16 %v532
        %v1417 = vunpack.c.h.b16 %v532
        %v1418 = vunpack.c.l.b16 %v533
        %v1419 = vunpack.c.h.b16 %v533
        %v1420 = vunpack.c.l.b16 %v534
        %v1421 = vunpack.c.h.b16 %v534
        %v1422 = vunpack.c.l.b16 %v535
        %v1423 = vunpack.c.h.b16 %v535
        %v1424 = vunpack.c.l.b16 %v536
        %v1425 = vunpack.c.h.b16 %v536
        %v1426 = vunpack.c.l.b16 %v537
        %v1427 = vunpack.c.h.b16 %v537
        %v1428 = vunpack.c.l.b16 %v538
        %v1429 = vunpack.c.h.b16 %v538
        %v1430 = vunpack.c.l.b16 %v539
        %v1431 = vunpack.c.h.b16 %v539
        %v1432 = vunpack.c.l.b16 %v540
        %v1433 = vunpack.c.h.b16 %v540
        %v1434 = vunpack.c.l.b16 %v541
        %v1435 = vunpack.c.h.b16 %v541
        %v1436 = vunpack.c.l.b16 %v542
        %v1437 = vunpack.c.h.b16 %v542
        %v1438 = vunpack.c.l.b16 %v543
        %v1439 = vunpack.c.h.b16 %v543
        %v1440 = vunpack.c.l.b16 %v544
        %v1441 = vunpack.c.h.b16 %v544
        %v1442 = vunpack.c.l.b16 %v545
        %v1443 = vunpack.c.h.b16 %v545
        %v1444 = vunpack.c.l.b16 %v546
        %v1445 = vunpack.c.h.b16 %v546
        %v1446 = vunpack.c.l.b16 %v547
        %v1447 = vunpack.c.h.b16 %v547
        %v1448 = vunpack.c.l.b16 %v548
        %v1449 = vunpack.c.h.b16 %v548
        %v1450 = vunpack.c.l.b16 %v549
        %v1451 = vunpack.c.h.b16 %v549
        %v1452 = vunpack.c.l.b16 %v550
        %v1453 = vunpack.c.h.b16 %v550
        %v1454 = vunpack.c.l.b16 %v551
        %v1455 = vunpack.c.h.b16 %v551
        %v1456 = vunpack.c.l.b16 %v552
        %v1457 = vunpack.c.h.b16 %v552
        %v1458 = vunpack.c.l.b16 %v553
        %v1459 = vunpack.c.h.b16 %v553
        %v1460 = vunpack.c.l.b16 %v554
        %v1461 = vunpack.c.h.b16 %v554
        %v1462 = vunpack.c.l.b16 %v555
        %v1463 = vunpack.c.h.b16 %v555
        %v1464 = vunpack.c.l.b16 %v556
        %v1465 = vunpack.c.h.b16 %v556
        %v1466 = vunpack.c.l.b16 %v557
        %v1467 = vunpack.c.h.b16 %v557
        %v1468 = vunpack.c.l.b16 %v558
        %v1469 = vunpack.c.h.b16 %v558
        %v1470 = vunpack.c.l.b16 %v559
        %v1471 = vunpack.c.h.b16 %v559
        %v1472 = vunpack.c.l.b16 %v560
        %v1473 = vunpack.c.h.b16 %v560
        %v1474 = vunpack.c.l.b16 %v561
        %v1475 = vunpack.c.h.b16 %v561
        %v1476 = vunpack.c.l.b16 %v562
        %v1477 = vunpack.c.h.b16 %v562
        %v1478 = vunpack.c.l.b16 %v563
        %v1479 = vunpack.c.h.b16 %v563
        %v1480 = vunpack.c.l.b16 %v564
        %v1481 = vunpack.c.h.b16 %v564
        %v1482 = vunpack.c.l.b16 %v565
        %v1483 = vunpack.c.h.b16 %v565
        %v1484 = vunpack.c.l.b16 %v566
        %v1485 = vunpack.c.h.b16 %v566
        %v1486 = vunpack.c.l.b16 %v567
        %v1487 = vunpack.c.h.b16 %v567
        %v1488 = vunpack.c.l.b16 %v568
        %v1489 = vunpack.c.h.b16 %v568
        %v1490 = vunpack.c.l.b16 %v569
        %v1491 = vunpack.c.h.b16 %v569
        %v1492 = vunpack.c.l.b16 %v570
        %v1493 = vunpack.c.h.b16 %v570
        %v1494 = vunpack.c.l.b16 %v571
        %v1495 = vunpack.c.h.b16 %v571
        %v1496 = vunpack.c.l.b16 %v572
        %v1497 = vunpack.c.h.b16 %v572
        %v1498 = vunpack.c.l.b16 %v573
        %v1499 = vunpack.c.h.b16 %v573
        %v1500 = vunpack.c.l.b16 %v574
        %v1501 = vunpack.c.h.b16 %v574
        %v1502 = vunpack.c.l.b16 %v575
        %v1503 = vunpack.c.h.b16 %v575
        %v1504 = vunpack.c.l.b16 %v576
        %v1505 = vunpack.c.h.b16 %v576
        %v1506 = vunpack.c.l.b16 %v577
        %v1507 = vunpack.c.h.b16 %v577
        %v1508 = vunpack.c.l.b16 %v578
        %v1509 = vunpack.c.h.b16 %v578
        %v1510 = vunpack.c.l.b16 %v579
        %v1511 = vunpack.c.h.b16 %v579
        %v1512 = vunpack.c.l.b16 %v580
        %v1513 = vunpack.c.h.b16 %v580
        %v1514 = vunpack.c.l.b16 %v581
        %v1515 = vunpack.c.h.b16 %v581
        %v1516 = vunpack.c.l.b16 %v582
        %v1517 = vunpack.c.h.b16 %v582
        %v1518 = vunpack.c.l.b16 %v583
        %v1519 = vunpack.c.h.b16 %v583
        %v1520 = vunpack.c.l.b16 %v584
        %v1521 = vunpack.c.h.b16 %v584
        %v1522 = vunpack.c.l.b16 %v585
        %v1523 = vunpack.c.h.b16 %v585
        %v1524 = vunpack.c.l.b16 %v586
        %v1525 = vunpack.c.h.b16 %v586
        %v1526 = vunpack.c.l.b16 %v587
        %v1527 = vunpack.c.h.b16 %v587
        %v1528 = vunpack.c.l.b16 %v588
        %v1529 = vunpack.c.h.b16 %v588
        %v1530 = vunpack.c.l.b16 %v589
        %v1531 = vunpack.c.h.b16 %v589
        %v1532 = vunpack.c.l.b16 %v590
        %v1533 = vunpack.c.h.b16 %v590
        %v1534 = vunpack.c.l.b16 %v591
        %v1535 = vunpack.c.h.b16 %v591
        %v1536 = vunpack.c.l.b16 %v592
        %v1537 = vunpack.c.h.b16 %v592
        %v1538 = vunpack.c.l.b16 %v593
        %v1539 = vunpack.c.h.b16 %v593
        %v1540 = vunpack.c.l.b16 %v594
        %v1541 = vunpack.c.h.b16 %v594
        %v1542 = vunpack.c.l.b16 %v595
        %v1543 = vunpack.c.h.b16 %v595
        %v1544 = vunpack.c.l.b16 %v596
        %v1545 = vunpack.c.h.b16 %v596
        %v1546 = vunpack.c.l.b16 %v597
        %v1547 = vunpack.c.h.b16 %v597
        %v1548 = vunpack.c.l.b16 %v598
        %v1549 = vunpack.c.h.b16 %v598
        %v1550 = vunpack.c.l.b16 %v599
        %v1551 = vunpack.c.h.b16 %v599
        %v1552 = vunpack.c.l.b16 %v600
        %v1553 = vunpack.c.h.b16 %v600
        %v1554 = vunpack.c.l.b16 %v601
        %v1555 = vunpack.c.h.b16 %v601
        %v1556 = vunpack.c.l.b16 %v602
        %v1557 = vunpack.c.h.b16 %v602
        %v1558 = vunpack.c.l.b16 %v603
        %v1559 = vunpack.c.h.b16 %v603
        %v1560 = vunpack.c.l.b16 %v604
        %v1561 = vunpack.c.h.b16 %v604
        %v1562 = vunpack.c.l.b16 %v605
        %v1563 = vunpack.c.h.b16 %v605
        %v1564 = vunpack.c.l.b16 %v606
        %v1565 = vunpack.c.h.b16 %v606
        %v1566 = vunpack.c.l.b16 %v607
        %v1567 = vunpack.c.h.b16 %v607
        %v1568 = vunpack.c.l.b16 %v608
        %v1569 = vunpack.c.h.b16 %v608
        %v1570 = vunpack.c.l.b16 %v609
        %v1571 = vunpack.c.h.b16 %v609
        %v1572 = vunpack.c.l.b16 %v610
        %v1573 = vunpack.c.h.b16 %v610
        %v1574 = vunpack.c.l.b16 %v611
        %v1575 = vunpack.c.h.b16 %v611
        %v1576 = vunpack.c.l.b16 %v612
        %v1577 = vunpack.c.h.b16 %v612
        %v1578 = vunpack.c.l.b16 %v613
        %v1579 = vunpack.c.h.b16 %v613
        %v1580 = vunpack.c.l.b16 %v614
        %v1581 = vunpack.c.h.b16 %v614
        %v1582 = vunpack.c.l.b16 %v615
        %v1583 = vunpack.c.h.b16 %v615
        %v1584 = vunpack.c.l.b16 %v616
        %v1585 = vunpack.c.h.b16 %v616
        %v1586 = vunpack.c.l.b16 %v617
        %v1587 = vunpack.c.h.b16 %v617
        %v1588 = vunpack.c.l.b16 %v618
        %v1589 = vunpack.c.h.b16 %v618
        %v1590 = vunpack.c.l.b16 %v619
        %v1591 = vunpack.c.h.b16 %v619
        %v1592 = vunpack.c.l.b16 %v620
        %v1593 = vunpack.c.h.b16 %v620
        %v1594 = vunpack.c.l.b16 %v621
        %v1595 = vunpack.c.h.b16 %v621
        %v1596 = vunpack.c.l.b16 %v622
        %v1597 = vunpack.c.h.b16 %v622
        %v1598 = vunpack.c.l.b16 %v623
        %v1599 = vunpack.c.h.b16 %v623
        %v1600 = vunpack.c.l.b16 %v624
        %v1601 = vunpack.c.h.b16 %v624
        %v1602 = vunpack.c.l.b16 %v625
        %v1603 = vunpack.c.h.b16 %v625
        %v1604 = vunpack.c.l.b16 %v626
        %v1605 = vunpack.c.h.b16 %v626
        %v1606 = vunpack.c.l.b16 %v627
        %v1607 = vunpack.c.h.b16 %v627
        %v1608 = vunpack.c.l.b16 %v628
        %v1609 = vunpack.c.h.b16 %v628
        %v1610 = vunpack.c.l.b16 %v629
        %v1611 = vunpack.c.h.b16 %v629
        %v1612 = vunpack.c.l.b16 %v630
        %v1613 = vunpack.c.h.b16 %v630
        %v1614 = vunpack.c.l.b16 %v631
        %v1615 = vunpack.c.h.b16 %v631
        %v1616 = vunpack.c.l.b16 %v632
        %v1617 = vunpack.c.h.b16 %v632
        %v1618 = vunpack.c.l.b16 %v633
        %v1619 = vunpack.c.h.b16 %v633
        %v1620 = vunpack.c.l.b16 %v634
        %v1621 = vunpack.c.h.b16 %v634
        %v1622 = vunpack.c.l.b16 %v635
        %v1623 = vunpack.c.h.b16 %v635
        %v1624 = vunpack.c.l.b16 %v636
        %v1625 = vunpack.c.h.b16 %v636
        %v1626 = vunpack.c.l.b16 %v637
        %v1627 = vunpack.c.h.b16 %v637
        %v1628 = vunpack.c.l.b16 %v638
        %v1629 = vunpack.c.h.b16 %v638
        %v1630 = vunpack.c.l.b16 %v639
        %v1631 = vunpack.c.h.b16 %v639
        %v1632 = vunpack.c.l.b16 %v640
        %v1633 = vunpack.c.h.b16 %v640
        %v1634 = vunpack.c.l.b16 %v641
        %v1635 = vunpack.c.h.b16 %v641
        %v1636 = vunpack.c.l.b16 %v642
        %v1637 = vunpack.c.h.b16 %v642
        %v1638 = vunpack.c.l.b16 %v643
        %v1639 = vunpack.c.h.b16 %v643
        %v1640 = vunpack.c.l.b16 %v644
        %v1641 = vunpack.c.h.b16 %v644
        %v1642 = vunpack.c.l.b16 %v645
        %v1643 = vunpack.c.h.b16 %v645
        %v1644 = vunpack.c.l.b16 %v646
        %v1645 = vunpack.c.h.b16 %v646
        %v1646 = vunpack.c.l.b16 %v647
        %v1647 = vunpack.c.h.b16 %v647
        %v1648 = vunpack.c.l.b16 %v648
        %v1649 = vunpack.c.h.b16 %v648
        %v1650 = vunpack.c.l.b16 %v649
        %v1651 = vunpack.c.h.b16 %v649
        %v1652 = vunpack.c.l.b16 %v650
        %v1653 = vunpack.c.h.b16 %v650
        %v1654 = vunpack.c.l.b16 %v651
        %v1655 = vunpack.c.h.b16 %v651
        %v1656 = vunpack.c.l.b16 %v652
        %v1657 = vunpack.c.h.b16 %v652
        %v1658 = vunpack.c.l.b16 %v653
        %v1659 = vunpack.c.h.b16 %v653
        %v1660 = vunpack.c.l.b16 %v654
        %v1661 = vunpack.c.h.b16 %v654
        %v1662 = vunpack.c.l.b16 %v655
        %v1663 = vunpack.c.h.b16 %v655
        %v1664 = vunpack.c.l.b16 %v656
        %v1665 = vunpack.c.h.b16 %v656
        %v1666 = vunpack.c.l.b16 %v657
        %v1667 = vunpack.c.h.b16 %v657
        %v1668 = vunpack.c.l.b16 %v658
        %v1669 = vunpack.c.h.b16 %v658
        %v1670 = vunpack.c.l.b16 %v659
        %v1671 = vunpack.c.h.b16 %v659
        %v1672 = vunpack.c.l.b16 %v660
        %v1673 = vunpack.c.h.b16 %v660
        %v1674 = vunpack.c.l.b16 %v661
        %v1675 = vunpack.c.h.b16 %v661
        %v1676 = vunpack.c.l.b16 %v662
        %v1677 = vunpack.c.h.b16 %v662
        %v1678 = vunpack.c.l.b16 %v663
        %v1679 = vunpack.c.h.b16 %v663
        %v1680 = vunpack.c.l.b16 %v664
        %v1681 = vunpack.c.h.b16 %v664
        %v1682 = vunpack.c.l.b16 %v665
        %v1683 = vunpack.c.h.b16 %v665
        %v1684 = vunpack.c.l.b16 %v666
        %v1685 = vunpack.c.h.b16 %v666
        %v1686 = vunpack.c.l.b16 %v667
        %v1687 = vunpack.c.h.b16 %v667
        %v1688 = vunpack.c.l.b16 %v668
        %v1689 = vunpack.c.h.b16 %v668
        %v1690 = vunpack.c.l.b16 %v669
        %v1691 = vunpack.c.h.b16 %v669
        %v1692 = vunpack.c.l.b16 %v670
        %v1693 = vunpack.c.h.b16 %v670
        %v1694 = vunpack.c.l.b16 %v671
        %v1695 = vunpack.c.h.b16 %v671
        %v1696 = vunpack.c.l.b16 %v672
        %v1697 = vunpack.c.h.b16 %v672
        %v1698 = vunpack.c.l.b16 %v673
        %v1699 = vunpack.c.h.b16 %v673
        %v1700 = vunpack.c.l.b16 %v674
        %v1701 = vunpack.c.h.b16 %v674
        %v1702 = vunpack.c.l.b16 %v675
        %v1703 = vunpack.c.h.b16 %v675
        %v1704 = vunpack.c.l.b16 %v676
        %v1705 = vunpack.c.h.b16 %v676
        %v1706 = vunpack.c.l.b16 %v677
        %v1707 = vunpack.c.h.b16 %v677
        %v1708 = vunpack.c.l.b16 %v678
        %v1709 = vunpack.c.h.b16 %v678
        %v1710 = vunpack.c.l.b16 %v679
        %v1711 = vunpack.c.h.b16 %v679
        %v1712 = vunpack.c.l.b16 %v680
        %v1713 = vunpack.c.h.b16 %v680
        %v1714 = vunpack.c.l.b16 %v681
        %v1715 = vunpack.c.h.b16 %v681
        %v1716 = vunpack.c.l.b16 %v682
        %v1717 = vunpack.c.h.b16 %v682
        %v1718 = vunpack.c.l.b16 %v683
        %v1719 = vunpack.c.h.b16 %v683
        %v1720 = vunpack.c.l.b16 %v684
        %v1721 = vunpack.c.h.b16 %v684
        %v1722 = vunpack.c.l.b16 %v685
        %v1723 = vunpack.c.h.b16 %v685
        %v1724 = vunpack.c.l.b16 %v686
        %v1725 = vunpack.c.h.b16 %v686
        %v1726 = vunpack.c.l.b16 %v687
        %v1727 = vunpack.c.h.b16 %v687
        %v1728 = vunpack.c.l.b16 %v688
        %v1729 = vunpack.c.h.b16 %v688
        %v1730 = vunpack.c.l.b16 %v689
        %v1731 = vunpack.c.h.b16 %v689
        %v1732 = vunpack.c.l.b16 %v690
        %v1733 = vunpack.c.h.b16 %v690
        %v1734 = vunpack.c.l.b16 %v691
        %v1735 = vunpack.c.h.b16 %v691
        %v1736 = vunpack.c.l.b16 %v692
        %v1737 = vunpack.c.h.b16 %v692
        %v1738 = vunpack.c.l.b16 %v693
        %v1739 = vunpack.c.h.b16 %v693
        %v1740 = vunpack.c.l.b16 %v694
        %v1741 = vunpack.c.h.b16 %v694
        %v1742 = vunpack.c.l.b16 %v695
        %v1743 = vunpack.c.h.b16 %v695
        %v1744 = vunpack.c.l.b16 %v696
        %v1745 = vunpack.c.h.b16 %v696
        %v1746 = vunpack.c.l.b16 %v697
        %v1747 = vunpack.c.h.b16 %v697
        %v1748 = vunpack.c.l.b16 %v698
        %v1749 = vunpack.c.h.b16 %v698
        %v1750 = vunpack.c.l.b16 %v699
        %v1751 = vunpack.c.h.b16 %v699
        %v1752 = vunpack.c.l.b16 %v700
        %v1753 = vunpack.c.h.b16 %v700
        %v1754 = vunpack.c.l.b16 %v701
        %v1755 = vunpack.c.h.b16 %v701
        %v1756 = vunpack.c.l.b16 %v702
        %v1757 = vunpack.c.h.b16 %v702
        %v1758 = vunpack.c.l.b16 %v703
        %v1759 = vunpack.c.h.b16 %v703
        %v1760 = vunpack.c.l.b16 %v704
        %v1761 = vunpack.c.h.b16 %v704
        %v1762 = vunpack.c.l.b16 %v705
        %v1763 = vunpack.c.h.b16 %v705
        %v1764 = vunpack.c.l.b16 %v706
        %v1765 = vunpack.c.h.b16 %v706
        %v1766 = vunpack.c.l.b16 %v707
        %v1767 = vunpack.c.h.b16 %v707
        %v1768 = vunpack.c.l.b16 %v708
        %v1769 = vunpack.c.h.b16 %v708
        %v1770 = vunpack.c.l.b16 %v709
        %v1771 = vunpack.c.h.b16 %v709
        %v1772 = vunpack.c.l.b16 %v710
        %v1773 = vunpack.c.h.b16 %v710
        %v1774 = vunpack.c.l.b16 %v711
        %v1775 = vunpack.c.h.b16 %v711
        %v1776 = vunpack.c.l.b16 %v712
        %v1777 = vunpack.c.h.b16 %v712
        %v1778 = vunpack.c.l.b16 %v713
        %v1779 = vunpack.c.h.b16 %v713
        %v1780 = vunpack.c.l.b16 %v714
        %v1781 = vunpack.c.h.b16 %v714
        %v1782 = vunpack.c.l.b16 %v715
        %v1783 = vunpack.c.h.b16 %v715
        %v1784 = vunpack.c.l.b16 %v716
        %v1785 = vunpack.c.h.b16 %v716
        %v1786 = vunpack.c.l.b16 %v717
        %v1787 = vunpack.c.h.b16 %v717
        %v1788 = vunpack.c.l.b16 %v718
        %v1789 = vunpack.c.h.b16 %v718
        %v1790 = vunpack.c.l.b16 %v719
        %v1791 = vunpack.c.h.b16 %v719
        %v1792 = vunpack.c.l.b16 %v720
        %v1793 = vunpack.c.h.b16 %v720
        %v1794 = vunpack.c.l.b16 %v721
        %v1795 = vunpack.c.h.b16 %v721
        %v1796 = vunpack.c.l.b16 %v722
        %v1797 = vunpack.c.h.b16 %v722
        %v1798 = vunpack.c.l.b16 %v723
        %v1799 = vunpack.c.h.b16 %v723
        %v1800 = vunpack.c.l.b16 %v724
        %v1801 = vunpack.c.h.b16 %v724
        %v1802 = vunpack.c.l.b16 %v725
        %v1803 = vunpack.c.h.b16 %v725
        %v1804 = vunpack.c.l.b16 %v726
        %v1805 = vunpack.c.h.b16 %v726
        %v1806 = vunpack.c.l.b16 %v727
        %v1807 = vunpack.c.h.b16 %v727
        %v1808 = vunpack.c.l.b16 %v728
        %v1809 = vunpack.c.h.b16 %v728
        %v1810 = vunpack.c.l.b16 %v729
        %v1811 = vunpack.c.h.b16 %v729
        %v1812 = vunpack.c.l.b16 %v730
        %v1813 = vunpack.c.h.b16 %v730
        %v1814 = vunpack.c.l.b16 %v731
        %v1815 = vunpack.c.h.b16 %v731
        %v1816 = vunpack.c.l.b16 %v732
        %v1817 = vunpack.c.h.b16 %v732
        %v1818 = vunpack.c.l.b16 %v733
        %v1819 = vunpack.c.h.b16 %v733
        %v1820 = vunpack.c.l.b16 %v734
        %v1821 = vunpack.c.h.b16 %v734
        %v1822 = vunpack.c.l.b16 %v735
        %v1823 = vunpack.c.h.b16 %v735
        %v1824 = vunpack.c.l.b16 %v736
        %v1825 = vunpack.c.h.b16 %v736
        %v1826 = vunpack.c.l.b16 %v737
        %v1827 = vunpack.c.h.b16 %v737
        %v1828 = vunpack.c.l.b16 %v738
        %v1829 = vunpack.c.h.b16 %v738
        %v1830 = vunpack.c.l.b16 %v739
        %v1831 = vunpack.c.h.b16 %v739
        %v1832 = vunpack.c.l.b16 %v740
        %v1833 = vunpack.c.h.b16 %v740
        %v1834 = vunpack.c.l.b16 %v741
        %v1835 = vunpack.c.h.b16 %v741
        %v1836 = vunpack.c.l.b16 %v742
        %v1837 = vunpack.c.h.b16 %v742
        %v1838 = vunpack.c.l.b16 %v743
        %v1839 = vunpack.c.h.b16 %v743
        %v1840 = vunpack.c.l.b16 %v744
        %v1841 = vunpack.c.h.b16 %v744
        %v1842 = vunpack.c.l.b16 %v745
        %v1843 = vunpack.c.h.b16 %v745
        %v1844 = vunpack.c.l.b16 %v746
        %v1845 = vunpack.c.h.b16 %v746
        %v1846 = vunpack.c.l.b16 %v747
        %v1847 = vunpack.c.h.b16 %v747
        %v1848 = vunpack.c.l.b16 %v748
        %v1849 = vunpack.c.h.b16 %v748
        %v1850 = vunpack.c.l.b16 %v749
        %v1851 = vunpack.c.h.b16 %v749
        %v1852 = vunpack.c.l.b16 %v750
        %v1853 = vunpack.c.h.b16 %v750
        %v1854 = vunpack.c.l.b16 %v751
        %v1855 = vunpack.c.h.b16 %v751
        %v1856 = vunpack.c.l.b16 %v752
        %v1857 = vunpack.c.h.b16 %v752
        %v1858 = vunpack.c.l.b16 %v753
        %v1859 = vunpack.c.h.b16 %v753
        %v1860 = vunpack.c.l.b16 %v754
        %v1861 = vunpack.c.h.b16 %v754
        %v1862 = vunpack.c.l.b16 %v755
        %v1863 = vunpack.c.h.b16 %v755
        %v1864 = vunpack.c.l.b16 %v756
        %v1865 = vunpack.c.h.b16 %v756
        %v1866 = vunpack.c.l.b16 %v757
        %v1867 = vunpack.c.h.b16 %v757
        %v1868 = vpack.c.b16 %v1360, %v1356
        %v1869 = vpack.c.b16 %v1361, %v1357
        %v1870 = vpack.c.b16 %v1362, %v1358
        %v1871 = vpack.c.b16 %v1363, %v1359
        %v1872 = vpack.c.b16 %v1368, %v1364
        %v1873 = vpack.c.b16 %v1369, %v1365
        %v1874 = vpack.c.b16 %v1370, %v1366
        %v1875 = vpack.c.b16 %v1371, %v1367
        %v1876 = vpack.c.b16 %v1376, %v1372
        %v1877 = vpack.c.b16 %v1377, %v1373
        %v1878 = vpack.c.b16 %v1378, %v1374
        %v1879 = vpack.c.b16 %v1379, %v1375
        %v1880 = vpack.c.b16 %v1384, %v1380
        %v1881 = vpack.c.b16 %v1385, %v1381
        %v1882 = vpack.c.b16 %v1386, %v1382
        %v1883 = vpack.c.b16 %v1387, %v1383
        %v1884 = vpack.c.b16 %v1392, %v1388
        %v1885 = vpack.c.b16 %v1393, %v1389
        %v1886 = vpack.c.b16 %v1394, %v1390
        %v1887 = vpack.c.b16 %v1395, %v1391
        %v1888 = vpack.c.b16 %v1400, %v1396
        %v1889 = vpack.c.b16 %v1401, %v1397
        %v1890 = vpack.c.b16 %v1402, %v1398
        %v1891 = vpack.c.b16 %v1403, %v1399
        %v1892 = vpack.c.b16 %v1408, %v1404
        %v1893 = vpack.c.b16 %v1409, %v1405
        %v1894 = vpack.c.b16 %v1410, %v1406
        %v1895 = vpack.c.b16 %v1411, %v1407
        %v1896 = vpack.c.b16 %v1416, %v1412
        %v1897 = vpack.c.b16 %v1417, %v1413
        %v1898 = vpack.c.b16 %v1418, %v1414
        %v1899 = vpack.c.b16 %v1419, %v1415
        %v1900 = vpack.c.b16 %v1424, %v1420
        %v1901 = vpack.c.b16 %v1425, %v1421
        %v1902 = vpack.c.b16 %v1426, %v1422
        %v1903 = vpack.c.b16 %v1427, %v1423
        %v1904 = vpack.c.b16 %v1432, %v1428
        %v1905 = vpack.c.b16 %v1433, %v1429
        %v1906 = vpack.c.b16 %v1434, %v1430
        %v1907 = vpack.c.b16 %v1435, %v1431
        %v1908 = vpack.c.b16 %v1440, %v1436
        %v1909 = vpack.c.b16 %v1441, %v1437
        %v1910 = vpack.c.b16 %v1442, %v1438
        %v1911 = vpack.c.b16 %v1443, %v1439
        %v1912 = vpack.c.b16 %v1448, %v1444
        %v1913 = vpack.c.b16 %v1449, %v1445
        %v1914 = vpack.c.b16 %v1450, %v1446
        %v1915 = vpack.c.b16 %v1451, %v1447
        %v1916 = vpack.c.b16 %v1456, %v1452
        %v1917 = vpack.c.b16 %v1457, %v1453
        %v1918 = vpack.c.b16 %v1458, %v1454
        %v1919 = vpack.c.b16 %v1459, %v1455
        %v1920 = vpack.c.b16 %v1464, %v1460
        %v1921 = vpack.c.b16 %v1465, %v1461
        %v1922 = vpack.c.b16 %v1466, %v1462
        %v1923 = vpack.c.b16 %v1467, %v1463
        %v1924 = vpack.c.b16 %v1472, %v1468
        %v1925 = vpack.c.b16 %v1473, %v1469
        %v1926 = vpack.c.b16 %v1474, %v1470
        %v1927 = vpack.c.b16 %v1475, %v1471
        %v1928 = vpack.c.b16 %v1480, %v1476
        %v1929 = vpack.c.b16 %v1481, %v1477
        %v1930 = vpack.c.b16 %v1482, %v1478
        %v1931 = vpack.c.b16 %v1483, %v1479
        %v1932 = vpack.c.b16 %v1488, %v1484
        %v1933 = vpack.c.b16 %v1489, %v1485
        %v1934 = vpack.c.b16 %v1490, %v1486
        %v1935 = vpack.c.b16 %v1491, %v1487
        %v1936 = vpack.c.b16 %v1496, %v1492
        %v1937 = vpack.c.b16 %v1497, %v1493
        %v1938 = vpack.c.b16 %v1498, %v1494
        %v1939 = vpack.c.b16 %v1499, %v1495
        %v1940 = vpack.c.b16 %v1504, %v1500
        %v1941 = vpack.c.b16 %v1505, %v1501
        %v1942 = vpack.c.b16 %v1506, %v1502
        %v1943 = vpack.c.b16 %v1507, %v1503
        %v1944 = vpack.c.b16 %v1512, %v1508
        %v1945 = vpack.c.b16 %v1513, %v1509
        %v1946 = vpack.c.b16 %v1514, %v1510
        %v1947 = vpack.c.b16 %v1515, %v1511
        %v1948 = vpack.c.b16 %v1520, %v1516
        %v1949 = vpack.c.b16 %v1521, %v1517
        %v1950 = vpack.c.b16 %v1522, %v1518
        %v1951 = vpack.c.b16 %v1523, %v1519
        %v1952 = vpack.c.b16 %v1528, %v1524
        %v1953 = vpack.c.b16 %v1529, %v1525
        %v1954 = vpack.c.b16 %v1530, %v1526
        %v1955 = vpack.c.b16 %v1531, %v1527
        %v1956 = vpack.c.b16 %v1536, %v1532
        %v1957 = vpack.c.b16 %v1537, %v1533
        %v1958 = vpack.c.b16 %v1538, %v1534
        %v1959 = vpack.c.b16 %v1539, %v1535
        %v1960 = vpack.c.b16 %v1544, %v1540
        %v1961 = vpack.c.b16 %v1545, %v1541
        %v1962 = vpack.c.b16 %v1546, %v1542
        %v1963 = vpack.c.b16 %v1547, %v1543
        %v1964 = vpack.c.b16 %v1552, %v1548
        %v1965 = vpack.c.b16 %v1553, %v1549
        %v1966 = vpack.c.b16 %v1554, %v1550
        %v1967 = vpack.c.b16 %v1555, %v1551
        %v1968 = vpack.c.b16 %v1560, %v1556
        %v1969 = vpack.c.b16 %v1561, %v1557
        %v1970 = vpack.c.b16 %v1562, %v1558
        %v1971 = vpack.c.b16 %v1563, %v1559
        %v1972 = vpack.c.b16 %v1568, %v1564
        %v1973 = vpack.c.b16 %v1569, %v1565
        %v1974 = vpack.c.b16 %v1570, %v1566
        %v1975 = vpack.c.b16 %v1571, %v1567
        %v1976 = vpack.c.b16 %v1576, %v1572
        %v1977 = vpack.c.b16 %v1577, %v1573
        %v1978 = vpack.c.b16 %v1578, %v1574
        %v1979 = vpack.c.b16 %v1579, %v1575
        %v1980 = vpack.c.b16 %v1584, %v1580
        %v1981 = vpack.c.b16 %v1585, %v1581
        %v1982 = vpack.c.b16 %v1586, %v1582
        %v1983 = vpack.c.b16 %v1587, %v1583
        %v1984 = vpack.c.b16 %v1592, %v1588
        %v1985 = vpack.c.b16 %v1593, %v1589
        %v1986 = vpack.c.b16 %v1594, %v1590
        %v1987 = vpack.c.b16 %v1595, %v1591
        %v1988 = vpack.c.b16 %v1600, %v1596
        %v1989 = vpack.c.b16 %v1601, %v1597
        %v1990 = vpack.c.b16 %v1602, %v1598
        %v1991 = vpack.c.b16 %v1603, %v1599
        %v1992 = vpack.c.b16 %v1608, %v1604
        %v1993 = vpack.c.b16 %v1609, %v1605
        %v1994 = vpack.c.b16 %v1610, %v1606
        %v1995 = vpack.c.b16 %v1611, %v1607
        %v1996 = vpack.c.b16 %v1616, %v1612
        %v1997 = vpack.c.b16 %v1617, %v1613
        %v1998 = vpack.c.b16 %v1618, %v1614
        %v1999 = vpack.c.b16 %v1619, %v1615
        %v2000 = vpack.c.b16 %v1624, %v1620
        %v2001 = vpack.c.b16 %v1625, %v1621
        %v2002 = vpack.c.b16 %v1626, %v1622
        %v2003 = vpack.c.b16 %v1627, %v1623
        %v2004 = vpack.c.b16 %v1632, %v1628
        %v2005 = vpack.c.b16 %v1633, %v1629
        %v2006 = vpack.c.b16 %v1634, %v1630
        %v2007 = vpack.c.b16 %v1635, %v1631
        %v2008 = vpack.c.b16 %v1640, %v1636
        %v2009 = vpack.c.b16 %v1641, %v1637
        %v2010 = vpack.c.b16 %v1642, %v1638
        %v2011 = vpack.c.b16 %v1643, %v1639
        %v2012 = vpack.c.b16 %v1648, %v1644
        %v2013 = vpack.c.b16 %v1649, %v1645
        %v2014 = vpack.c.b16 %v1650, %v1646
        %v2015 = vpack.c.b16 %v1651, %v1647
        %v2016 = vpack.c.b16 %v1656, %v1652
        %v2017 = vpack.c.b16 %v1657, %v1653
        %v2018 = vpack.c.b16 %v1658, %v1654
        %v2019 = vpack.c.b16 %v1659, %v1655
        %v2020 = vpack.c.b16 %v1664, %v1660
        %v2021 = vpack.c.b16 %v1665, %v1661
        %v2022 = vpack.c.b16 %v1666, %v1662
        %v2023 = vpack.c.b16 %v1667, %v1663
        %v2024 = vpack.c.b16 %v1672, %v1668
        %v2025 = vpack.c.b16 %v1673, %v1669
        %v2026 = vpack.c.b16 %v1674, %v1670
        %v2027 = vpack.c.b16 %v1675, %v1671
        %v2028 = vpack.c.b16 %v1680, %v1676
        %v2029 = vpack.c.b16 %v1681, %v1677
        %v2030 = vpack.c.b16 %v1682, %v1678
        %v2031 = vpack.c.b16 %v1683, %v1679
        %v2032 = vpack.c.b16 %v1688, %v1684
        %v2033 = vpack.c.b16 %v1689, %v1685
        %v2034 = vpack.c.b16 %v1690, %v1686
        %v2035 = vpack.c.b16 %v1691, %v1687
        %v2036 = vpack.c.b16 %v1696, %v1692
        %v2037 = vpack.c.b16 %v1697, %v1693
        %v2038 = vpack.c.b16 %v1698, %v1694
        %v2039 = vpack.c.b16 %v1699, %v1695
        %v2040 = vpack.c.b16 %v1704, %v1700
        %v2041 = vpack.c.b16 %v1705, %v1701
        %v2042 = vpack.c.b16 %v1706, %v1702
        %v2043 = vpack.c.b16 %v1707, %v1703
        %v2044 = vpack.c.b16 %v1712, %v1708
        %v2045 = vpack.c.b16 %v1713, %v1709
        %v2046 = vpack.c.b16 %v1714, %v1710
        %v2047 = vpack.c.b16 %v1715, %v1711
        %v2048 = vpack.c.b16 %v1720, %v1716
        %v2049 = vpack.c.b16 %v1721, %v1717
        %v2050 = vpack.c.b16 %v1722, %v1718
        %v2051 = vpack.c.b16 %v1723, %v1719
        %v2052 = vpack.c.b16 %v1728, %v1724
        %v2053 = vpack.c.b16 %v1729, %v1725
        %v2054 = vpack.c.b16 %v1730, %v1726
        %v2055 = vpack.c.b16 %v1731, %v1727
        %v2056 = vpack.c.b16 %v1736, %v1732
        %v2057 = vpack.c.b16 %v1737, %v1733
        %v2058 = vpack.c.b16 %v1738, %v1734
        %v2059 = vpack.c.b16 %v1739, %v1735
        %v2060 = vpack.c.b16 %v1744, %v1740
        %v2061 = vpack.c.b16 %v1745, %v1741
        %v2062 = vpack.c.b16 %v1746, %v1742
        %v2063 = vpack.c.b16 %v1747, %v1743
        %v2064 = vpack.c.b16 %v1752, %v1748
        %v2065 = vpack.c.b16 %v1753, %v1749
        %v2066 = vpack.c.b16 %v1754, %v1750
        %v2067 = vpack.c.b16 %v1755, %v1751
        %v2068 = vpack.c.b16 %v1760, %v1756
        %v2069 = vpack.c.b16 %v1761, %v1757
        %v2070 = vpack.c.b16 %v1762, %v1758
        %v2071 = vpack.c.b16 %v1763, %v1759
        %v2072 = vpack.c.b16 %v1768, %v1764
        %v2073 = vpack.c.b16 %v1769, %v1765
        %v2074 = vpack.c.b16 %v1770, %v1766
        %v2075 = vpack.c.b16 %v1771, %v1767
        %v2076 = vpack.c.b16 %v1776, %v1772
        %v2077 = vpack.c.b16 %v1777, %v1773
        %v2078 = vpack.c.b16 %v1778, %v1774
        %v2079 = vpack.c.b16 %v1779, %v1775
        %v2080 = vpack.c.b16 %v1784, %v1780
        %v2081 = vpack.c.b16 %v1785, %v1781
        %v2082 = vpack.c.b16 %v1786, %v1782
        %v2083 = vpack.c.b16 %v1787, %v1783
        %v2084 = vpack.c.b16 %v1792, %v1788
        %v2085 = vpack.c.b16 %v1793, %v1789
        %v2086 = vpack.c.b16 %v1794, %v1790
        %v2087 = vpack.c.b16 %v1795, %v1791
        %v2088 = vpack.c.b16 %v1800, %v1796
        %v2089 = vpack.c.b16 %v1801, %v1797
        %v2090 = vpack.c.b16 %v1802, %v1798
        %v2091 = vpack.c.b16 %v1803, %v1799
        %v2092 = vpack.c.b16 %v1808, %v1804
        %v2093 = vpack.c.b16 %v1809, %v1805
        %v2094 = vpack.c.b16 %v1810, %v1806
        %v2095 = vpack.c.b16 %v1811, %v1807
        %v2096 = vpack.c.b16 %v1816, %v1812
        %v2097 = vpack.c.b16 %v1817, %v1813
        %v2098 = vpack.c.b16 %v1818, %v1814
        %v2099 = vpack.c.b16 %v1819, %v1815
        %v2100 = vpack.c.b16 %v1824, %v1820
        %v2101 = vpack.c.b16 %v1825, %v1821
        %v2102 = vpack.c.b16 %v1826, %v1822
        %v2103 = vpack.c.b16 %v1827, %v1823
        %v2104 = vpack.c.b16 %v1832, %v1828
        %v2105 = vpack.c.b16 %v1833, %v1829
        %v2106 = vpack.c.b16 %v1834, %v1830
        %v2107 = vpack.c.b16 %v1835, %v1831
        %v2108 = vpack.c.b16 %v1840, %v1836
        %v2109 = vpack.c.b16 %v1841, %v1837
        %v2110 = vpack.c.b16 %v1842, %v1838
        %v2111 = vpack.c.b16 %v1843, %v1839
        %v2112 = vpack.c.b16 %v1848, %v1844
        %v2113 = vpack.c.b16 %v1849, %v1845
        %v2114 = vpack.c.b16 %v1850, %v1846
        %v2115 = vpack.c.b16 %v1851, %v1847
        %v2116 = vpack.c.b16 %v1856, %v1852
        %v2117 = vpack.c.b16 %v1857, %v1853
        %v2118 = vpack.c.b16 %v1858, %v1854
        %v2119 = vpack.c.b16 %v1859, %v1855
        %v2120 = vpack.c.b16 %v1864, %v1860
        %v2121 = vpack.c.b16 %v1865, %v1861
        %v2122 = vpack.c.b16 %v1866, %v1862
        %v2123 = vpack.c.b16 %v1867, %v1863
        %2380 = vmatprep.subr.bf16.mxu0 %v1869
        %2381 = vmatpush1.bf16.msra.mxu0 %v1868
        %2382 = vmatprep.subr.bf16.mxu0 %v1873
        %2383 = vmatpush1.bf16.msra.mxu0 %v1872
        %2384 = vmatprep.subr.bf16.mxu0 %v1877
        %2385 = vmatpush1.bf16.msra.mxu0 %v1876
        %2386 = vmatprep.subr.bf16.mxu0 %v1881
        %2387 = vmatpush1.bf16.msra.mxu0 %v1880
        %2388 = vmatprep.subr.bf16.mxu0 %v1885
        %2389 = vmatpush1.bf16.msra.mxu0 %v1884
        %2390 = vmatprep.subr.bf16.mxu0 %v1889
        %2391 = vmatpush1.bf16.msra.mxu0 %v1888
        %2392 = vmatprep.subr.bf16.mxu0 %v1893
        %2393 = vmatpush1.bf16.msra.mxu0 %v1892
        %2394 = vmatprep.subr.bf16.mxu0 %v1897
        %2395 = vmatpush1.bf16.msra.mxu0 %v1896
        %2396 = vmatprep.subr.bf16.mxu0 %v1901
        %2397 = vmatpush1.bf16.msra.mxu0 %v1900
        %2398 = vmatprep.subr.bf16.mxu0 %v1905
        %2399 = vmatpush1.bf16.msra.mxu0 %v1904
        %2400 = vmatprep.subr.bf16.mxu0 %v1909
        %2401 = vmatpush1.bf16.msra.mxu0 %v1908
        %2402 = vmatprep.subr.bf16.mxu0 %v1913
        %2403 = vmatpush1.bf16.msra.mxu0 %v1912
        %2404 = vmatprep.subr.bf16.mxu0 %v1917
        %2405 = vmatpush1.bf16.msra.mxu0 %v1916
        %2406 = vmatprep.subr.bf16.mxu0 %v1921
        %2407 = vmatpush1.bf16.msra.mxu0 %v1920
        %2408 = vmatprep.subr.bf16.mxu0 %v1925
        %2409 = vmatpush1.bf16.msra.mxu0 %v1924
        %2410 = vmatprep.subr.bf16.mxu0 %v1929
        %2411 = vmatpush1.bf16.msra.mxu0 %v1928
        %2412 = vmatprep.mubr.bf16.mxu0 %v973
        %2413 = vmatmul.mubr.bf16.gmra.mrb[0].mxu0 %v972
        %v2414 = vpop.f32.mrb[0].mxu0
        %v2415 = vadd.f32 %v763, %v2414
        %v2416 = vpop.f32.mrb[0].mxu0
        %v2417 = vadd.f32 %v767, %v2416
        %v2418 = vpop.f32.mrb[0].mxu0
        %v2419 = vadd.f32 %v763, %v2418
        %v2420 = vpop.f32.mrb[0].mxu0
        %v2421 = vadd.f32 %v767, %v2420
        %2422 = vmatprep.mubr.bf16.mxu0 %v981
        %2423 = vmatmul.mubr.bf16.gmra.mrb[0].mxu0 %v980
        %v2424 = vpop.f32.mrb[0].mxu0
        %v2425 = vadd.f32 %v763, %v2424
        %v2426 = vpop.f32.mrb[0].mxu0
        %v2427 = vadd.f32 %v767, %v2426
        %v2428 = vpop.f32.mrb[0].mxu0
        %v2429 = vadd.f32 %v763, %v2428
        %v2430 = vpop.f32.mrb[0].mxu0
        %v2431 = vadd.f32 %v767, %v2430
        %2432 = vmatprep.mubr.bf16.mxu0 %v989
        %2433 = vmatmul.mubr.bf16.gmra.mrb[0].mxu0 %v988
        %v2434 = vpop.f32.mrb[0].mxu0
        %v2435 = vadd.f32 %v763, %v2434
        %v2436 = vpop.f32.mrb[0].mxu0
        %v2437 = vadd.f32 %v767, %v2436
        %v2438 = vpop.f32.mrb[0].mxu0
        %v2439 = vadd.f32 %v763, %v2438
        %v2440 = vpop.f32.mrb[0].mxu0
        %v2441 = vadd.f32 %v767, %v2440
        %2442 = vmatprep.mubr.bf16.mxu0 %v997
        %2443 = vmatmul.mubr.bf16.gmra.mrb[0].mxu0 %v996
        %v2444 = vpop.f32.mrb[0].mxu0
        %v2445 = vadd.f32 %v763, %v2444
        %v2446 = vpop.f32.mrb[0].mxu0
        %v2447 = vadd.f32 %v767, %v2446
        %v2448 = vpop.f32.mrb[0].mxu0
        %v2449 = vadd.f32 %v763, %v2448
        %v2450 = vpop.f32.mrb[0].mxu0
        %v2451 = vadd.f32 %v767, %v2450
        %2452 = vmatprep.mubr.bf16.mxu0 %v1005
        %2453 = vmatmul.mubr.bf16.gmra.mrb[0].mxu0 %v1004
        %v2454 = vpop.f32.mrb[0].mxu0
        %v2455 = vadd.f32 %v763, %v2454
        %v2456 = vpop.f32.mrb[0].mxu0
        %v2457 = vadd.f32 %v767, %v2456
        %v2458 = vpop.f32.mrb[0].mxu0
        %v2459 = vadd.f32 %v763, %v2458
        %v2460 = vpop.f32.mrb[0].mxu0
        %v2461 = vadd.f32 %v767, %v2460
        %2462 = vmatprep.mubr.bf16.mxu0 %v1013
        %2463 = vmatmul.mubr.bf16.gmra.mrb[0].mxu0 %v1012
        %v2464 = vpop.f32.mrb[0].mxu0
        %v2465 = vadd.f32 %v763, %v2464
        %v2466 = vpop.f32.mrb[0].mxu0
        %v2467 = vadd.f32 %v767, %v2466
        %v2468 = vpop.f32.mrb[0].mxu0
        %v2469 = vadd.f32 %v763, %v2468
        %v2470 = vpop.f32.mrb[0].mxu0
        %v2471 = vadd.f32 %v767, %v2470
        %2472 = vmatprep.mubr.bf16.mxu0 %v1021
        %2473 = vmatmul.mubr.bf16.gmra.mrb[0].mxu0 %v1020
        %v2474 = vpop.f32.mrb[0].mxu0
        %v2475 = vadd.f32 %v763, %v2474
        %v2476 = vpop.f32.mrb[0].mxu0
        %v2477 = vadd.f32 %v767, %v2476
        %v2478 = vpop.f32.mrb[0].mxu0
        %v2479 = vadd.f32 %v763, %v2478
        %v2480 = vpop.f32.mrb[0].mxu0
        %v2481 = vadd.f32 %v767, %v2480
        %2482 = vmatprep.mubr.bf16.mxu0 %v1029
        %2483 = vmatmul.mubr.bf16.gmra.mrb[0].mxu0 %v1028
        %v2484 = vpop.f32.mrb[0].mxu0
        %v2485 = vadd.f32 %v763, %v2484
        %v2486 = vpop.f32.mrb[0].mxu0
        %v2487 = vadd.f32 %v767, %v2486
        %v2488 = vpop.f32.mrb[0].mxu0
        %v2489 = vadd.f32 %v763, %v2488
        %v2490 = vpop.f32.mrb[0].mxu0
        %v2491 = vadd.f32 %v767, %v2490
        %2492 = vdwg.mxu0
        %2493 = vmatprep.subr.bf16.mxu0 %v1933
        %2494 = vmatpush1.bf16.msra.mxu0 %v1932
        %2495 = vmatprep.subr.bf16.mxu0 %v1937
        %2496 = vmatpush1.bf16.msra.mxu0 %v1936
        %2497 = vmatprep.subr.bf16.mxu0 %v1941
        %2498 = vmatpush1.bf16.msra.mxu0 %v1940
        %2499 = vmatprep.subr.bf16.mxu0 %v1945
        %2500 = vmatpush1.bf16.msra.mxu0 %v1944
        %2501 = vmatprep.subr.bf16.mxu0 %v1949
        %2502 = vmatpush1.bf16.msra.mxu0 %v1948
        %2503 = vmatprep.subr.bf16.mxu0 %v1953
        %2504 = vmatpush1.bf16.msra.mxu0 %v1952
        %2505 = vmatprep.subr.bf16.mxu0 %v1957
        %2506 = vmatpush1.bf16.msra.mxu0 %v1956
        %2507 = vmatprep.subr.bf16.mxu0 %v1961
        %2508 = vmatpush1.bf16.msra.mxu0 %v1960
        %2509 = vmatprep.subr.bf16.mxu0 %v1965
        %2510 = vmatpush1.bf16.msra.mxu0 %v1964
        %2511 = vmatprep.subr.bf16.mxu0 %v1969
        %2512 = vmatpush1.bf16.msra.mxu0 %v1968
        %2513 = vmatprep.subr.bf16.mxu0 %v1973
        %2514 = vmatpush1.bf16.msra.mxu0 %v1972
        %2515 = vmatprep.subr.bf16.mxu0 %v1977
        %2516 = vmatpush1.bf16.msra.mxu0 %v1976
        %2517 = vmatprep.subr.bf16.mxu0 %v1981
        %2518 = vmatpush1.bf16.msra.mxu0 %v1980
        %2519 = vmatprep.subr.bf16.mxu0 %v1985
        %2520 = vmatpush1.bf16.msra.mxu0 %v1984
        %2521 = vmatprep.subr.bf16.mxu0 %v1989
        %2522 = vmatpush1.bf16.msra.mxu0 %v1988
        %2523 = vmatprep.subr.bf16.mxu0 %v1993
        %2524 = vmatpush1.bf16.msra.mxu0 %v1992
        %2525 = vmatprep.mubr.bf16.mxu0 %v975
        %2526 = vmatmul.mubr.bf16.gmra.mrb[0].mxu0 %v974
        %v2527 = vpop.f32.mrb[0].mxu0
        %v2528 = vadd.f32 %v2415, %v2527
        %v2529 = vpop.f32.mrb[0].mxu0
        %v2530 = vadd.f32 %v2417, %v2529
        %v2531 = vpop.f32.mrb[0].mxu0
        %v2532 = vadd.f32 %v2419, %v2531
        %v2533 = vpop.f32.mrb[0].mxu0
        %v2534 = vadd.f32 %v2421, %v2533
        %2535 = vmatprep.mubr.bf16.mxu0 %v983
        %2536 = vmatmul.mubr.bf16.gmra.mrb[0].mxu0 %v982
        %v2537 = vpop.f32.mrb[0].mxu0
        %v2538 = vadd.f32 %v2425, %v2537
        %v2539 = vpop.f32.mrb[0].mxu0
        %v2540 = vadd.f32 %v2427, %v2539
        %v2541 = vpop.f32.mrb[0].mxu0
        %v2542 = vadd.f32 %v2429, %v2541
        %v2543 = vpop.f32.mrb[0].mxu0
        %v2544 = vadd.f32 %v2431, %v2543
        %2545 = vmatprep.mubr.bf16.mxu0 %v991
        %2546 = vmatmul.mubr.bf16.gmra.mrb[0].mxu0 %v990
        %v2547 = vpop.f32.mrb[0].mxu0
        %v2548 = vadd.f32 %v2435, %v2547
        %v2549 = vpop.f32.mrb[0].mxu0
        %v2550 = vadd.f32 %v2437, %v2549
        %v2551 = vpop.f32.mrb[0].mxu0
        %v2552 = vadd.f32 %v2439, %v2551
        %v2553 = vpop.f32.mrb[0].mxu0
        %v2554 = vadd.f32 %v2441, %v2553
        %2555 = vmatprep.mubr.bf16.mxu0 %v999
        %2556 = vmatmul.mubr.bf16.gmra.mrb[0].mxu0 %v998
        %v2557 = vpop.f32.mrb[0].mxu0
        %v2558 = vadd.f32 %v2445, %v2557
        %v2559 = vpop.f32.mrb[0].mxu0
        %v2560 = vadd.f32 %v2447, %v2559
        %v2561 = vpop.f32.mrb[0].mxu0
        %v2562 = vadd.f32 %v2449, %v2561
        %v2563 = vpop.f32.mrb[0].mxu0
        %v2564 = vadd.f32 %v2451, %v2563
        %2565 = vmatprep.mubr.bf16.mxu0 %v1007
        %2566 = vmatmul.mubr.bf16.gmra.mrb[0].mxu0 %v1006
        %v2567 = vpop.f32.mrb[0].mxu0
        %v2568 = vadd.f32 %v2455, %v2567
        %v2569 = vpop.f32.mrb[0].mxu0
        %v2570 = vadd.f32 %v2457, %v2569
        %v2571 = vpop.f32.mrb[0].mxu0
        %v2572 = vadd.f32 %v2459, %v2571
        %v2573 = vpop.f32.mrb[0].mxu0
        %v2574 = vadd.f32 %v2461, %v2573
        %2575 = vmatprep.mubr.bf16.mxu0 %v1015
        %2576 = vmatmul.mubr.bf16.gmra.mrb[0].mxu0 %v1014
        %v2577 = vpop.f32.mrb[0].mxu0
        %v2578 = vadd.f32 %v2465, %v2577
        %v2579 = vpop.f32.mrb[0].mxu0
        %v2580 = vadd.f32 %v2467, %v2579
        %v2581 = vpop.f32.mrb[0].mxu0
        %v2582 = vadd.f32 %v2469, %v2581
        %v2583 = vpop.f32.mrb[0].mxu0
        %v2584 = vadd.f32 %v2471, %v2583
        %2585 = vmatprep.mubr.bf16.mxu0 %v1023
        %2586 = vmatmul.mubr.bf16.gmra.mrb[0].mxu0 %v1022
        %v2587 = vpop.f32.mrb[0].mxu0
        %v2588 = vadd.f32 %v2475, %v2587
        %v2589 = vpop.f32.mrb[0].mxu0
        %v2590 = vadd.f32 %v2477, %v2589
        %v2591 = vpop.f32.mrb[0].mxu0
        %v2592 = vadd.f32 %v2479, %v2591
        %v2593 = vpop.f32.mrb[0].mxu0
        %v2594 = vadd.f32 %v2481, %v2593
        %2595 = vmatprep.mubr.bf16.mxu0 %v1031
        %2596 = vmatmul.mubr.bf16.gmra.mrb[0].mxu0 %v1030
        %v2597 = vpop.f32.mrb[0].mxu0
        %v2598 = vadd.f32 %v2485, %v2597
        %v2599 = vpop.f32.mrb[0].mxu0
        %v2600 = vadd.f32 %v2487, %v2599
        %v2601 = vpop.f32.mrb[0].mxu0
        %v2602 = vadd.f32 %v2489, %v2601
        %v2603 = vpop.f32.mrb[0].mxu0
        %v2604 = vadd.f32 %v2491, %v2603
        %2605 = vdwg.mxu0
        %2606 = vmatprep.subr.bf16.mxu0 %v1997
        %2607 = vmatpush1.bf16.msra.mxu0 %v1996
        %2608 = vmatprep.subr.bf16.mxu0 %v2001
        %2609 = vmatpush1.bf16.msra.mxu0 %v2000
        %2610 = vmatprep.subr.bf16.mxu0 %v2005
        %2611 = vmatpush1.bf16.msra.mxu0 %v2004
        %2612 = vmatprep.subr.bf16.mxu0 %v2009
        %2613 = vmatpush1.bf16.msra.mxu0 %v2008
        %2614 = vmatprep.subr.bf16.mxu0 %v2013
        %2615 = vmatpush1.bf16.msra.mxu0 %v2012
        %2616 = vmatprep.subr.bf16.mxu0 %v2017
        %2617 = vmatpush1.bf16.msra.mxu0 %v2016
        %2618 = vmatprep.subr.bf16.mxu0 %v2021
        %2619 = vmatpush1.bf16.msra.mxu0 %v2020
        %2620 = vmatprep.subr.bf16.mxu0 %v2025
        %2621 = vmatpush1.bf16.msra.mxu0 %v2024
        %2622 = vmatprep.subr.bf16.mxu0 %v2029
        %2623 = vmatpush1.bf16.msra.mxu0 %v2028
        %2624 = vmatprep.subr.bf16.mxu0 %v2033
        %2625 = vmatpush1.bf16.msra.mxu0 %v2032
        %2626 = vmatprep.subr.bf16.mxu0 %v2037
        %2627 = vmatpush1.bf16.msra.mxu0 %v2036
        %2628 = vmatprep.subr.bf16.mxu0 %v2041
        %2629 = vmatpush1.bf16.msra.mxu0 %v2040
        %2630 = vmatprep.subr.bf16.mxu0 %v2045
        %2631 = vmatpush1.bf16.msra.mxu0 %v2044
        %2632 = vmatprep.subr.bf16.mxu0 %v2049
        %2633 = vmatpush1.bf16.msra.mxu0 %v2048
        %2634 = vmatprep.subr.bf16.mxu0 %v2053
        %2635 = vmatpush1.bf16.msra.mxu0 %v2052
        %2636 = vmatprep.subr.bf16.mxu0 %v2057
        %2637 = vmatpush1.bf16.msra.mxu0 %v2056
        %2638 = vmatprep.mubr.bf16.mxu0 %v977
        %2639 = vmatmul.mubr.bf16.gmra.mrb[0].mxu0 %v976
        %v2640 = vpop.f32.mrb[0].mxu0
        %v2641 = vadd.f32 %v2528, %v2640
        %v2642 = vpop.f32.mrb[0].mxu0
        %v2643 = vadd.f32 %v2530, %v2642
        %v2644 = vpop.f32.mrb[0].mxu0
        %v2645 = vadd.f32 %v2532, %v2644
        %v2646 = vpop.f32.mrb[0].mxu0
        %v2647 = vadd.f32 %v2534, %v2646
        %2648 = vmatprep.mubr.bf16.mxu0 %v985
        %2649 = vmatmul.mubr.bf16.gmra.mrb[0].mxu0 %v984
        %v2650 = vpop.f32.mrb[0].mxu0
        %v2651 = vadd.f32 %v2538, %v2650
        %v2652 = vpop.f32.mrb[0].mxu0
        %v2653 = vadd.f32 %v2540, %v2652
        %v2654 = vpop.f32.mrb[0].mxu0
        %v2655 = vadd.f32 %v2542, %v2654
        %v2656 = vpop.f32.mrb[0].mxu0
        %v2657 = vadd.f32 %v2544, %v2656
        %2658 = vmatprep.mubr.bf16.mxu0 %v993
        %2659 = vmatmul.mubr.bf16.gmra.mrb[0].mxu0 %v992
        %v2660 = vpop.f32.mrb[0].mxu0
        %v2661 = vadd.f32 %v2548, %v2660
        %v2662 = vpop.f32.mrb[0].mxu0
        %v2663 = vadd.f32 %v2550, %v2662
        %v2664 = vpop.f32.mrb[0].mxu0
        %v2665 = vadd.f32 %v2552, %v2664
        %v2666 = vpop.f32.mrb[0].mxu0
        %v2667 = vadd.f32 %v2554, %v2666
        %2668 = vmatprep.mubr.bf16.mxu0 %v1001
        %2669 = vmatmul.mubr.bf16.gmra.mrb[0].mxu0 %v1000
        %v2670 = vpop.f32.mrb[0].mxu0
        %v2671 = vadd.f32 %v2558, %v2670
        %v2672 = vpop.f32.mrb[0].mxu0
        %v2673 = vadd.f32 %v2560, %v2672
        %v2674 = vpop.f32.mrb[0].mxu0
        %v2675 = vadd.f32 %v2562, %v2674
        %v2676 = vpop.f32.mrb[0].mxu0
        %v2677 = vadd.f32 %v2564, %v2676
        %2678 = vmatprep.mubr.bf16.mxu0 %v1009
        %2679 = vmatmul.mubr.bf16.gmra.mrb[0].mxu0 %v1008
        %v2680 = vpop.f32.mrb[0].mxu0
        %v2681 = vadd.f32 %v2568, %v2680
        %v2682 = vpop.f32.mrb[0].mxu0
        %v2683 = vadd.f32 %v2570, %v2682
        %v2684 = vpop.f32.mrb[0].mxu0
        %v2685 = vadd.f32 %v2572, %v2684
        %v2686 = vpop.f32.mrb[0].mxu0
        %v2687 = vadd.f32 %v2574, %v2686
        %2688 = vmatprep.mubr.bf16.mxu0 %v1017
        %2689 = vmatmul.mubr.bf16.gmra.mrb[0].mxu0 %v1016
        %v2690 = vpop.f32.mrb[0].mxu0
        %v2691 = vadd.f32 %v2578, %v2690
        %v2692 = vpop.f32.mrb[0].mxu0
        %v2693 = vadd.f32 %v2580, %v2692
        %v2694 = vpop.f32.mrb[0].mxu0
        %v2695 = vadd.f32 %v2582, %v2694
        %v2696 = vpop.f32.mrb[0].mxu0
        %v2697 = vadd.f32 %v2584, %v2696
        %2698 = vmatprep.mubr.bf16.mxu0 %v1025
        %2699 = vmatmul.mubr.bf16.gmra.mrb[0].mxu0 %v1024
        %v2700 = vpop.f32.mrb[0].mxu0
        %v2701 = vadd.f32 %v2588, %v2700
        %v2702 = vpop.f32.mrb[0].mxu0
        %v2703 = vadd.f32 %v2590, %v2702
        %v2704 = vpop.f32.mrb[0].mxu0
        %v2705 = vadd.f32 %v2592, %v2704
        %v2706 = vpop.f32.mrb[0].mxu0
        %v2707 = vadd.f32 %v2594, %v2706
        %2708 = vmatprep.mubr.bf16.mxu0 %v1033
        %2709 = vmatmul.mubr.bf16.gmra.mrb[0].mxu0 %v1032
        %v2710 = vpop.f32.mrb[0].mxu0
        %v2711 = vadd.f32 %v2598, %v2710
        %v2712 = vpop.f32.mrb[0].mxu0
        %v2713 = vadd.f32 %v2600, %v2712
        %v2714 = vpop.f32.mrb[0].mxu0
        %v2715 = vadd.f32 %v2602, %v2714
        %v2716 = vpop.f32.mrb[0].mxu0
        %v2717 = vadd.f32 %v2604, %v2716
        %2718 = vdwg.mxu0
        %2719 = vmatprep.subr.bf16.mxu0 %v2061
        %2720 = vmatpush1.bf16.msra.mxu0 %v2060
        %2721 = vmatprep.subr.bf16.mxu0 %v2065
        %2722 = vmatpush1.bf16.msra.mxu0 %v2064
        %2723 = vmatprep.subr.bf16.mxu0 %v2069
        %2724 = vmatpush1.bf16.msra.mxu0 %v2068
        %2725 = vmatprep.subr.bf16.mxu0 %v2073
        %2726 = vmatpush1.bf16.msra.mxu0 %v2072
        %2727 = vmatprep.subr.bf16.mxu0 %v2077
        %2728 = vmatpush1.bf16.msra.mxu0 %v2076
        %2729 = vmatprep.subr.bf16.mxu0 %v2081
        %2730 = vmatpush1.bf16.msra.mxu0 %v2080
        %2731 = vmatprep.subr.bf16.mxu0 %v2085
        %2732 = vmatpush1.bf16.msra.mxu0 %v2084
        %2733 = vmatprep.subr.bf16.mxu0 %v2089
        %2734 = vmatpush1.bf16.msra.mxu0 %v2088
        %2735 = vmatprep.subr.bf16.mxu0 %v2093
        %2736 = vmatpush1.bf16.msra.mxu0 %v2092
        %2737 = vmatprep.subr.bf16.mxu0 %v2097
        %2738 = vmatpush1.bf16.msra.mxu0 %v2096
        %2739 = vmatprep.subr.bf16.mxu0 %v2101
        %2740 = vmatpush1.bf16.msra.mxu0 %v2100
        %2741 = vmatprep.subr.bf16.mxu0 %v2105
        %2742 = vmatpush1.bf16.msra.mxu0 %v2104
        %2743 = vmatprep.subr.bf16.mxu0 %v2109
        %2744 = vmatpush1.bf16.msra.mxu0 %v2108
        %2745 = vmatprep.subr.bf16.mxu0 %v2113
        %2746 = vmatpush1.bf16.msra.mxu0 %v2112
        %2747 = vmatprep.subr.bf16.mxu0 %v2117
        %2748 = vmatpush1.bf16.msra.mxu0 %v2116
        %2749 = vmatprep.subr.bf16.mxu0 %v2121
        %2750 = vmatpush1.bf16.msra.mxu0 %v2120
        %2751 = vmatprep.mubr.bf16.mxu0 %v979
        %2752 = vmatmul.mubr.bf16.gmra.mrb[0].mxu0 %v978
        %v2753 = vpop.f32.mrb[0].mxu0
        %v2754 = vadd.f32 %v2641, %v2753
        %v2755 = vpop.f32.mrb[0].mxu0
        %v2756 = vadd.f32 %v2643, %v2755
        %v2757 = vpop.f32.mrb[0].mxu0
        %v2758 = vadd.f32 %v2645, %v2757
        %v2759 = vpop.f32.mrb[0].mxu0
        %v2760 = vadd.f32 %v2647, %v2759
        %2761 = vmatprep.mubr.bf16.mxu0 %v987
        %2762 = vmatmul.mubr.bf16.gmra.mrb[0].mxu0 %v986
        %v2763 = vpop.f32.mrb[0].mxu0
        %v2764 = vadd.f32 %v2651, %v2763
        %v2765 = vpop.f32.mrb[0].mxu0
        %v2766 = vadd.f32 %v2653, %v2765
        %v2767 = vpop.f32.mrb[0].mxu0
        %v2768 = vadd.f32 %v2655, %v2767
        %v2769 = vpop.f32.mrb[0].mxu0
        %v2770 = vadd.f32 %v2657, %v2769
        %2771 = vmatprep.mubr.bf16.mxu0 %v995
        %2772 = vmatmul.mubr.bf16.gmra.mrb[0].mxu0 %v994
        %v2773 = vpop.f32.mrb[0].mxu0
        %v2774 = vadd.f32 %v2661, %v2773
        %v2775 = vpop.f32.mrb[0].mxu0
        %v2776 = vadd.f32 %v2663, %v2775
        %v2777 = vpop.f32.mrb[0].mxu0
        %v2778 = vadd.f32 %v2665, %v2777
        %v2779 = vpop.f32.mrb[0].mxu0
        %v2780 = vadd.f32 %v2667, %v2779
        %2781 = vmatprep.mubr.bf16.mxu0 %v1003
        %2782 = vmatmul.mubr.bf16.gmra.mrb[0].mxu0 %v1002
        %v2783 = vpop.f32.mrb[0].mxu0
        %v2784 = vadd.f32 %v2671, %v2783
        %v2785 = vpop.f32.mrb[0].mxu0
        %v2786 = vadd.f32 %v2673, %v2785
        %v2787 = vpop.f32.mrb[0].mxu0
        %v2788 = vadd.f32 %v2675, %v2787
        %v2789 = vpop.f32.mrb[0].mxu0
        %v2790 = vadd.f32 %v2677, %v2789
        %2791 = vmatprep.mubr.bf16.mxu0 %v1011
        %2792 = vmatmul.mubr.bf16.gmra.mrb[0].mxu0 %v1010
        %v2793 = vpop.f32.mrb[0].mxu0
        %v2794 = vadd.f32 %v2681, %v2793
        %v2795 = vpop.f32.mrb[0].mxu0
        %v2796 = vadd.f32 %v2683, %v2795
        %v2797 = vpop.f32.mrb[0].mxu0
        %v2798 = vadd.f32 %v2685, %v2797
        %v2799 = vpop.f32.mrb[0].mxu0
        %v2800 = vadd.f32 %v2687, %v2799
        %2801 = vmatprep.mubr.bf16.mxu0 %v1019
        %2802 = vmatmul.mubr.bf16.gmra.mrb[0].mxu0 %v1018
        %v2803 = vpop.f32.mrb[0].mxu0
        %v2804 = vadd.f32 %v2691, %v2803
        %v2805 = vpop.f32.mrb[0].mxu0
        %v2806 = vadd.f32 %v2693, %v2805
        %v2807 = vpop.f32.mrb[0].mxu0
        %v2808 = vadd.f32 %v2695, %v2807
        %v2809 = vpop.f32.mrb[0].mxu0
        %v2810 = vadd.f32 %v2697, %v2809
        %2811 = vmatprep.mubr.bf16.mxu0 %v1027
        %2812 = vmatmul.mubr.bf16.gmra.mrb[0].mxu0 %v1026
        %v2813 = vpop.f32.mrb[0].mxu0
        %v2814 = vadd.f32 %v2701, %v2813
        %v2815 = vpop.f32.mrb[0].mxu0
        %v2816 = vadd.f32 %v2703, %v2815
        %v2817 = vpop.f32.mrb[0].mxu0
        %v2818 = vadd.f32 %v2705, %v2817
        %v2819 = vpop.f32.mrb[0].mxu0
        %v2820 = vadd.f32 %v2707, %v2819
        %2821 = vmatprep.mubr.bf16.mxu0 %v1035
        %2822 = vmatmul.mubr.bf16.gmra.mrb[0].mxu0 %v1034
        %v2823 = vpop.f32.mrb[0].mxu0
        %v2824 = vadd.f32 %v2711, %v2823
        %v2825 = vpop.f32.mrb[0].mxu0
        %v2826 = vadd.f32 %v2713, %v2825
        %v2827 = vpop.f32.mrb[0].mxu0
        %v2828 = vadd.f32 %v2715, %v2827
        %v2829 = vpop.f32.mrb[0].mxu0
        %v2830 = vadd.f32 %v2717, %v2829
        %2831 = vdwg.mxu0
        %2832 = vmatprep.subr.bf16.mxu0 %v1871
        %2833 = vmatpush1.bf16.msra.mxu0 %v1870
        %2834 = vmatprep.subr.bf16.mxu0 %v1875
        %2835 = vmatpush1.bf16.msra.mxu0 %v1874
        %2836 = vmatprep.subr.bf16.mxu0 %v1879
        %2837 = vmatpush1.bf16.msra.mxu0 %v1878
        %2838 = vmatprep.subr.bf16.mxu0 %v1883
        %2839 = vmatpush1.bf16.msra.mxu0 %v1882
        %2840 = vmatprep.subr.bf16.mxu0 %v1887
        %2841 = vmatpush1.bf16.msra.mxu0 %v1886
        %2842 = vmatprep.subr.bf16.mxu0 %v1891
        %2843 = vmatpush1.bf16.msra.mxu0 %v1890
        %2844 = vmatprep.subr.bf16.mxu0 %v1895
        %2845 = vmatpush1.bf16.msra.mxu0 %v1894
        %2846 = vmatprep.subr.bf16.mxu0 %v1899
        %2847 = vmatpush1.bf16.msra.mxu0 %v1898
        %2848 = vmatprep.subr.bf16.mxu0 %v1903
        %2849 = vmatpush1.bf16.msra.mxu0 %v1902
        %2850 = vmatprep.subr.bf16.mxu0 %v1907
        %2851 = vmatpush1.bf16.msra.mxu0 %v1906
        %2852 = vmatprep.subr.bf16.mxu0 %v1911
        %2853 = vmatpush1.bf16.msra.mxu0 %v1910
        %2854 = vmatprep.subr.bf16.mxu0 %v1915
        %2855 = vmatpush1.bf16.msra.mxu0 %v1914
        %2856 = vmatprep.subr.bf16.mxu0 %v1919
        %2857 = vmatpush1.bf16.msra.mxu0 %v1918
        %2858 = vmatprep.subr.bf16.mxu0 %v1923
        %2859 = vmatpush1.bf16.msra.mxu0 %v1922
        %2860 = vmatprep.subr.bf16.mxu0 %v1927
        %2861 = vmatpush1.bf16.msra.mxu0 %v1926
        %2862 = vmatprep.subr.bf16.mxu0 %v1931
        %2863 = vmatpush1.bf16.msra.mxu0 %v1930
        %2864 = vmatprep.mubr.bf16.mxu0 %v973
        %2865 = vmatmul.mubr.bf16.gmra.mrb[0].mxu0 %v972
        %v2866 = vpop.f32.mrb[0].mxu0
        %v2867 = vadd.f32 %v771, %v2866
        %v2868 = vpop.f32.mrb[0].mxu0
        %v2869 = vadd.f32 %v775, %v2868
        %v2870 = vpop.f32.mrb[0].mxu0
        %v2871 = vadd.f32 %v771, %v2870
        %v2872 = vpop.f32.mrb[0].mxu0
        %v2873 = vadd.f32 %v775, %v2872
        %2874 = vmatprep.mubr.bf16.mxu0 %v981
        %2875 = vmatmul.mubr.bf16.gmra.mrb[0].mxu0 %v980
        %v2876 = vpop.f32.mrb[0].mxu0
        %v2877 = vadd.f32 %v771, %v2876
        %v2878 = vpop.f32.mrb[0].mxu0
        %v2879 = vadd.f32 %v775, %v2878
        %v2880 = vpop.f32.mrb[0].mxu0
        %v2881 = vadd.f32 %v771, %v2880
        %v2882 = vpop.f32.mrb[0].mxu0
        %v2883 = vadd.f32 %v775, %v2882
        %2884 = vmatprep.mubr.bf16.mxu0 %v989
        %2885 = vmatmul.mubr.bf16.gmra.mrb[0].mxu0 %v988
        %v2886 = vpop.f32.mrb[0].mxu0
        %v2887 = vadd.f32 %v771, %v2886
        %v2888 = vpop.f32.mrb[0].mxu0
        %v2889 = vadd.f32 %v775, %v2888
        %v2890 = vpop.f32.mrb[0].mxu0
        %v2891 = vadd.f32 %v771, %v2890
        %v2892 = vpop.f32.mrb[0].mxu0
        %v2893 = vadd.f32 %v775, %v2892
        %2894 = vmatprep.mubr.bf16.mxu0 %v997
        %2895 = vmatmul.mubr.bf16.gmra.mrb[0].mxu0 %v996
        %v2896 = vpop.f32.mrb[0].mxu0
        %v2897 = vadd.f32 %v771, %v2896
        %v2898 = vpop.f32.mrb[0].mxu0
        %v2899 = vadd.f32 %v775, %v2898
        %v2900 = vpop.f32.mrb[0].mxu0
        %v2901 = vadd.f32 %v771, %v2900
        %v2902 = vpop.f32.mrb[0].mxu0
        %v2903 = vadd.f32 %v775, %v2902
        %2904 = vmatprep.mubr.bf16.mxu0 %v1005
        %2905 = vmatmul.mubr.bf16.gmra.mrb[0].mxu0 %v1004
        %v2906 = vpop.f32.mrb[0].mxu0
        %v2907 = vadd.f32 %v771, %v2906
        %v2908 = vpop.f32.mrb[0].mxu0
        %v2909 = vadd.f32 %v775, %v2908
        %v2910 = vpop.f32.mrb[0].mxu0
        %v2911 = vadd.f32 %v771, %v2910
        %v2912 = vpop.f32.mrb[0].mxu0
        %v2913 = vadd.f32 %v775, %v2912
        %2914 = vmatprep.mubr.bf16.mxu0 %v1013
        %2915 = vmatmul.mubr.bf16.gmra.mrb[0].mxu0 %v1012
        %v2916 = vpop.f32.mrb[0].mxu0
        %v2917 = vadd.f32 %v771, %v2916
        %v2918 = vpop.f32.mrb[0].mxu0
        %v2919 = vadd.f32 %v775, %v2918
        %v2920 = vpop.f32.mrb[0].mxu0
        %v2921 = vadd.f32 %v771, %v2920
        %v2922 = vpop.f32.mrb[0].mxu0
        %v2923 = vadd.f32 %v775, %v2922
        %2924 = vmatprep.mubr.bf16.mxu0 %v1021
        %2925 = vmatmul.mubr.bf16.gmra.mrb[0].mxu0 %v1020
        %v2926 = vpop.f32.mrb[0].mxu0
        %v2927 = vadd.f32 %v771, %v2926
        %v2928 = vpop.f32.mrb[0].mxu0
        %v2929 = vadd.f32 %v775, %v2928
        %v2930 = vpop.f32.mrb[0].mxu0
        %v2931 = vadd.f32 %v771, %v2930
        %v2932 = vpop.f32.mrb[0].mxu0
        %v2933 = vadd.f32 %v775, %v2932
        %2934 = vmatprep.mubr.bf16.mxu0 %v1029
        %2935 = vmatmul.mubr.bf16.gmra.mrb[0].mxu0 %v1028
        %v2936 = vpop.f32.mrb[0].mxu0
        %v2937 = vadd.f32 %v771, %v2936
        %v2938 = vpop.f32.mrb[0].mxu0
        %v2939 = vadd.f32 %v775, %v2938
        %v2940 = vpop.f32.mrb[0].mxu0
        %v2941 = vadd.f32 %v771, %v2940
        %v2942 = vpop.f32.mrb[0].mxu0
        %v2943 = vadd.f32 %v775, %v2942
        %2944 = vdwg.mxu0
        %2945 = vmatprep.subr.bf16.mxu0 %v1935
        %2946 = vmatpush1.bf16.msra.mxu0 %v1934
        %2947 = vmatprep.subr.bf16.mxu0 %v1939
        %2948 = vmatpush1.bf16.msra.mxu0 %v1938
        %2949 = vmatprep.subr.bf16.mxu0 %v1943
        %2950 = vmatpush1.bf16.msra.mxu0 %v1942
        %2951 = vmatprep.subr.bf16.mxu0 %v1947
        %2952 = vmatpush1.bf16.msra.mxu0 %v1946
        %2953 = vmatprep.subr.bf16.mxu0 %v1951
        %2954 = vmatpush1.bf16.msra.mxu0 %v1950
        %2955 = vmatprep.subr.bf16.mxu0 %v1955
        %2956 = vmatpush1.bf16.msra.mxu0 %v1954
        %2957 = vmatprep.subr.bf16.mxu0 %v1959
        %2958 = vmatpush1.bf16.msra.mxu0 %v1958
        %2959 = vmatprep.subr.bf16.mxu0 %v1963
        %2960 = vmatpush1.bf16.msra.mxu0 %v1962
        %2961 = vmatprep.subr.bf16.mxu0 %v1967
        %2962 = vmatpush1.bf16.msra.mxu0 %v1966
        %2963 = vmatprep.subr.bf16.mxu0 %v1971
        %2964 = vmatpush1.bf16.msra.mxu0 %v1970
        %2965 = vmatprep.subr.bf16.mxu0 %v1975
        %2966 = vmatpush1.bf16.msra.mxu0 %v1974
        %2967 = vmatprep.subr.bf16.mxu0 %v1979
        %2968 = vmatpush1.bf16.msra.mxu0 %v1978
        %2969 = vmatprep.subr.bf16.mxu0 %v1983
        %2970 = vmatpush1.bf16.msra.mxu0 %v1982
        %2971 = vmatprep.subr.bf16.mxu0 %v1987
        %2972 = vmatpush1.bf16.msra.mxu0 %v1986
        %2973 = vmatprep.subr.bf16.mxu0 %v1991
        %2974 = vmatpush1.bf16.msra.mxu0 %v1990
        %2975 = vmatprep.subr.bf16.mxu0 %v1995
        %2976 = vmatpush1.bf16.msra.mxu0 %v1994
        %2977 = vmatprep.mubr.bf16.mxu0 %v975
        %2978 = vmatmul.mubr.bf16.gmra.mrb[0].mxu0 %v974
        %v2979 = vpop.f32.mrb[0].mxu0
        %v2980 = vadd.f32 %v2867, %v2979
        %v2981 = vpop.f32.mrb[0].mxu0
        %v2982 = vadd.f32 %v2869, %v2981
        %v2983 = vpop.f32.mrb[0].mxu0
        %v2984 = vadd.f32 %v2871, %v2983
        %v2985 = vpop.f32.mrb[0].mxu0
        %v2986 = vadd.f32 %v2873, %v2985
        %2987 = vmatprep.mubr.bf16.mxu0 %v983
        %2988 = vmatmul.mubr.bf16.gmra.mrb[0].mxu0 %v982
        %v2989 = vpop.f32.mrb[0].mxu0
        %v2990 = vadd.f32 %v2877, %v2989
        %v2991 = vpop.f32.mrb[0].mxu0
        %v2992 = vadd.f32 %v2879, %v2991
        %v2993 = vpop.f32.mrb[0].mxu0
        %v2994 = vadd.f32 %v2881, %v2993
        %v2995 = vpop.f32.mrb[0].mxu0
        %v2996 = vadd.f32 %v2883, %v2995
        %2997 = vmatprep.mubr.bf16.mxu0 %v991
        %2998 = vmatmul.mubr.bf16.gmra.mrb[0].mxu0 %v990
        %v2999 = vpop.f32.mrb[0].mxu0
        %v3000 = vadd.f32 %v2887, %v2999
        %v3001 = vpop.f32.mrb[0].mxu0
        %v3002 = vadd.f32 %v2889, %v3001
        %v3003 = vpop.f32.mrb[0].mxu0
        %v3004 = vadd.f32 %v2891, %v3003
        %v3005 = vpop.f32.mrb[0].mxu0
        %v3006 = vadd.f32 %v2893, %v3005
        %3007 = vmatprep.mubr.bf16.mxu0 %v999
        %3008 = vmatmul.mubr.bf16.gmra.mrb[0].mxu0 %v998
        %v3009 = vpop.f32.mrb[0].mxu0
        %v3010 = vadd.f32 %v2897, %v3009
        %v3011 = vpop.f32.mrb[0].mxu0
        %v3012 = vadd.f32 %v2899, %v3011
        %v3013 = vpop.f32.mrb[0].mxu0
        %v3014 = vadd.f32 %v2901, %v3013
        %v3015 = vpop.f32.mrb[0].mxu0
        %v3016 = vadd.f32 %v2903, %v3015
        %3017 = vmatprep.mubr.bf16.mxu0 %v1007
        %3018 = vmatmul.mubr.bf16.gmra.mrb[0].mxu0 %v1006
        %v3019 = vpop.f32.mrb[0].mxu0
        %v3020 = vadd.f32 %v2907, %v3019
        %v3021 = vpop.f32.mrb[0].mxu0
        %v3022 = vadd.f32 %v2909, %v3021
        %v3023 = vpop.f32.mrb[0].mxu0
        %v3024 = vadd.f32 %v2911, %v3023
        %v3025 = vpop.f32.mrb[0].mxu0
        %v3026 = vadd.f32 %v2913, %v3025
        %3027 = vmatprep.mubr.bf16.mxu0 %v1015
        %3028 = vmatmul.mubr.bf16.gmra.mrb[0].mxu0 %v1014
        %v3029 = vpop.f32.mrb[0].mxu0
        %v3030 = vadd.f32 %v2917, %v3029
        %v3031 = vpop.f32.mrb[0].mxu0
        %v3032 = vadd.f32 %v2919, %v3031
        %v3033 = vpop.f32.mrb[0].mxu0
        %v3034 = vadd.f32 %v2921, %v3033
        %v3035 = vpop.f32.mrb[0].mxu0
        %v3036 = vadd.f32 %v2923, %v3035
        %3037 = vmatprep.mubr.bf16.mxu0 %v1023
        %3038 = vmatmul.mubr.bf16.gmra.mrb[0].mxu0 %v1022
        %v3039 = vpop.f32.mrb[0].mxu0
        %v3040 = vadd.f32 %v2927, %v3039
        %v3041 = vpop.f32.mrb[0].mxu0
        %v3042 = vadd.f32 %v2929, %v3041
        %v3043 = vpop.f32.mrb[0].mxu0
        %v3044 = vadd.f32 %v2931, %v3043
        %v3045 = vpop.f32.mrb[0].mxu0
        %v3046 = vadd.f32 %v2933, %v3045
        %3047 = vmatprep.mubr.bf16.mxu0 %v1031
        %3048 = vmatmul.mubr.bf16.gmra.mrb[0].mxu0 %v1030
        %v3049 = vpop.f32.mrb[0].mxu0
        %v3050 = vadd.f32 %v2937, %v3049
        %v3051 = vpop.f32.mrb[0].mxu0
        %v3052 = vadd.f32 %v2939, %v3051
        %v3053 = vpop.f32.mrb[0].mxu0
        %v3054 = vadd.f32 %v2941, %v3053
        %v3055 = vpop.f32.mrb[0].mxu0
        %v3056 = vadd.f32 %v2943, %v3055
        %3057 = vdwg.mxu0
        %3058 = vmatprep.subr.bf16.mxu0 %v1999
        %3059 = vmatpush1.bf16.msra.mxu0 %v1998
        %3060 = vmatprep.subr.bf16.mxu0 %v2003
        %3061 = vmatpush1.bf16.msra.mxu0 %v2002
        %3062 = vmatprep.subr.bf16.mxu0 %v2007
        %3063 = vmatpush1.bf16.msra.mxu0 %v2006
        %3064 = vmatprep.subr.bf16.mxu0 %v2011
        %3065 = vmatpush1.bf16.msra.mxu0 %v2010
        %3066 = vmatprep.subr.bf16.mxu0 %v2015
        %3067 = vmatpush1.bf16.msra.mxu0 %v2014
        %3068 = vmatprep.subr.bf16.mxu0 %v2019
        %3069 = vmatpush1.bf16.msra.mxu0 %v2018
        %3070 = vmatprep.subr.bf16.mxu0 %v2023
        %3071 = vmatpush1.bf16.msra.mxu0 %v2022
        %3072 = vmatprep.subr.bf16.mxu0 %v2027
        %3073 = vmatpush1.bf16.msra.mxu0 %v2026
        %3074 = vmatprep.subr.bf16.mxu0 %v2031
        %3075 = vmatpush1.bf16.msra.mxu0 %v2030
        %3076 = vmatprep.subr.bf16.mxu0 %v2035
        %3077 = vmatpush1.bf16.msra.mxu0 %v2034
        %3078 = vmatprep.subr.bf16.mxu0 %v2039
        %3079 = vmatpush1.bf16.msra.mxu0 %v2038
        %3080 = vmatprep.subr.bf16.mxu0 %v2043
        %3081 = vmatpush1.bf16.msra.mxu0 %v2042
        %3082 = vmatprep.subr.bf16.mxu0 %v2047
        %3083 = vmatpush1.bf16.msra.mxu0 %v2046
        %3084 = vmatprep.subr.bf16.mxu0 %v2051
        %3085 = vmatpush1.bf16.msra.mxu0 %v2050
        %3086 = vmatprep.subr.bf16.mxu0 %v2055
        %3087 = vmatpush1.bf16.msra.mxu0 %v2054
        %3088 = vmatprep.subr.bf16.mxu0 %v2059
        %3089 = vmatpush1.bf16.msra.mxu0 %v2058
        %3090 = vmatprep.mubr.bf16.mxu0 %v977
        %3091 = vmatmul.mubr.bf16.gmra.mrb[0].mxu0 %v976
        %v3092 = vpop.f32.mrb[0].mxu0
        %v3093 = vadd.f32 %v2980, %v3092
        %v3094 = vpop.f32.mrb[0].mxu0
        %v3095 = vadd.f32 %v2982, %v3094
        %v3096 = vpop.f32.mrb[0].mxu0
        %v3097 = vadd.f32 %v2984, %v3096
        %v3098 = vpop.f32.mrb[0].mxu0
        %v3099 = vadd.f32 %v2986, %v3098
        %3100 = vmatprep.mubr.bf16.mxu0 %v985
        %3101 = vmatmul.mubr.bf16.gmra.mrb[0].mxu0 %v984
        %v3102 = vpop.f32.mrb[0].mxu0
        %v3103 = vadd.f32 %v2990, %v3102
        %v3104 = vpop.f32.mrb[0].mxu0
        %v3105 = vadd.f32 %v2992, %v3104
        %v3106 = vpop.f32.mrb[0].mxu0
        %v3107 = vadd.f32 %v2994, %v3106
        %v3108 = vpop.f32.mrb[0].mxu0
        %v3109 = vadd.f32 %v2996, %v3108
        %3110 = vmatprep.mubr.bf16.mxu0 %v993
        %3111 = vmatmul.mubr.bf16.gmra.mrb[0].mxu0 %v992
        %v3112 = vpop.f32.mrb[0].mxu0
        %v3113 = vadd.f32 %v3000, %v3112
        %v3114 = vpop.f32.mrb[0].mxu0
        %v3115 = vadd.f32 %v3002, %v3114
        %v3116 = vpop.f32.mrb[0].mxu0
        %v3117 = vadd.f32 %v3004, %v3116
        %v3118 = vpop.f32.mrb[0].mxu0
        %v3119 = vadd.f32 %v3006, %v3118
        %3120 = vmatprep.mubr.bf16.mxu0 %v1001
        %3121 = vmatmul.mubr.bf16.gmra.mrb[0].mxu0 %v1000
        %v3122 = vpop.f32.mrb[0].mxu0
        %v3123 = vadd.f32 %v3010, %v3122
        %v3124 = vpop.f32.mrb[0].mxu0
        %v3125 = vadd.f32 %v3012, %v3124
        %v3126 = vpop.f32.mrb[0].mxu0
        %v3127 = vadd.f32 %v3014, %v3126
        %v3128 = vpop.f32.mrb[0].mxu0
        %v3129 = vadd.f32 %v3016, %v3128
        %3130 = vmatprep.mubr.bf16.mxu0 %v1009
        %3131 = vmatmul.mubr.bf16.gmra.mrb[0].mxu0 %v1008
        %v3132 = vpop.f32.mrb[0].mxu0
        %v3133 = vadd.f32 %v3020, %v3132
        %v3134 = vpop.f32.mrb[0].mxu0
        %v3135 = vadd.f32 %v3022, %v3134
        %v3136 = vpop.f32.mrb[0].mxu0
        %v3137 = vadd.f32 %v3024, %v3136
        %v3138 = vpop.f32.mrb[0].mxu0
        %v3139 = vadd.f32 %v3026, %v3138
        %3140 = vmatprep.mubr.bf16.mxu0 %v1017
        %3141 = vmatmul.mubr.bf16.gmra.mrb[0].mxu0 %v1016
        %v3142 = vpop.f32.mrb[0].mxu0
        %v3143 = vadd.f32 %v3030, %v3142
        %v3144 = vpop.f32.mrb[0].mxu0
        %v3145 = vadd.f32 %v3032, %v3144
        %v3146 = vpop.f32.mrb[0].mxu0
        %v3147 = vadd.f32 %v3034, %v3146
        %v3148 = vpop.f32.mrb[0].mxu0
        %v3149 = vadd.f32 %v3036, %v3148
        %3150 = vmatprep.mubr.bf16.mxu0 %v1025
        %3151 = vmatmul.mubr.bf16.gmra.mrb[0].mxu0 %v1024
        %v3152 = vpop.f32.mrb[0].mxu0
        %v3153 = vadd.f32 %v3040, %v3152
        %v3154 = vpop.f32.mrb[0].mxu0
        %v3155 = vadd.f32 %v3042, %v3154
        %v3156 = vpop.f32.mrb[0].mxu0
        %v3157 = vadd.f32 %v3044, %v3156
        %v3158 = vpop.f32.mrb[0].mxu0
        %v3159 = vadd.f32 %v3046, %v3158
        %3160 = vmatprep.mubr.bf16.mxu0 %v1033
        %3161 = vmatmul.mubr.bf16.gmra.mrb[0].mxu0 %v1032
        %v3162 = vpop.f32.mrb[0].mxu0
        %v3163 = vadd.f32 %v3050, %v3162
        %v3164 = vpop.f32.mrb[0].mxu0
        %v3165 = vadd.f32 %v3052, %v3164
        %v3166 = vpop.f32.mrb[0].mxu0
        %v3167 = vadd.f32 %v3054, %v3166
        %v3168 = vpop.f32.mrb[0].mxu0
        %v3169 = vadd.f32 %v3056, %v3168
        %3170 = vdwg.mxu0
        %3171 = vmatprep.subr.bf16.mxu0 %v2063
        %3172 = vmatpush1.bf16.msra.mxu0 %v2062
        %3173 = vmatprep.subr.bf16.mxu0 %v2067
        %3174 = vmatpush1.bf16.msra.mxu0 %v2066
        %3175 = vmatprep.subr.bf16.mxu0 %v2071
        %3176 = vmatpush1.bf16.msra.mxu0 %v2070
        %3177 = vmatprep.subr.bf16.mxu0 %v2075
        %3178 = vmatpush1.bf16.msra.mxu0 %v2074
        %3179 = vmatprep.subr.bf16.mxu0 %v2079
        %3180 = vmatpush1.bf16.msra.mxu0 %v2078
        %3181 = vmatprep.subr.bf16.mxu0 %v2083
        %3182 = vmatpush1.bf16.msra.mxu0 %v2082
        %3183 = vmatprep.subr.bf16.mxu0 %v2087
        %3184 = vmatpush1.bf16.msra.mxu0 %v2086
        %3185 = vmatprep.subr.bf16.mxu0 %v2091
        %3186 = vmatpush1.bf16.msra.mxu0 %v2090
        %3187 = vmatprep.subr.bf16.mxu0 %v2095
        %3188 = vmatpush1.bf16.msra.mxu0 %v2094
        %3189 = vmatprep.subr.bf16.mxu0 %v2099
        %3190 = vmatpush1.bf16.msra.mxu0 %v2098
        %3191 = vmatprep.subr.bf16.mxu0 %v2103
        %3192 = vmatpush1.bf16.msra.mxu0 %v2102
        %3193 = vmatprep.subr.bf16.mxu0 %v2107
        %3194 = vmatpush1.bf16.msra.mxu0 %v2106
        %3195 = vmatprep.subr.bf16.mxu0 %v2111
        %3196 = vmatpush1.bf16.msra.mxu0 %v2110
        %3197 = vmatprep.subr.bf16.mxu0 %v2115
        %3198 = vmatpush1.bf16.msra.mxu0 %v2114
        %3199 = vmatprep.subr.bf16.mxu0 %v2119
        %3200 = vmatpush1.bf16.msra.mxu0 %v2118
        %3201 = vmatprep.subr.bf16.mxu0 %v2123
        %3202 = vmatpush1.bf16.msra.mxu0 %v2122
        %3203 = vmatprep.mubr.bf16.mxu0 %v979
        %3204 = vmatmul.mubr.bf16.gmra.mrb[0].mxu0 %v978
        %v3205 = vpop.f32.mrb[0].mxu0
        %v3206 = vadd.f32 %v3093, %v3205
        %v3207 = vpop.f32.mrb[0].mxu0
        %v3208 = vadd.f32 %v3095, %v3207
        %v3209 = vpop.f32.mrb[0].mxu0
        %v3210 = vadd.f32 %v3097, %v3209
        %v3211 = vpop.f32.mrb[0].mxu0
        %v3212 = vadd.f32 %v3099, %v3211
        %3213 = vmatprep.mubr.bf16.mxu0 %v987
        %3214 = vmatmul.mubr.bf16.gmra.mrb[0].mxu0 %v986
        %v3215 = vpop.f32.mrb[0].mxu0
        %v3216 = vadd.f32 %v3103, %v3215
        %v3217 = vpop.f32.mrb[0].mxu0
        %v3218 = vadd.f32 %v3105, %v3217
        %v3219 = vpop.f32.mrb[0].mxu0
        %v3220 = vadd.f32 %v3107, %v3219
        %v3221 = vpop.f32.mrb[0].mxu0
        %v3222 = vadd.f32 %v3109, %v3221
        %3223 = vmatprep.mubr.bf16.mxu0 %v995
        %3224 = vmatmul.mubr.bf16.gmra.mrb[0].mxu0 %v994
        %v3225 = vpop.f32.mrb[0].mxu0
        %v3226 = vadd.f32 %v3113, %v3225
        %v3227 = vpop.f32.mrb[0].mxu0
        %v3228 = vadd.f32 %v3115, %v3227
        %v3229 = vpop.f32.mrb[0].mxu0
        %v3230 = vadd.f32 %v3117, %v3229
        %v3231 = vpop.f32.mrb[0].mxu0
        %v3232 = vadd.f32 %v3119, %v3231
        %3233 = vmatprep.mubr.bf16.mxu0 %v1003
        %3234 = vmatmul.mubr.bf16.gmra.mrb[0].mxu0 %v1002
        %v3235 = vpop.f32.mrb[0].mxu0
        %v3236 = vadd.f32 %v3123, %v3235
        %v3237 = vpop.f32.mrb[0].mxu0
        %v3238 = vadd.f32 %v3125, %v3237
        %v3239 = vpop.f32.mrb[0].mxu0
        %v3240 = vadd.f32 %v3127, %v3239
        %v3241 = vpop.f32.mrb[0].mxu0
        %v3242 = vadd.f32 %v3129, %v3241
        %3243 = vmatprep.mubr.bf16.mxu0 %v1011
        %3244 = vmatmul.mubr.bf16.gmra.mrb[0].mxu0 %v1010
        %v3245 = vpop.f32.mrb[0].mxu0
        %v3246 = vadd.f32 %v3133, %v3245
        %v3247 = vpop.f32.mrb[0].mxu0
        %v3248 = vadd.f32 %v3135, %v3247
        %v3249 = vpop.f32.mrb[0].mxu0
        %v3250 = vadd.f32 %v3137, %v3249
        %v3251 = vpop.f32.mrb[0].mxu0
        %v3252 = vadd.f32 %v3139, %v3251
        %3253 = vmatprep.mubr.bf16.mxu0 %v1019
        %3254 = vmatmul.mubr.bf16.gmra.mrb[0].mxu0 %v1018
        %v3255 = vpop.f32.mrb[0].mxu0
        %v3256 = vadd.f32 %v3143, %v3255
        %v3257 = vpop.f32.mrb[0].mxu0
        %v3258 = vadd.f32 %v3145, %v3257
        %v3259 = vpop.f32.mrb[0].mxu0
        %v3260 = vadd.f32 %v3147, %v3259
        %v3261 = vpop.f32.mrb[0].mxu0
        %v3262 = vadd.f32 %v3149, %v3261
        %3263 = vmatprep.mubr.bf16.mxu0 %v1027
        %3264 = vmatmul.mubr.bf16.gmra.mrb[0].mxu0 %v1026
        %v3265 = vpop.f32.mrb[0].mxu0
        %v3266 = vadd.f32 %v3153, %v3265
        %v3267 = vpop.f32.mrb[0].mxu0
        %v3268 = vadd.f32 %v3155, %v3267
        %v3269 = vpop.f32.mrb[0].mxu0
        %v3270 = vadd.f32 %v3157, %v3269
        %v3271 = vpop.f32.mrb[0].mxu0
        %v3272 = vadd.f32 %v3159, %v3271
        %3273 = vmatprep.mubr.bf16.mxu0 %v1035
        %3274 = vmatmul.mubr.bf16.gmra.mrb[0].mxu0 %v1034
        %v3275 = vpop.f32.mrb[0].mxu0
        %v3276 = vadd.f32 %v3163, %v3275
        %v3277 = vpop.f32.mrb[0].mxu0
        %v3278 = vadd.f32 %v3165, %v3277
        %v3279 = vpop.f32.mrb[0].mxu0
        %v3280 = vadd.f32 %v3167, %v3279
        %v3281 = vpop.f32.mrb[0].mxu0
        %v3282 = vadd.f32 %v3169, %v3281
        %3283 = vdwg.mxu0
        %v3284 = vmax.f32 %v2754, 0.0
        %v3285 = vmax.f32 %v2756, 0.0
        %v3286 = vmax.f32 %v3206, 0.0
        %v3287 = vmax.f32 %v3208, 0.0
        %v3288 = vmax.f32 %v2758, 0.0
        %v3289 = vmax.f32 %v2760, 0.0
        %v3290 = vmax.f32 %v3210, 0.0
        %v3291 = vmax.f32 %v3212, 0.0
        %v3292 = vmax.f32 %v2764, 0.0
        %v3293 = vmax.f32 %v2766, 0.0
        %v3294 = vmax.f32 %v3216, 0.0
        %v3295 = vmax.f32 %v3218, 0.0
        %v3296 = vmax.f32 %v2768, 0.0
        %v3297 = vmax.f32 %v2770, 0.0
        %v3298 = vmax.f32 %v3220, 0.0
        %v3299 = vmax.f32 %v3222, 0.0
        %v3300 = vmax.f32 %v2774, 0.0
        %v3301 = vmax.f32 %v2776, 0.0
        %v3302 = vmax.f32 %v3226, 0.0
        %v3303 = vmax.f32 %v3228, 0.0
        %v3304 = vmax.f32 %v2778, 0.0
        %v3305 = vmax.f32 %v2780, 0.0
        %v3306 = vmax.f32 %v3230, 0.0
        %v3307 = vmax.f32 %v3232, 0.0
        %v3308 = vmax.f32 %v2784, 0.0
        %v3309 = vmax.f32 %v2786, 0.0
        %v3310 = vmax.f32 %v3236, 0.0
        %v3311 = vmax.f32 %v3238, 0.0
        %v3312 = vmax.f32 %v2788, 0.0
        %v3313 = vmax.f32 %v2790, 0.0
        %v3314 = vmax.f32 %v3240, 0.0
        %v3315 = vmax.f32 %v3242, 0.0
        %v3316 = vmax.f32 %v2794, 0.0
        %v3317 = vmax.f32 %v2796, 0.0
        %v3318 = vmax.f32 %v3246, 0.0
        %v3319 = vmax.f32 %v3248, 0.0
        %v3320 = vmax.f32 %v2798, 0.0
        %v3321 = vmax.f32 %v2800, 0.0
        %v3322 = vmax.f32 %v3250, 0.0
        %v3323 = vmax.f32 %v3252, 0.0
        %v3324 = vmax.f32 %v2804, 0.0
        %v3325 = vmax.f32 %v2806, 0.0
        %v3326 = vmax.f32 %v3256, 0.0
        %v3327 = vmax.f32 %v3258, 0.0
        %v3328 = vmax.f32 %v2808, 0.0
        %v3329 = vmax.f32 %v2810, 0.0
        %v3330 = vmax.f32 %v3260, 0.0
        %v3331 = vmax.f32 %v3262, 0.0
        %v3332 = vmax.f32 %v2814, 0.0
        %v3333 = vmax.f32 %v2816, 0.0
        %v3334 = vmax.f32 %v3266, 0.0
        %v3335 = vmax.f32 %v3268, 0.0
        %v3336 = vmax.f32 %v2818, 0.0
        %v3337 = vmax.f32 %v2820, 0.0
        %v3338 = vmax.f32 %v3270, 0.0
        %v3339 = vmax.f32 %v3272, 0.0
        %v3340 = vmax.f32 %v2824, 0.0
        %v3341 = vmax.f32 %v2826, 0.0
        %v3342 = vmax.f32 %v3276, 0.0
        %v3343 = vmax.f32 %v3278, 0.0
        %v3344 = vmax.f32 %v2828, 0.0
        %v3345 = vmax.f32 %v2830, 0.0
        %v3346 = vmax.f32 %v3280, 0.0
        %v3347 = vmax.f32 %v3282, 0.0
        %v3348 = vpack.c.bf16 %v3288, %v3284
        %v3349 = vpack.c.bf16 %v3289, %v3285
        %v3350 = vpack.c.bf16 %v3290, %v3286
        %v3351 = vpack.c.bf16 %v3291, %v3287
        %v3352 = vpack.c.bf16 %v3296, %v3292
        %v3353 = vpack.c.bf16 %v3297, %v3293
        %v3354 = vpack.c.bf16 %v3298, %v3294
        %v3355 = vpack.c.bf16 %v3299, %v3295
        %v3356 = vpack.c.bf16 %v3304, %v3300
        %v3357 = vpack.c.bf16 %v3305, %v3301
        %v3358 = vpack.c.bf16 %v3306, %v3302
        %v3359 = vpack.c.bf16 %v3307, %v3303
        %v3360 = vpack.c.bf16 %v3312, %v3308
        %v3361 = vpack.c.bf16 %v3313, %v3309
        %v3362 = vpack.c.bf16 %v3314, %v3310
        %v3363 = vpack.c.bf16 %v3315, %v3311
        %v3364 = vpack.c.bf16 %v3320, %v3316
        %v3365 = vpack.c.bf16 %v3321, %v3317
        %v3366 = vpack.c.bf16 %v3322, %v3318
        %v3367 = vpack.c.bf16 %v3323, %v3319
        %v3368 = vpack.c.bf16 %v3328, %v3324
        %v3369 = vpack.c.bf16 %v3329, %v3325
        %v3370 = vpack.c.bf16 %v3330, %v3326
        %v3371 = vpack.c.bf16 %v3331, %v3327
        %v3372 = vpack.c.bf16 %v3336, %v3332
        %v3373 = vpack.c.bf16 %v3337, %v3333
        %v3374 = vpack.c.bf16 %v3338, %v3334
        %v3375 = vpack.c.bf16 %v3339, %v3335
        %v3376 = vpack.c.bf16 %v3344, %v3340
        %v3377 = vpack.c.bf16 %v3345, %v3341
        %v3378 = vpack.c.bf16 %v3346, %v3342
        %v3379 = vpack.c.bf16 %v3347, %v3343
        %v3380 = vld [vmem:[#allocation8] sm:$0xff]
        %v3381 = vld [vmem:[#allocation8 + $0x8] sm:$0xff]
        %v3382 = vld [vmem:[#allocation8 + $0x10] sm:$0xff]
        %v3383 = vld [vmem:[#allocation8 + $0x18] sm:$0xff]
        %v3384 = vld [vmem:[#allocation8 + $0x20] sm:$0xff]
        %v3385 = vld [vmem:[#allocation8 + $0x28] sm:$0xff]
        %v3386 = vld [vmem:[#allocation8 + $0x30] sm:$0xff]
        %v3387 = vld [vmem:[#allocation8 + $0x38] sm:$0xff]
        %v3388 = vld [vmem:[#allocation8 + $0x40] sm:$0xff]
        %v3389 = vld [vmem:[#allocation8 + $0x48] sm:$0xff]
        %v3390 = vld [vmem:[#allocation8 + $0x50] sm:$0xff]
        %v3391 = vld [vmem:[#allocation8 + $0x58] sm:$0xff]
        %v3392 = vld [vmem:[#allocation8 + $0x60] sm:$0xff]
        %v3393 = vld [vmem:[#allocation8 + $0x68] sm:$0xff]
        %v3394 = vld [vmem:[#allocation8 + $0x70] sm:$0xff]
        %v3395 = vld [vmem:[#allocation8 + $0x78] sm:$0xff]
        %v3396 = vld [vmem:[#allocation8 + $0x80] sm:$0xff]
        %v3397 = vld [vmem:[#allocation8 + $0x88] sm:$0xff]
        %v3398 = vld [vmem:[#allocation8 + $0x90] sm:$0xff]
        %v3399 = vld [vmem:[#allocation8 + $0x98] sm:$0xff]
        %v3400 = vld [vmem:[#allocation8 + $0xa0] sm:$0xff]
        %v3401 = vld [vmem:[#allocation8 + $0xa8] sm:$0xff]
        %v3402 = vld [vmem:[#allocation8 + $0xb0] sm:$0xff]
        %v3403 = vld [vmem:[#allocation8 + $0xb8] sm:$0xff]
        %v3404 = vld [vmem:[#allocation8 + $0xc0] sm:$0xff]
        %v3405 = vld [vmem:[#allocation8 + $0xc8] sm:$0xff]
        %v3406 = vld [vmem:[#allocation8 + $0xd0] sm:$0xff]
        %v3407 = vld [vmem:[#allocation8 + $0xd8] sm:$0xff]
        %v3408 = vld [vmem:[#allocation8 + $0xe0] sm:$0xff]
        %v3409 = vld [vmem:[#allocation8 + $0xe8] sm:$0xff]
        %v3410 = vld [vmem:[#allocation8 + $0xf0] sm:$0xff]
        %v3411 = vld [vmem:[#allocation8 + $0xf8] sm:$0xff]
        %v3412 = vld [vmem:[#allocation8 + $0x100] sm:$0xff]
        %v3413 = vld [vmem:[#allocation8 + $0x108] sm:$0xff]
        %v3414 = vld [vmem:[#allocation8 + $0x110] sm:$0xff]
        %v3415 = vld [vmem:[#allocation8 + $0x118] sm:$0xff]
        %v3416 = vld [vmem:[#allocation8 + $0x120] sm:$0xff]
        %v3417 = vld [vmem:[#allocation8 + $0x128] sm:$0xff]
        %v3418 = vld [vmem:[#allocation8 + $0x130] sm:$0xff]
        %v3419 = vld [vmem:[#allocation8 + $0x138] sm:$0xff]
        %v3420 = vld [vmem:[#allocation8 + $0x140] sm:$0xff]
        %v3421 = vld [vmem:[#allocation8 + $0x148] sm:$0xff]
        %v3422 = vld [vmem:[#allocation8 + $0x150] sm:$0xff]
        %v3423 = vld [vmem:[#allocation8 + $0x158] sm:$0xff]
        %v3424 = vld [vmem:[#allocation8 + $0x160] sm:$0xff]
        %v3425 = vld [vmem:[#allocation8 + $0x168] sm:$0xff]
        %v3426 = vld [vmem:[#allocation8 + $0x170] sm:$0xff]
        %v3427 = vld [vmem:[#allocation8 + $0x178] sm:$0xff]
        %v3428 = vld [vmem:[#allocation8 + $0x180] sm:$0xff]
        %v3429 = vld [vmem:[#allocation8 + $0x188] sm:$0xff]
        %v3430 = vld [vmem:[#allocation8 + $0x190] sm:$0xff]
        %v3431 = vld [vmem:[#allocation8 + $0x198] sm:$0xff]
        %v3432 = vld [vmem:[#allocation8 + $0x1a0] sm:$0xff]
        %v3433 = vld [vmem:[#allocation8 + $0x1a8] sm:$0xff]
        %v3434 = vld [vmem:[#allocation8 + $0x1b0] sm:$0xff]
        %v3435 = vld [vmem:[#allocation8 + $0x1b8] sm:$0xff]
        %v3436 = vld [vmem:[#allocation8 + $0x1c0] sm:$0xff]
        %v3437 = vld [vmem:[#allocation8 + $0x1c8] sm:$0xff]
        %v3438 = vld [vmem:[#allocation8 + $0x1d0] sm:$0xff]
        %v3439 = vld [vmem:[#allocation8 + $0x1d8] sm:$0xff]
        %v3440 = vld [vmem:[#allocation8 + $0x1e0] sm:$0xff]
        %v3441 = vld [vmem:[#allocation8 + $0x1e8] sm:$0xff]
        %v3442 = vld [vmem:[#allocation8 + $0x1f0] sm:$0xff]
        %v3443 = vld [vmem:[#allocation8 + $0x1f8] sm:$0xff]
        %v3444 = vld [vmem:[%s4] sm:$0x3]
        %v3446 = vlaneseq
        %v3447 = vshrl.u32 %v3446, 7
        %v3448 = vsub.s32 0, %v3447
        %v3449 = vrot.slane %v3444, %v3448
        %v3450 = vlaneseq
        %v3451 = vshrl.u32 %v3450, 7
        %v3452 = vsub.s32 1, %v3451
        %v3453 = vrot.slane %v3444, %v3452
        %v3520 = vunpack.c.l.b16 %v3380
        %v3521 = vunpack.c.h.b16 %v3380
        %v3522 = vunpack.c.l.b16 %v3381
        %v3523 = vunpack.c.h.b16 %v3381
        %v3524 = vunpack.c.l.b16 %v3382
        %v3525 = vunpack.c.h.b16 %v3382
        %v3526 = vunpack.c.l.b16 %v3383
        %v3527 = vunpack.c.h.b16 %v3383
        %v3528 = vunpack.c.l.b16 %v3384
        %v3529 = vunpack.c.h.b16 %v3384
        %v3530 = vunpack.c.l.b16 %v3385
        %v3531 = vunpack.c.h.b16 %v3385
        %v3532 = vunpack.c.l.b16 %v3386
        %v3533 = vunpack.c.h.b16 %v3386
        %v3534 = vunpack.c.l.b16 %v3387
        %v3535 = vunpack.c.h.b16 %v3387
        %v3536 = vunpack.c.l.b16 %v3388
        %v3537 = vunpack.c.h.b16 %v3388
        %v3538 = vunpack.c.l.b16 %v3389
        %v3539 = vunpack.c.h.b16 %v3389
        %v3540 = vunpack.c.l.b16 %v3390
        %v3541 = vunpack.c.h.b16 %v3390
        %v3542 = vunpack.c.l.b16 %v3391
        %v3543 = vunpack.c.h.b16 %v3391
        %v3544 = vunpack.c.l.b16 %v3392
        %v3545 = vunpack.c.h.b16 %v3392
        %v3546 = vunpack.c.l.b16 %v3393
        %v3547 = vunpack.c.h.b16 %v3393
        %v3548 = vunpack.c.l.b16 %v3394
        %v3549 = vunpack.c.h.b16 %v3394
        %v3550 = vunpack.c.l.b16 %v3395
        %v3551 = vunpack.c.h.b16 %v3395
        %v3552 = vunpack.c.l.b16 %v3396
        %v3553 = vunpack.c.h.b16 %v3396
        %v3554 = vunpack.c.l.b16 %v3397
        %v3555 = vunpack.c.h.b16 %v3397
        %v3556 = vunpack.c.l.b16 %v3398
        %v3557 = vunpack.c.h.b16 %v3398
        %v3558 = vunpack.c.l.b16 %v3399
        %v3559 = vunpack.c.h.b16 %v3399
        %v3560 = vunpack.c.l.b16 %v3400
        %v3561 = vunpack.c.h.b16 %v3400
        %v3562 = vunpack.c.l.b16 %v3401
        %v3563 = vunpack.c.h.b16 %v3401
        %v3564 = vunpack.c.l.b16 %v3402
        %v3565 = vunpack.c.h.b16 %v3402
        %v3566 = vunpack.c.l.b16 %v3403
        %v3567 = vunpack.c.h.b16 %v3403
        %v3568 = vunpack.c.l.b16 %v3404
        %v3569 = vunpack.c.h.b16 %v3404
        %v3570 = vunpack.c.l.b16 %v3405
        %v3571 = vunpack.c.h.b16 %v3405
        %v3572 = vunpack.c.l.b16 %v3406
        %v3573 = vunpack.c.h.b16 %v3406
        %v3574 = vunpack.c.l.b16 %v3407
        %v3575 = vunpack.c.h.b16 %v3407
        %v3576 = vunpack.c.l.b16 %v3408
        %v3577 = vunpack.c.h.b16 %v3408
        %v3578 = vunpack.c.l.b16 %v3409
        %v3579 = vunpack.c.h.b16 %v3409
        %v3580 = vunpack.c.l.b16 %v3410
        %v3581 = vunpack.c.h.b16 %v3410
        %v3582 = vunpack.c.l.b16 %v3411
        %v3583 = vunpack.c.h.b16 %v3411
        %v3584 = vunpack.c.l.b16 %v3412
        %v3585 = vunpack.c.h.b16 %v3412
        %v3586 = vunpack.c.l.b16 %v3413
        %v3587 = vunpack.c.h.b16 %v3413
        %v3588 = vunpack.c.l.b16 %v3414
        %v3589 = vunpack.c.h.b16 %v3414
        %v3590 = vunpack.c.l.b16 %v3415
        %v3591 = vunpack.c.h.b16 %v3415
        %v3592 = vunpack.c.l.b16 %v3416
        %v3593 = vunpack.c.h.b16 %v3416
        %v3594 = vunpack.c.l.b16 %v3417
        %v3595 = vunpack.c.h.b16 %v3417
        %v3596 = vunpack.c.l.b16 %v3418
        %v3597 = vunpack.c.h.b16 %v3418
        %v3598 = vunpack.c.l.b16 %v3419
        %v3599 = vunpack.c.h.b16 %v3419
        %v3600 = vunpack.c.l.b16 %v3420
        %v3601 = vunpack.c.h.b16 %v3420
        %v3602 = vunpack.c.l.b16 %v3421
        %v3603 = vunpack.c.h.b16 %v3421
        %v3604 = vunpack.c.l.b16 %v3422
        %v3605 = vunpack.c.h.b16 %v3422
        %v3606 = vunpack.c.l.b16 %v3423
        %v3607 = vunpack.c.h.b16 %v3423
        %v3608 = vunpack.c.l.b16 %v3424
        %v3609 = vunpack.c.h.b16 %v3424
        %v3610 = vunpack.c.l.b16 %v3425
        %v3611 = vunpack.c.h.b16 %v3425
        %v3612 = vunpack.c.l.b16 %v3426
        %v3613 = vunpack.c.h.b16 %v3426
        %v3614 = vunpack.c.l.b16 %v3427
        %v3615 = vunpack.c.h.b16 %v3427
        %v3616 = vunpack.c.l.b16 %v3428
        %v3617 = vunpack.c.h.b16 %v3428
        %v3618 = vunpack.c.l.b16 %v3429
        %v3619 = vunpack.c.h.b16 %v3429
        %v3620 = vunpack.c.l.b16 %v3430
        %v3621 = vunpack.c.h.b16 %v3430
        %v3622 = vunpack.c.l.b16 %v3431
        %v3623 = vunpack.c.h.b16 %v3431
        %v3624 = vunpack.c.l.b16 %v3432
        %v3625 = vunpack.c.h.b16 %v3432
        %v3626 = vunpack.c.l.b16 %v3433
        %v3627 = vunpack.c.h.b16 %v3433
        %v3628 = vunpack.c.l.b16 %v3434
        %v3629 = vunpack.c.h.b16 %v3434
        %v3630 = vunpack.c.l.b16 %v3435
        %v3631 = vunpack.c.h.b16 %v3435
        %v3632 = vunpack.c.l.b16 %v3436
        %v3633 = vunpack.c.h.b16 %v3436
        %v3634 = vunpack.c.l.b16 %v3437
        %v3635 = vunpack.c.h.b16 %v3437
        %v3636 = vunpack.c.l.b16 %v3438
        %v3637 = vunpack.c.h.b16 %v3438
        %v3638 = vunpack.c.l.b16 %v3439
        %v3639 = vunpack.c.h.b16 %v3439
        %v3640 = vunpack.c.l.b16 %v3440
        %v3641 = vunpack.c.h.b16 %v3440
        %v3642 = vunpack.c.l.b16 %v3441
        %v3643 = vunpack.c.h.b16 %v3441
        %v3644 = vunpack.c.l.b16 %v3442
        %v3645 = vunpack.c.h.b16 %v3442
        %v3646 = vunpack.c.l.b16 %v3443
        %v3647 = vunpack.c.h.b16 %v3443
        %v3648 = vpack.c.b16 %v3522, %v3520
        %v3649 = vpack.c.b16 %v3523, %v3521
        %v3650 = vpack.c.b16 %v3526, %v3524
        %v3651 = vpack.c.b16 %v3527, %v3525
        %v3652 = vpack.c.b16 %v3530, %v3528
        %v3653 = vpack.c.b16 %v3531, %v3529
        %v3654 = vpack.c.b16 %v3534, %v3532
        %v3655 = vpack.c.b16 %v3535, %v3533
        %v3656 = vpack.c.b16 %v3538, %v3536
        %v3657 = vpack.c.b16 %v3539, %v3537
        %v3658 = vpack.c.b16 %v3542, %v3540
        %v3659 = vpack.c.b16 %v3543, %v3541
        %v3660 = vpack.c.b16 %v3546, %v3544
        %v3661 = vpack.c.b16 %v3547, %v3545
        %v3662 = vpack.c.b16 %v3550, %v3548
        %v3663 = vpack.c.b16 %v3551, %v3549
        %v3664 = vpack.c.b16 %v3554, %v3552
        %v3665 = vpack.c.b16 %v3555, %v3553
        %v3666 = vpack.c.b16 %v3558, %v3556
        %v3667 = vpack.c.b16 %v3559, %v3557
        %v3668 = vpack.c.b16 %v3562, %v3560
        %v3669 = vpack.c.b16 %v3563, %v3561
        %v3670 = vpack.c.b16 %v3566, %v3564
        %v3671 = vpack.c.b16 %v3567, %v3565
        %v3672 = vpack.c.b16 %v3570, %v3568
        %v3673 = vpack.c.b16 %v3571, %v3569
        %v3674 = vpack.c.b16 %v3574, %v3572
        %v3675 = vpack.c.b16 %v3575, %v3573
        %v3676 = vpack.c.b16 %v3578, %v3576
        %v3677 = vpack.c.b16 %v3579, %v3577
        %v3678 = vpack.c.b16 %v3582, %v3580
        %v3679 = vpack.c.b16 %v3583, %v3581
        %v3680 = vpack.c.b16 %v3586, %v3584
        %v3681 = vpack.c.b16 %v3587, %v3585
        %v3682 = vpack.c.b16 %v3590, %v3588
        %v3683 = vpack.c.b16 %v3591, %v3589
        %v3684 = vpack.c.b16 %v3594, %v3592
        %v3685 = vpack.c.b16 %v3595, %v3593
        %v3686 = vpack.c.b16 %v3598, %v3596
        %v3687 = vpack.c.b16 %v3599, %v3597
        %v3688 = vpack.c.b16 %v3602, %v3600
        %v3689 = vpack.c.b16 %v3603, %v3601
        %v3690 = vpack.c.b16 %v3606, %v3604
        %v3691 = vpack.c.b16 %v3607, %v3605
        %v3692 = vpack.c.b16 %v3610, %v3608
        %v3693 = vpack.c.b16 %v3611, %v3609
        %v3694 = vpack.c.b16 %v3614, %v3612
        %v3695 = vpack.c.b16 %v3615, %v3613
        %v3696 = vpack.c.b16 %v3618, %v3616
        %v3697 = vpack.c.b16 %v3619, %v3617
        %v3698 = vpack.c.b16 %v3622, %v3620
        %v3699 = vpack.c.b16 %v3623, %v3621
        %v3700 = vpack.c.b16 %v3626, %v3624
        %v3701 = vpack.c.b16 %v3627, %v3625
        %v3702 = vpack.c.b16 %v3630, %v3628
        %v3703 = vpack.c.b16 %v3631, %v3629
        %v3704 = vpack.c.b16 %v3634, %v3632
        %v3705 = vpack.c.b16 %v3635, %v3633
        %v3706 = vpack.c.b16 %v3638, %v3636
        %v3707 = vpack.c.b16 %v3639, %v3637
        %v3708 = vpack.c.b16 %v3642, %v3640
        %v3709 = vpack.c.b16 %v3643, %v3641
        %v3710 = vpack.c.b16 %v3646, %v3644
        %v3711 = vpack.c.b16 %v3647, %v3645
        %3776 = vmatprep.subr.bf16.mxu0 %v3649
        %3777 = vmatpush1.bf16.msra.mxu0 %v3648
        %3778 = vmatprep.subr.bf16.mxu0 %v3651
        %3779 = vmatpush1.bf16.msra.mxu0 %v3650
        %3780 = vmatprep.subr.bf16.mxu0 %v3653
        %3781 = vmatpush1.bf16.msra.mxu0 %v3652
        %3782 = vmatprep.subr.bf16.mxu0 %v3655
        %3783 = vmatpush1.bf16.msra.mxu0 %v3654
        %3784 = vmatprep.subr.bf16.mxu0 %v3657
        %3785 = vmatpush1.bf16.msra.mxu0 %v3656
        %3786 = vmatprep.subr.bf16.mxu0 %v3659
        %3787 = vmatpush1.bf16.msra.mxu0 %v3658
        %3788 = vmatprep.subr.bf16.mxu0 %v3661
        %3789 = vmatpush1.bf16.msra.mxu0 %v3660
        %3790 = vmatprep.subr.bf16.mxu0 %v3663
        %3791 = vmatpush1.bf16.msra.mxu0 %v3662
        %3792 = vmatprep.subr.bf16.mxu0 %v3665
        %3793 = vmatpush1.bf16.msra.mxu0 %v3664
        %3794 = vmatprep.subr.bf16.mxu0 %v3667
        %3795 = vmatpush1.bf16.msra.mxu0 %v3666
        %3796 = vmatprep.subr.bf16.mxu0 %v3669
        %3797 = vmatpush1.bf16.msra.mxu0 %v3668
        %3798 = vmatprep.subr.bf16.mxu0 %v3671
        %3799 = vmatpush1.bf16.msra.mxu0 %v3670
        %3800 = vmatprep.subr.bf16.mxu0 %v3673
        %3801 = vmatpush1.bf16.msra.mxu0 %v3672
        %3802 = vmatprep.subr.bf16.mxu0 %v3675
        %3803 = vmatpush1.bf16.msra.mxu0 %v3674
        %3804 = vmatprep.subr.bf16.mxu0 %v3677
        %3805 = vmatpush1.bf16.msra.mxu0 %v3676
        %3806 = vmatprep.subr.bf16.mxu0 %v3679
        %3807 = vmatpush1.bf16.msra.mxu0 %v3678
        %3808 = vmatprep.mubr.bf16.mxu0 %v3349
        %3809 = vmatmul.mubr.bf16.gmra.mrb[0].mxu0 %v3348
        %v3810 = vpop.f32.mrb[0].mxu0
        %v3811 = vadd.f32 %v3449, %v3810
        %v3812 = vpop.f32.mrb[0].mxu0
        %v3813 = vadd.f32 %v3453, %v3812
        %v3814 = vpop.f32.mrb[0].mxu0
        %v3815 = vadd.f32 %v3449, %v3814
        %v3816 = vpop.f32.mrb[0].mxu0
        %v3817 = vadd.f32 %v3453, %v3816
        %3818 = vmatprep.mubr.bf16.mxu0 %v3353
        %3819 = vmatmul.mubr.bf16.gmra.mrb[0].mxu0 %v3352
        %v3820 = vpop.f32.mrb[0].mxu0
        %v3821 = vadd.f32 %v3449, %v3820
        %v3822 = vpop.f32.mrb[0].mxu0
        %v3823 = vadd.f32 %v3453, %v3822
        %v3824 = vpop.f32.mrb[0].mxu0
        %v3825 = vadd.f32 %v3449, %v3824
        %v3826 = vpop.f32.mrb[0].mxu0
        %v3827 = vadd.f32 %v3453, %v3826
        %3828 = vmatprep.mubr.bf16.mxu0 %v3357
        %3829 = vmatmul.mubr.bf16.gmra.mrb[0].mxu0 %v3356
        %v3830 = vpop.f32.mrb[0].mxu0
        %v3831 = vadd.f32 %v3449, %v3830
        %v3832 = vpop.f32.mrb[0].mxu0
        %v3833 = vadd.f32 %v3453, %v3832
        %v3834 = vpop.f32.mrb[0].mxu0
        %v3835 = vadd.f32 %v3449, %v3834
        %v3836 = vpop.f32.mrb[0].mxu0
        %v3837 = vadd.f32 %v3453, %v3836
        %3838 = vmatprep.mubr.bf16.mxu0 %v3361
        %3839 = vmatmul.mubr.bf16.gmra.mrb[0].mxu0 %v3360
        %v3840 = vpop.f32.mrb[0].mxu0
        %v3841 = vadd.f32 %v3449, %v3840
        %v3842 = vpop.f32.mrb[0].mxu0
        %v3843 = vadd.f32 %v3453, %v3842
        %v3844 = vpop.f32.mrb[0].mxu0
        %v3845 = vadd.f32 %v3449, %v3844
        %v3846 = vpop.f32.mrb[0].mxu0
        %v3847 = vadd.f32 %v3453, %v3846
        %3848 = vmatprep.mubr.bf16.mxu0 %v3365
        %3849 = vmatmul.mubr.bf16.gmra.mrb[0].mxu0 %v3364
        %v3850 = vpop.f32.mrb[0].mxu0
        %v3851 = vadd.f32 %v3449, %v3850
        %v3852 = vpop.f32.mrb[0].mxu0
        %v3853 = vadd.f32 %v3453, %v3852
        %v3854 = vpop.f32.mrb[0].mxu0
        %v3855 = vadd.f32 %v3449, %v3854
        %v3856 = vpop.f32.mrb[0].mxu0
        %v3857 = vadd.f32 %v3453, %v3856
        %3858 = vmatprep.mubr.bf16.mxu0 %v3369
        %3859 = vmatmul.mubr.bf16.gmra.mrb[0].mxu0 %v3368
        %v3860 = vpop.f32.mrb[0].mxu0
        %v3861 = vadd.f32 %v3449, %v3860
        %v3862 = vpop.f32.mrb[0].mxu0
        %v3863 = vadd.f32 %v3453, %v3862
        %v3864 = vpop.f32.mrb[0].mxu0
        %v3865 = vadd.f32 %v3449, %v3864
        %v3866 = vpop.f32.mrb[0].mxu0
        %v3867 = vadd.f32 %v3453, %v3866
        %3868 = vmatprep.mubr.bf16.mxu0 %v3373
        %3869 = vmatmul.mubr.bf16.gmra.mrb[0].mxu0 %v3372
        %v3870 = vpop.f32.mrb[0].mxu0
        %v3871 = vadd.f32 %v3449, %v3870
        %v3872 = vpop.f32.mrb[0].mxu0
        %v3873 = vadd.f32 %v3453, %v3872
        %v3874 = vpop.f32.mrb[0].mxu0
        %v3875 = vadd.f32 %v3449, %v3874
        %v3876 = vpop.f32.mrb[0].mxu0
        %v3877 = vadd.f32 %v3453, %v3876
        %3878 = vmatprep.mubr.bf16.mxu0 %v3377
        %3879 = vmatmul.mubr.bf16.gmra.mrb[0].mxu0 %v3376
        %v3880 = vpop.f32.mrb[0].mxu0
        %v3881 = vadd.f32 %v3449, %v3880
        %v3882 = vpop.f32.mrb[0].mxu0
        %v3883 = vadd.f32 %v3453, %v3882
        %v3884 = vpop.f32.mrb[0].mxu0
        %v3885 = vadd.f32 %v3449, %v3884
        %v3886 = vpop.f32.mrb[0].mxu0
        %v3887 = vadd.f32 %v3453, %v3886
        %3888 = vdwg.mxu0
        %3889 = vmatprep.subr.bf16.mxu0 %v3681
        %3890 = vmatpush1.bf16.msra.mxu0 %v3680
        %3891 = vmatprep.subr.bf16.mxu0 %v3683
        %3892 = vmatpush1.bf16.msra.mxu0 %v3682
        %3893 = vmatprep.subr.bf16.mxu0 %v3685
        %3894 = vmatpush1.bf16.msra.mxu0 %v3684
        %3895 = vmatprep.subr.bf16.mxu0 %v3687
        %3896 = vmatpush1.bf16.msra.mxu0 %v3686
        %3897 = vmatprep.subr.bf16.mxu0 %v3689
        %3898 = vmatpush1.bf16.msra.mxu0 %v3688
        %3899 = vmatprep.subr.bf16.mxu0 %v3691
        %3900 = vmatpush1.bf16.msra.mxu0 %v3690
        %3901 = vmatprep.subr.bf16.mxu0 %v3693
        %3902 = vmatpush1.bf16.msra.mxu0 %v3692
        %3903 = vmatprep.subr.bf16.mxu0 %v3695
        %3904 = vmatpush1.bf16.msra.mxu0 %v3694
        %3905 = vmatprep.subr.bf16.mxu0 %v3697
        %3906 = vmatpush1.bf16.msra.mxu0 %v3696
        %3907 = vmatprep.subr.bf16.mxu0 %v3699
        %3908 = vmatpush1.bf16.msra.mxu0 %v3698
        %3909 = vmatprep.subr.bf16.mxu0 %v3701
        %3910 = vmatpush1.bf16.msra.mxu0 %v3700
        %3911 = vmatprep.subr.bf16.mxu0 %v3703
        %3912 = vmatpush1.bf16.msra.mxu0 %v3702
        %3913 = vmatprep.subr.bf16.mxu0 %v3705
        %3914 = vmatpush1.bf16.msra.mxu0 %v3704
        %3915 = vmatprep.subr.bf16.mxu0 %v3707
        %3916 = vmatpush1.bf16.msra.mxu0 %v3706
        %3917 = vmatprep.subr.bf16.mxu0 %v3709
        %3918 = vmatpush1.bf16.msra.mxu0 %v3708
        %3919 = vmatprep.subr.bf16.mxu0 %v3711
        %3920 = vmatpush1.bf16.msra.mxu0 %v3710
        %3921 = vmatprep.mubr.bf16.mxu0 %v3351
        %3922 = vmatmul.mubr.bf16.gmra.mrb[0].mxu0 %v3350
        %v3923 = vpop.f32.mrb[0].mxu0
        %v3924 = vadd.f32 %v3811, %v3923
        %v3925 = vpop.f32.mrb[0].mxu0
        %v3926 = vadd.f32 %v3813, %v3925
        %v3927 = vpop.f32.mrb[0].mxu0
        %v3928 = vadd.f32 %v3815, %v3927
        %v3929 = vpop.f32.mrb[0].mxu0
        %v3930 = vadd.f32 %v3817, %v3929
        %3931 = vmatprep.mubr.bf16.mxu0 %v3355
        %3932 = vmatmul.mubr.bf16.gmra.mrb[0].mxu0 %v3354
        %v3933 = vpop.f32.mrb[0].mxu0
        %v3934 = vadd.f32 %v3821, %v3933
        %v3935 = vpop.f32.mrb[0].mxu0
        %v3936 = vadd.f32 %v3823, %v3935
        %v3937 = vpop.f32.mrb[0].mxu0
        %v3938 = vadd.f32 %v3825, %v3937
        %v3939 = vpop.f32.mrb[0].mxu0
        %v3940 = vadd.f32 %v3827, %v3939
        %3941 = vmatprep.mubr.bf16.mxu0 %v3359
        %3942 = vmatmul.mubr.bf16.gmra.mrb[0].mxu0 %v3358
        %v3943 = vpop.f32.mrb[0].mxu0
        %v3944 = vadd.f32 %v3831, %v3943
        %v3945 = vpop.f32.mrb[0].mxu0
        %v3946 = vadd.f32 %v3833, %v3945
        %v3947 = vpop.f32.mrb[0].mxu0
        %v3948 = vadd.f32 %v3835, %v3947
        %v3949 = vpop.f32.mrb[0].mxu0
        %v3950 = vadd.f32 %v3837, %v3949
        %3951 = vmatprep.mubr.bf16.mxu0 %v3363
        %3952 = vmatmul.mubr.bf16.gmra.mrb[0].mxu0 %v3362
        %v3953 = vpop.f32.mrb[0].mxu0
        %v3954 = vadd.f32 %v3841, %v3953
        %v3955 = vpop.f32.mrb[0].mxu0
        %v3956 = vadd.f32 %v3843, %v3955
        %v3957 = vpop.f32.mrb[0].mxu0
        %v3958 = vadd.f32 %v3845, %v3957
        %v3959 = vpop.f32.mrb[0].mxu0
        %v3960 = vadd.f32 %v3847, %v3959
        %3961 = vmatprep.mubr.bf16.mxu0 %v3367
        %3962 = vmatmul.mubr.bf16.gmra.mrb[0].mxu0 %v3366
        %v3963 = vpop.f32.mrb[0].mxu0
        %v3964 = vadd.f32 %v3851, %v3963
        %v3965 = vpop.f32.mrb[0].mxu0
        %v3966 = vadd.f32 %v3853, %v3965
        %v3967 = vpop.f32.mrb[0].mxu0
        %v3968 = vadd.f32 %v3855, %v3967
        %v3969 = vpop.f32.mrb[0].mxu0
        %v3970 = vadd.f32 %v3857, %v3969
        %3971 = vmatprep.mubr.bf16.mxu0 %v3371
        %3972 = vmatmul.mubr.bf16.gmra.mrb[0].mxu0 %v3370
        %v3973 = vpop.f32.mrb[0].mxu0
        %v3974 = vadd.f32 %v3861, %v3973
        %v3975 = vpop.f32.mrb[0].mxu0
        %v3976 = vadd.f32 %v3863, %v3975
        %v3977 = vpop.f32.mrb[0].mxu0
        %v3978 = vadd.f32 %v3865, %v3977
        %v3979 = vpop.f32.mrb[0].mxu0
        %v3980 = vadd.f32 %v3867, %v3979
        %3981 = vmatprep.mubr.bf16.mxu0 %v3375
        %3982 = vmatmul.mubr.bf16.gmra.mrb[0].mxu0 %v3374
        %v3983 = vpop.f32.mrb[0].mxu0
        %v3984 = vadd.f32 %v3871, %v3983
        %v3985 = vpop.f32.mrb[0].mxu0
        %v3986 = vadd.f32 %v3873, %v3985
        %v3987 = vpop.f32.mrb[0].mxu0
        %v3988 = vadd.f32 %v3875, %v3987
        %v3989 = vpop.f32.mrb[0].mxu0
        %v3990 = vadd.f32 %v3877, %v3989
        %3991 = vmatprep.mubr.bf16.mxu0 %v3379
        %3992 = vmatmul.mubr.bf16.gmra.mrb[0].mxu0 %v3378
        %v3993 = vpop.f32.mrb[0].mxu0
        %v3994 = vadd.f32 %v3881, %v3993
        %v3995 = vpop.f32.mrb[0].mxu0
        %v3996 = vadd.f32 %v3883, %v3995
        %v3997 = vpop.f32.mrb[0].mxu0
        %v3998 = vadd.f32 %v3885, %v3997
        %v3999 = vpop.f32.mrb[0].mxu0
        %v4000 = vadd.f32 %v3887, %v3999
        %4001 = vdwg.mxu0
        %v4002 = vmax.f32 %v3924, 0.0
        %v4003 = vmax.f32 %v3926, 0.0
        %v4004 = vmax.f32 %v3928, 0.0
        %v4005 = vmax.f32 %v3930, 0.0
        %v4006 = vmax.f32 %v3934, 0.0
        %v4007 = vmax.f32 %v3936, 0.0
        %v4008 = vmax.f32 %v3938, 0.0
        %v4009 = vmax.f32 %v3940, 0.0
        %v4010 = vmax.f32 %v3944, 0.0
        %v4011 = vmax.f32 %v3946, 0.0
        %v4012 = vmax.f32 %v3948, 0.0
        %v4013 = vmax.f32 %v3950, 0.0
        %v4014 = vmax.f32 %v3954, 0.0
        %v4015 = vmax.f32 %v3956, 0.0
        %v4016 = vmax.f32 %v3958, 0.0
        %v4017 = vmax.f32 %v3960, 0.0
        %v4018 = vmax.f32 %v3964, 0.0
        %v4019 = vmax.f32 %v3966, 0.0
        %v4020 = vmax.f32 %v3968, 0.0
        %v4021 = vmax.f32 %v3970, 0.0
        %v4022 = vmax.f32 %v3974, 0.0
        %v4023 = vmax.f32 %v3976, 0.0
        %v4024 = vmax.f32 %v3978, 0.0
        %v4025 = vmax.f32 %v3980, 0.0
        %v4026 = vmax.f32 %v3984, 0.0
        %v4027 = vmax.f32 %v3986, 0.0
        %v4028 = vmax.f32 %v3988, 0.0
        %v4029 = vmax.f32 %v3990, 0.0
        %v4030 = vmax.f32 %v3994, 0.0
        %v4031 = vmax.f32 %v3996, 0.0
        %v4032 = vmax.f32 %v3998, 0.0
        %v4033 = vmax.f32 %v4000, 0.0
        %v4034 = vpack.c.bf16 %v4004, %v4002
        %v4035 = vpack.c.bf16 %v4005, %v4003
        %v4036 = vpack.c.bf16 %v4008, %v4006
        %v4037 = vpack.c.bf16 %v4009, %v4007
        %v4038 = vpack.c.bf16 %v4012, %v4010
        %v4039 = vpack.c.bf16 %v4013, %v4011
        %v4040 = vpack.c.bf16 %v4016, %v4014
        %v4041 = vpack.c.bf16 %v4017, %v4015
        %v4042 = vpack.c.bf16 %v4020, %v4018
        %v4043 = vpack.c.bf16 %v4021, %v4019
        %v4044 = vpack.c.bf16 %v4024, %v4022
        %v4045 = vpack.c.bf16 %v4025, %v4023
        %v4046 = vpack.c.bf16 %v4028, %v4026
        %v4047 = vpack.c.bf16 %v4029, %v4027
        %v4048 = vpack.c.bf16 %v4032, %v4030
        %v4049 = vpack.c.bf16 %v4033, %v4031
        %v4050 = vld [vmem:[%s5] sm:$0xf]
        %v4051 = vld [vmem:[%s5 + $0x4] sm:$0xf]
        %v4052 = vld [vmem:[%s5 + $0x8] sm:$0xf]
        %v4053 = vld [vmem:[%s5 + $0xc] sm:$0xf]
        %v4054 = vld [vmem:[%s5 + $0x10] sm:$0xf]
        %v4055 = vld [vmem:[%s5 + $0x14] sm:$0xf]
        %v4056 = vld [vmem:[%s5 + $0x18] sm:$0xf]
        %v4057 = vld [vmem:[%s5 + $0x1c] sm:$0xf]
        %v4058 = vld [vmem:[%s5 + $0x20] sm:$0xf]
        %v4059 = vld [vmem:[%s5 + $0x24] sm:$0xf]
        %v4060 = vld [vmem:[%s5 + $0x28] sm:$0xf]
        %v4061 = vld [vmem:[%s5 + $0x2c] sm:$0xf]
        %v4062 = vld [vmem:[%s5 + $0x30] sm:$0xf]
        %v4063 = vld [vmem:[%s5 + $0x34] sm:$0xf]
        %v4064 = vld [vmem:[%s5 + $0x38] sm:$0xf]
        %v4065 = vld [vmem:[%s5 + $0x3c] sm:$0xf]
        %v4066 = vld [vmem:[%s5 + $0x40] sm:$0xf]
        %v4067 = vld [vmem:[%s5 + $0x44] sm:$0xf]
        %v4068 = vld [vmem:[%s5 + $0x48] sm:$0xf]
        %v4069 = vld [vmem:[%s5 + $0x4c] sm:$0xf]
        %v4070 = vld [vmem:[%s5 + $0x50] sm:$0xf]
        %v4071 = vld [vmem:[%s5 + $0x54] sm:$0xf]
        %v4072 = vld [vmem:[%s5 + $0x58] sm:$0xf]
        %v4073 = vld [vmem:[%s5 + $0x5c] sm:$0xf]
        %v4074 = vld [vmem:[%s5 + $0x60] sm:$0xf]
        %v4075 = vld [vmem:[%s5 + $0x64] sm:$0xf]
        %v4076 = vld [vmem:[%s5 + $0x68] sm:$0xf]
        %v4077 = vld [vmem:[%s5 + $0x6c] sm:$0xf]
        %v4078 = vld [vmem:[%s5 + $0x70] sm:$0xf]
        %v4079 = vld [vmem:[%s5 + $0x74] sm:$0xf]
        %v4080 = vld [vmem:[%s5 + $0x78] sm:$0xf]
        %v4081 = vld [vmem:[%s5 + $0x7c] sm:$0xf]
        %v4082 = vld [vmem:[%s6] sm:$0x1]
        %v4084 = vlaneseq
        %v4085 = vshrl.u32 %v4084, 7
        %v4086 = vsub.s32 0, %v4085
        %v4087 = vrot.slane %v4082, %v4086
        %v4121 = vunpack.c.l.b16 %v4050
        %v4122 = vunpack.c.l.b16 %v4051
        %v4123 = vunpack.c.l.b16 %v4052
        %v4124 = vunpack.c.l.b16 %v4053
        %v4125 = vunpack.c.l.b16 %v4054
        %v4126 = vunpack.c.l.b16 %v4055
        %v4127 = vunpack.c.l.b16 %v4056
        %v4128 = vunpack.c.l.b16 %v4057
        %v4129 = vunpack.c.l.b16 %v4058
        %v4130 = vunpack.c.l.b16 %v4059
        %v4131 = vunpack.c.l.b16 %v4060
        %v4132 = vunpack.c.l.b16 %v4061
        %v4133 = vunpack.c.l.b16 %v4062
        %v4134 = vunpack.c.l.b16 %v4063
        %v4135 = vunpack.c.l.b16 %v4064
        %v4136 = vunpack.c.l.b16 %v4065
        %v4137 = vunpack.c.l.b16 %v4066
        %v4138 = vunpack.c.l.b16 %v4067
        %v4139 = vunpack.c.l.b16 %v4068
        %v4140 = vunpack.c.l.b16 %v4069
        %v4141 = vunpack.c.l.b16 %v4070
        %v4142 = vunpack.c.l.b16 %v4071
        %v4143 = vunpack.c.l.b16 %v4072
        %v4144 = vunpack.c.l.b16 %v4073
        %v4145 = vunpack.c.l.b16 %v4074
        %v4146 = vunpack.c.l.b16 %v4075
        %v4147 = vunpack.c.l.b16 %v4076
        %v4148 = vunpack.c.l.b16 %v4077
        %v4149 = vunpack.c.l.b16 %v4078
        %v4150 = vunpack.c.l.b16 %v4079
        %v4151 = vunpack.c.l.b16 %v4080
        %v4152 = vunpack.c.l.b16 %v4081
        %v4153 = vpack.c.b16 %v4122, %v4121
        %v4154 = vpack.c.b16 %v4124, %v4123
        %v4155 = vpack.c.b16 %v4126, %v4125
        %v4156 = vpack.c.b16 %v4128, %v4127
        %v4157 = vpack.c.b16 %v4130, %v4129
        %v4158 = vpack.c.b16 %v4132, %v4131
        %v4159 = vpack.c.b16 %v4134, %v4133
        %v4160 = vpack.c.b16 %v4136, %v4135
        %v4161 = vpack.c.b16 %v4138, %v4137
        %v4162 = vpack.c.b16 %v4140, %v4139
        %v4163 = vpack.c.b16 %v4142, %v4141
        %v4164 = vpack.c.b16 %v4144, %v4143
        %v4165 = vpack.c.b16 %v4146, %v4145
        %v4166 = vpack.c.b16 %v4148, %v4147
        %v4167 = vpack.c.b16 %v4150, %v4149
        %v4168 = vpack.c.b16 %v4152, %v4151
        %4185 = vmatprep.subr.bf16.mxu0 0
        %4186 = vmatpush1.bf16.msra.mxu0 %v4153
        %4187 = vmatprep.subr.bf16.mxu0 0
        %4188 = vmatpush1.bf16.msra.mxu0 %v4154
        %4189 = vmatprep.subr.bf16.mxu0 0
        %4190 = vmatpush1.bf16.msra.mxu0 %v4155
        %4191 = vmatprep.subr.bf16.mxu0 0
        %4192 = vmatpush1.bf16.msra.mxu0 %v4156
        %4193 = vmatprep.subr.bf16.mxu0 0
        %4194 = vmatpush1.bf16.msra.mxu0 %v4157
        %4195 = vmatprep.subr.bf16.mxu0 0
        %4196 = vmatpush1.bf16.msra.mxu0 %v4158
        %4197 = vmatprep.subr.bf16.mxu0 0
        %4198 = vmatpush1.bf16.msra.mxu0 %v4159
        %4199 = vmatprep.subr.bf16.mxu0 0
        %4200 = vmatpush1.bf16.msra.mxu0 %v4160
        %4201 = vmatprep.subr.bf16.mxu0 0
        %4202 = vmatpush1.bf16.msra.mxu0 %v4161
        %4203 = vmatprep.subr.bf16.mxu0 0
        %4204 = vmatpush1.bf16.msra.mxu0 %v4162
        %4205 = vmatprep.subr.bf16.mxu0 0
        %4206 = vmatpush1.bf16.msra.mxu0 %v4163
        %4207 = vmatprep.subr.bf16.mxu0 0
        %4208 = vmatpush1.bf16.msra.mxu0 %v4164
        %4209 = vmatprep.subr.bf16.mxu0 0
        %4210 = vmatpush1.bf16.msra.mxu0 %v4165
        %4211 = vmatprep.subr.bf16.mxu0 0
        %4212 = vmatpush1.bf16.msra.mxu0 %v4166
        %4213 = vmatprep.subr.bf16.mxu0 0
        %4214 = vmatpush1.bf16.msra.mxu0 %v4167
        %4215 = vmatprep.subr.bf16.mxu0 0
        %4216 = vmatpush1.bf16.msra.mxu0 %v4168
        %4217 = vmatprep.mubr.bf16.mxu0 %v4035
        %4218 = vmatmul.mubr.bf16.gmra.mrb[0].mxu0 %v4034
        %v4219 = vpop.f32.mrb[0].mxu0
        %v4220 = vadd.f32 %v4087, %v4219
        %v4221 = vpop.f32.mrb[0].mxu0
        %v4222 = vpop.f32.mrb[0].mxu0
        %v4223 = vadd.f32 %v4087, %v4222
        %v4224 = vpop.f32.mrb[0].mxu0
        %4225 = vmatprep.mubr.bf16.mxu0 %v4037
        %4226 = vmatmul.mubr.bf16.gmra.mrb[0].mxu0 %v4036
        %v4227 = vpop.f32.mrb[0].mxu0
        %v4228 = vadd.f32 %v4087, %v4227
        %v4229 = vpop.f32.mrb[0].mxu0
        %v4230 = vpop.f32.mrb[0].mxu0
        %v4231 = vadd.f32 %v4087, %v4230
        %v4232 = vpop.f32.mrb[0].mxu0
        %4233 = vmatprep.mubr.bf16.mxu0 %v4039
        %4234 = vmatmul.mubr.bf16.gmra.mrb[0].mxu0 %v4038
        %v4235 = vpop.f32.mrb[0].mxu0
        %v4236 = vadd.f32 %v4087, %v4235
        %v4237 = vpop.f32.mrb[0].mxu0
        %v4238 = vpop.f32.mrb[0].mxu0
        %v4239 = vadd.f32 %v4087, %v4238
        %v4240 = vpop.f32.mrb[0].mxu0
        %4241 = vmatprep.mubr.bf16.mxu0 %v4041
        %4242 = vmatmul.mubr.bf16.gmra.mrb[0].mxu0 %v4040
        %v4243 = vpop.f32.mrb[0].mxu0
        %v4244 = vadd.f32 %v4087, %v4243
        %v4245 = vpop.f32.mrb[0].mxu0
        %v4246 = vpop.f32.mrb[0].mxu0
        %v4247 = vadd.f32 %v4087, %v4246
        %v4248 = vpop.f32.mrb[0].mxu0
        %4249 = vmatprep.mubr.bf16.mxu0 %v4043
        %4250 = vmatmul.mubr.bf16.gmra.mrb[0].mxu0 %v4042
        %v4251 = vpop.f32.mrb[0].mxu0
        %v4252 = vadd.f32 %v4087, %v4251
        %v4253 = vpop.f32.mrb[0].mxu0
        %v4254 = vpop.f32.mrb[0].mxu0
        %v4255 = vadd.f32 %v4087, %v4254
        %v4256 = vpop.f32.mrb[0].mxu0
        %4257 = vmatprep.mubr.bf16.mxu0 %v4045
        %4258 = vmatmul.mubr.bf16.gmra.mrb[0].mxu0 %v4044
        %v4259 = vpop.f32.mrb[0].mxu0
        %v4260 = vadd.f32 %v4087, %v4259
        %v4261 = vpop.f32.mrb[0].mxu0
        %v4262 = vpop.f32.mrb[0].mxu0
        %v4263 = vadd.f32 %v4087, %v4262
        %v4264 = vpop.f32.mrb[0].mxu0
        %4265 = vmatprep.mubr.bf16.mxu0 %v4047
        %4266 = vmatmul.mubr.bf16.gmra.mrb[0].mxu0 %v4046
        %v4267 = vpop.f32.mrb[0].mxu0
        %v4268 = vadd.f32 %v4087, %v4267
        %v4269 = vpop.f32.mrb[0].mxu0
        %v4270 = vpop.f32.mrb[0].mxu0
        %v4271 = vadd.f32 %v4087, %v4270
        %v4272 = vpop.f32.mrb[0].mxu0
        %4273 = vmatprep.mubr.bf16.mxu0 %v4049
        %4274 = vmatmul.mubr.bf16.gmra.mrb[0].mxu0 %v4048
        %v4275 = vpop.f32.mrb[0].mxu0
        %v4276 = vadd.f32 %v4087, %v4275
        %v4277 = vpop.f32.mrb[0].mxu0
        %v4278 = vpop.f32.mrb[0].mxu0
        %v4279 = vadd.f32 %v4087, %v4278
        %v4280 = vpop.f32.mrb[0].mxu0
        %4281 = vdwg.mxu0
        %v4282 = vmax.f32 %v4220, 0.0
        %v4283 = vmax.f32 %v4223, 0.0
        %v4284 = vmax.f32 %v4228, 0.0
        %v4285 = vmax.f32 %v4231, 0.0
        %v4286 = vmax.f32 %v4236, 0.0
        %v4287 = vmax.f32 %v4239, 0.0
        %v4288 = vmax.f32 %v4244, 0.0
        %v4289 = vmax.f32 %v4247, 0.0
        %v4290 = vmax.f32 %v4252, 0.0
        %v4291 = vmax.f32 %v4255, 0.0
        %v4292 = vmax.f32 %v4260, 0.0
        %v4293 = vmax.f32 %v4263, 0.0
        %v4294 = vmax.f32 %v4268, 0.0
        %v4295 = vmax.f32 %v4271, 0.0
        %v4296 = vmax.f32 %v4276, 0.0
        %v4297 = vmax.f32 %v4279, 0.0
        %v4298 = vpack.c.bf16 %v4283, %v4282
        %v4299 = vpack.c.bf16 %v4285, %v4284
        %v4300 = vpack.c.bf16 %v4287, %v4286
        %v4301 = vpack.c.bf16 %v4289, %v4288
        %v4302 = vpack.c.bf16 %v4291, %v4290
        %v4303 = vpack.c.bf16 %v4293, %v4292
        %v4304 = vpack.c.bf16 %v4295, %v4294
        %v4305 = vpack.c.bf16 %v4297, %v4296
        %v4306 = vld [vmem:[%s7] sm:$0xf]
        %v4307 = vld [vmem:[%s7 + $0x4] sm:$0xf]
        %v4308 = vld [vmem:[%s7 + $0x8] sm:$0xf]
        %v4309 = vld [vmem:[%s7 + $0xc] sm:$0xf]
        %v4310 = vld [vmem:[%s7 + $0x10] sm:$0xf]
        %v4311 = vld [vmem:[%s7 + $0x14] sm:$0xf]
        %v4312 = vld [vmem:[%s7 + $0x18] sm:$0xf]
        %v4313 = vld [vmem:[%s7 + $0x1c] sm:$0xf]
        %v4314 = vld [vmem:[%s8] sm:$0x1]
        %v4316 = vlaneseq
        %v4317 = vshrl.u32 %v4316, 7
        %v4318 = vsub.s32 0, %v4317
        %v4319 = vrot.slane %v4314, %v4318
        %v4329 = vunpack.c.l.b16 %v4306
        %v4330 = vunpack.c.l.b16 %v4307
        %v4331 = vunpack.c.l.b16 %v4308
        %v4332 = vunpack.c.l.b16 %v4309
        %v4333 = vunpack.c.l.b16 %v4310
        %v4334 = vunpack.c.l.b16 %v4311
        %v4335 = vunpack.c.l.b16 %v4312
        %v4336 = vunpack.c.l.b16 %v4313
        %v4337 = vpack.c.b16 %v4330, %v4329
        %v4338 = vpack.c.b16 %v4332, %v4331
        %v4339 = vpack.c.b16 %v4334, %v4333
        %v4340 = vpack.c.b16 %v4336, %v4335
        %vm4345 = vcmask 523264
        %v4347 = vsel %vm4345, %v4298, 0
        %v4350 = vsel %vm4345, %v4299, 0
        %v4353 = vsel %vm4345, %v4300, 0
        %v4356 = vsel %vm4345, %v4301, 0
        %v4359 = vsel %vm4345, %v4302, 0
        %v4362 = vsel %vm4345, %v4303, 0
        %v4365 = vsel %vm4345, %v4304, 0
        %v4368 = vsel %vm4345, %v4305, 0
        %4370 = vmatprep.subr.bf16.mxu0 0
        %4371 = vmatpush1.bf16.msra.mxu0 %v4337
        %4372 = vmatprep.subr.bf16.mxu0 0
        %4373 = vmatpush1.bf16.msra.mxu0 %v4338
        %4374 = vmatprep.subr.bf16.mxu0 0
        %4375 = vmatpush1.bf16.msra.mxu0 %v4339
        %4376 = vmatprep.subr.bf16.mxu0 0
        %4377 = vmatpush1.bf16.msra.mxu0 %v4340
        %4378 = vmatprep.subr.bf16.mxu0 0
        %4379 = vmatpush1.bf16.msra.mxu0 0
        %4380 = vmatprep.subr.bf16.mxu0 0
        %4381 = vmatpush1.bf16.msra.mxu0 0
        %4382 = vmatprep.subr.bf16.mxu0 0
        %4383 = vmatpush1.bf16.msra.mxu0 0
        %4384 = vmatprep.subr.bf16.mxu0 0
        %4385 = vmatpush1.bf16.msra.mxu0 0
        %4386 = vmatprep.subr.bf16.mxu0 0
        %4387 = vmatpush1.bf16.msra.mxu0 0
        %4388 = vmatprep.subr.bf16.mxu0 0
        %4389 = vmatpush1.bf16.msra.mxu0 0
        %4390 = vmatprep.subr.bf16.mxu0 0
        %4391 = vmatpush1.bf16.msra.mxu0 0
        %4392 = vmatprep.subr.bf16.mxu0 0
        %4393 = vmatpush1.bf16.msra.mxu0 0
        %4394 = vmatprep.subr.bf16.mxu0 0
        %4395 = vmatpush1.bf16.msra.mxu0 0
        %4396 = vmatprep.subr.bf16.mxu0 0
        %4397 = vmatpush1.bf16.msra.mxu0 0
        %4398 = vmatprep.subr.bf16.mxu0 0
        %4399 = vmatpush1.bf16.msra.mxu0 0
        %4400 = vmatprep.subr.bf16.mxu0 0
        %4401 = vmatpush1.bf16.msra.mxu0 0
        %4402 = vmatprep.mubr.bf16.mxu0 0
        %4403 = vmatmul.mubr.bf16.gmra.mrb[0].mxu0 %v4347
        %v4404 = vpop.f32.mrb[0].mxu0
        %v4405 = vadd.f32 %v4319, %v4404
        %v4406 = vpop.f32.mrb[0].mxu0
        %v4407 = vpop.f32.mrb[0].mxu0
        %v4408 = vadd.f32 %v4319, %v4407
        %v4409 = vpop.f32.mrb[0].mxu0
        %4410 = vmatprep.mubr.bf16.mxu0 0
        %4411 = vmatmul.mubr.bf16.gmra.mrb[0].mxu0 %v4350
        %v4412 = vpop.f32.mrb[0].mxu0
        %v4413 = vadd.f32 %v4319, %v4412
        %v4414 = vpop.f32.mrb[0].mxu0
        %v4415 = vpop.f32.mrb[0].mxu0
        %v4416 = vadd.f32 %v4319, %v4415
        %v4417 = vpop.f32.mrb[0].mxu0
        %4418 = vmatprep.mubr.bf16.mxu0 0
        %4419 = vmatmul.mubr.bf16.gmra.mrb[0].mxu0 %v4353
        %v4420 = vpop.f32.mrb[0].mxu0
        %v4421 = vadd.f32 %v4319, %v4420
        %v4422 = vpop.f32.mrb[0].mxu0
        %v4423 = vpop.f32.mrb[0].mxu0
        %v4424 = vadd.f32 %v4319, %v4423
        %v4425 = vpop.f32.mrb[0].mxu0
        %4426 = vmatprep.mubr.bf16.mxu0 0
        %4427 = vmatmul.mubr.bf16.gmra.mrb[0].mxu0 %v4356
        %v4428 = vpop.f32.mrb[0].mxu0
        %v4429 = vadd.f32 %v4319, %v4428
        %v4430 = vpop.f32.mrb[0].mxu0
        %v4431 = vpop.f32.mrb[0].mxu0
        %v4432 = vadd.f32 %v4319, %v4431
        %v4433 = vpop.f32.mrb[0].mxu0
        %4434 = vmatprep.mubr.bf16.mxu0 0
        %4435 = vmatmul.mubr.bf16.gmra.mrb[0].mxu0 %v4359
        %v4436 = vpop.f32.mrb[0].mxu0
        %v4437 = vadd.f32 %v4319, %v4436
        %v4438 = vpop.f32.mrb[0].mxu0
        %v4439 = vpop.f32.mrb[0].mxu0
        %v4440 = vadd.f32 %v4319, %v4439
        %v4441 = vpop.f32.mrb[0].mxu0
        %4442 = vmatprep.mubr.bf16.mxu0 0
        %4443 = vmatmul.mubr.bf16.gmra.mrb[0].mxu0 %v4362
        %v4444 = vpop.f32.mrb[0].mxu0
        %v4445 = vadd.f32 %v4319, %v4444
        %v4446 = vpop.f32.mrb[0].mxu0
        %v4447 = vpop.f32.mrb[0].mxu0
        %v4448 = vadd.f32 %v4319, %v4447
        %v4449 = vpop.f32.mrb[0].mxu0
        %4450 = vmatprep.mubr.bf16.mxu0 0
        %4451 = vmatmul.mubr.bf16.gmra.mrb[0].mxu0 %v4365
        %v4452 = vpop.f32.mrb[0].mxu0
        %v4453 = vadd.f32 %v4319, %v4452
        %v4454 = vpop.f32.mrb[0].mxu0
        %v4455 = vpop.f32.mrb[0].mxu0
        %v4456 = vadd.f32 %v4319, %v4455
        %v4457 = vpop.f32.mrb[0].mxu0
        %4458 = vmatprep.mubr.bf16.mxu0 0
        %4459 = vmatmul.mubr.bf16.gmra.mrb[0].mxu0 %v4368
        %v4460 = vpop.f32.mrb[0].mxu0
        %v4461 = vadd.f32 %v4319, %v4460
        %v4462 = vpop.f32.mrb[0].mxu0
        %v4463 = vpop.f32.mrb[0].mxu0
        %v4464 = vadd.f32 %v4319, %v4463
        %v4465 = vpop.f32.mrb[0].mxu0
        %4466 = vdwg.mxu0
        %v4467 = vxor.u32 %v4405, 2147483648
        %v4468 = vxor.u32 %v4408, 2147483648
        %v4469 = vxor.u32 %v4413, 2147483648
        %v4470 = vxor.u32 %v4416, 2147483648
        %v4471 = vxor.u32 %v4421, 2147483648
        %v4472 = vxor.u32 %v4424, 2147483648
        %v4473 = vxor.u32 %v4429, 2147483648
        %v4474 = vxor.u32 %v4432, 2147483648
        %v4475 = vxor.u32 %v4437, 2147483648
        %v4476 = vxor.u32 %v4440, 2147483648
        %v4477 = vxor.u32 %v4445, 2147483648
        %v4478 = vxor.u32 %v4448, 2147483648
        %v4479 = vxor.u32 %v4453, 2147483648
        %v4480 = vxor.u32 %v4456, 2147483648
        %v4481 = vxor.u32 %v4461, 2147483648
        %v4482 = vxor.u32 %v4464, 2147483648
        %v4483 = vmul.f32 %v4467, 1.442695
        %v4484 = vpow.pop %v4483
        %v4485 = vmul.f32 %v4468, 1.442695
        %v4486 = vpow.pop %v4485
        %v4487 = vmul.f32 %v4469, 1.442695
        %v4488 = vpow.pop %v4487
        %v4489 = vmul.f32 %v4470, 1.442695
        %v4490 = vpow.pop %v4489
        %v4491 = vmul.f32 %v4471, 1.442695
        %v4492 = vpow.pop %v4491
        %v4493 = vmul.f32 %v4472, 1.442695
        %v4494 = vpow.pop %v4493
        %v4495 = vmul.f32 %v4473, 1.442695
        %v4496 = vpow.pop %v4495
        %v4497 = vmul.f32 %v4474, 1.442695
        %v4498 = vpow.pop %v4497
        %v4499 = vmul.f32 %v4475, 1.442695
        %v4500 = vpow.pop %v4499
        %v4501 = vmul.f32 %v4476, 1.442695
        %v4502 = vpow.pop %v4501
        %v4503 = vmul.f32 %v4477, 1.442695
        %v4504 = vpow.pop %v4503
        %v4505 = vmul.f32 %v4478, 1.442695
        %v4506 = vpow.pop %v4505
        %v4507 = vmul.f32 %v4479, 1.442695
        %v4508 = vpow.pop %v4507
        %v4509 = vmul.f32 %v4480, 1.442695
        %v4510 = vpow.pop %v4509
        %v4511 = vmul.f32 %v4481, 1.442695
        %v4512 = vpow.pop %v4511
        %v4513 = vmul.f32 %v4482, 1.442695
        %v4514 = vpow.pop %v4513
        %v4515 = vadd.f32 %v4484, 1.0
        %v4516 = vadd.f32 %v4486, 1.0
        %v4517 = vadd.f32 %v4488, 1.0
        %v4518 = vadd.f32 %v4490, 1.0
        %v4519 = vadd.f32 %v4492, 1.0
        %v4520 = vadd.f32 %v4494, 1.0
        %v4521 = vadd.f32 %v4496, 1.0
        %v4522 = vadd.f32 %v4498, 1.0
        %v4523 = vadd.f32 %v4500, 1.0
        %v4524 = vadd.f32 %v4502, 1.0
        %v4525 = vadd.f32 %v4504, 1.0
        %v4526 = vadd.f32 %v4506, 1.0
        %v4527 = vadd.f32 %v4508, 1.0
        %v4528 = vadd.f32 %v4510, 1.0
        %v4529 = vadd.f32 %v4512, 1.0
        %v4530 = vadd.f32 %v4514, 1.0
        %v4531 = vrcp.pop %v4515
        %v4532 = vmul.f32 1.0, %v4531
        %v4533 = vrcp.pop %v4516
        %v4534 = vmul.f32 1.0, %v4533
        %v4535 = vrcp.pop %v4517
        %v4536 = vmul.f32 1.0, %v4535
        %v4537 = vrcp.pop %v4518
        %v4538 = vmul.f32 1.0, %v4537
        %v4539 = vrcp.pop %v4519
        %v4540 = vmul.f32 1.0, %v4539
        %v4541 = vrcp.pop %v4520
        %v4542 = vmul.f32 1.0, %v4541
        %v4543 = vrcp.pop %v4521
        %v4544 = vmul.f32 1.0, %v4543
        %v4545 = vrcp.pop %v4522
        %v4546 = vmul.f32 1.0, %v4545
        %v4547 = vrcp.pop %v4523
        %v4548 = vmul.f32 1.0, %v4547
        %v4549 = vrcp.pop %v4524
        %v4550 = vmul.f32 1.0, %v4549
        %v4551 = vrcp.pop %v4525
        %v4552 = vmul.f32 1.0, %v4551
        %v4553 = vrcp.pop %v4526
        %v4554 = vmul.f32 1.0, %v4553
        %v4555 = vrcp.pop %v4527
        %v4556 = vmul.f32 1.0, %v4555
        %v4557 = vrcp.pop %v4528
        %v4558 = vmul.f32 1.0, %v4557
        %v4559 = vrcp.pop %v4529
        %v4560 = vmul.f32 1.0, %v4559
        %v4561 = vrcp.pop %v4530
        %v4562 = vmul.f32 1.0, %v4561
        %v4563 = vld [vmem:[%s9] sm:$0x1]
        %v4564 = vld [vmem:[#allocation2] sm:$0x1]
        %4566 = vset.pattern.permute.xlu0 0
        %4567 = vperm.xlu0 %4566, %v4564
        %v4568 = vpop.permute.xlu0 %4567
        %v4570 = vlaneseq
        %v4571 = vshrl.u32 %v4570, 7
        %v4572 = vsub.s32 0, %v4571
        %v4573 = vrot.slane %v4568, %v4572
        %vm4574 = vcmask 130048
        %v4576 = vsel %vm4574, %v4563, 0
        %v4579 = vsel %vm4574, %v4532, 0
        %v4582 = vsel %vm4574, %v4534, 0
        %v4585 = vsel %vm4574, %v4536, 0
        %v4588 = vsel %vm4574, %v4538, 0
        %v4591 = vsel %vm4574, %v4540, 0
        %v4594 = vsel %vm4574, %v4542, 0
        %v4597 = vsel %vm4574, %v4544, 0
        %v4600 = vsel %vm4574, %v4546, 0
        %v4603 = vsel %vm4574, %v4548, 0
        %v4606 = vsel %vm4574, %v4550, 0
        %v4609 = vsel %vm4574, %v4552, 0
        %v4612 = vsel %vm4574, %v4554, 0
        %v4615 = vsel %vm4574, %v4556, 0
        %v4618 = vsel %vm4574, %v4558, 0
        %v4621 = vsel %vm4574, %v4560, 0
        %v4624 = vsel %vm4574, %v4562, 0
        %4626 = vmatprep.subr.mxu0 0.0
        %4627 = vmatpush1.xpose.msra.mxu0 %v4579
        %4628 = vmatprep.subr.mxu0 0.0
        %4629 = vmatpush1.xpose.msra.mxu0 %v4582
        %4630 = vmatprep.subr.mxu0 0.0
        %4631 = vmatpush1.xpose.msra.mxu0 %v4585
        %4632 = vmatprep.subr.mxu0 0.0
        %4633 = vmatpush1.xpose.msra.mxu0 %v4588
        %4634 = vmatprep.subr.mxu0 0.0
        %4635 = vmatpush1.xpose.msra.mxu0 %v4591
        %4636 = vmatprep.subr.mxu0 0.0
        %4637 = vmatpush1.xpose.msra.mxu0 %v4594
        %4638 = vmatprep.subr.mxu0 0.0
        %4639 = vmatpush1.xpose.msra.mxu0 %v4597
        %4640 = vmatprep.subr.mxu0 0.0
        %4641 = vmatpush1.xpose.msra.mxu0 %v4600
        %4642 = vmatprep.subr.mxu0 0.0
        %4643 = vmatpush1.xpose.msra.mxu0 %v4603
        %4644 = vmatprep.subr.mxu0 0.0
        %4645 = vmatpush1.xpose.msra.mxu0 %v4606
        %4646 = vmatprep.subr.mxu0 0.0
        %4647 = vmatpush1.xpose.msra.mxu0 %v4609
        %4648 = vmatprep.subr.mxu0 0.0
        %4649 = vmatpush1.xpose.msra.mxu0 %v4612
        %4650 = vmatprep.subr.mxu0 0.0
        %4651 = vmatpush1.xpose.msra.mxu0 %v4615
        %4652 = vmatprep.subr.mxu0 0.0
        %4653 = vmatpush1.xpose.msra.mxu0 %v4618
        %4654 = vmatprep.subr.mxu0 0.0
        %4655 = vmatpush1.xpose.msra.mxu0 %v4621
        %4656 = vmatprep.subr.mxu0 0.0
        %4657 = vmatpush1.xpose.msra.mxu0 %v4624
        %4658 = vmatprep.subr.mxu0 0.0
        %4659 = vmatpush1.xpose.msra.mxu0 0.0
        %4660 = vmatprep.subr.mxu0 0.0
        %4661 = vmatpush1.xpose.msra.mxu0 0.0
        %4662 = vmatprep.subr.mxu0 0.0
        %4663 = vmatpush1.xpose.msra.mxu0 0.0
        %4664 = vmatprep.subr.mxu0 0.0
        %4665 = vmatpush1.xpose.msra.mxu0 0.0
        %4666 = vmatprep.subr.mxu0 0.0
        %4667 = vmatpush1.xpose.msra.mxu0 0.0
        %4668 = vmatprep.subr.mxu0 0.0
        %4669 = vmatpush1.xpose.msra.mxu0 0.0
        %4670 = vmatprep.subr.mxu0 0.0
        %4671 = vmatpush1.xpose.msra.mxu0 0.0
        %4672 = vmatprep.subr.mxu0 0.0
        %4673 = vmatpush1.xpose.msra.mxu0 0.0
        %4674 = vmatprep.subr.mxu0 0.0
        %4675 = vmatpush1.xpose.msra.mxu0 0.0
        %4676 = vmatprep.subr.mxu0 0.0
        %4677 = vmatpush1.xpose.msra.mxu0 0.0
        %4678 = vmatprep.subr.mxu0 0.0
        %4679 = vmatpush1.xpose.msra.mxu0 0.0
        %4680 = vmatprep.subr.mxu0 0.0
        %4681 = vmatpush1.xpose.msra.mxu0 0.0
        %4682 = vmatprep.subr.mxu0 0.0
        %4683 = vmatpush1.xpose.msra.mxu0 0.0
        %4684 = vmatprep.subr.mxu0 0.0
        %4685 = vmatpush1.xpose.msra.mxu0 0.0
        %4686 = vmatprep.subr.mxu0 0.0
        %4687 = vmatpush1.xpose.msra.mxu0 0.0
        %4688 = vmatprep.subr.mxu0 0.0
        %4689 = vmatpush1.xpose.msra.mxu0 0.0
        %4690 = vmatprep.mubr.f32.mxu0 0.0
        %4691 = vmatmul.mubr.f32.gmra.mrb[0].mxu0 %v4576
        %v4692 = vpop.f32.mrb[0].mxu0
        %v4693 = vadd.f32 %v4573, %v4692
        %v4694 = vpop.f32.mrb[0].mxu0
        %4695 = vdwg.mxu0
        %v4696 = vxor.u32 %v4693, 2147483648
        %v4697 = vmul.f32 %v4696, 1.442695
        %v4698 = vpow.pop %v4697
        %v4699 = vadd.f32 %v4698, 1.0
        %v4700 = vrcp.pop %v4699
        %v4701 = vmul.f32 1.0, %v4700
        %4702 = vst [vmem:[%s435] sm:$0x1] %v4701
        %s4703 = sand.u32 %s275, 1
        %s4704 = scalar_lea.sflag [#allocation5], %s4703
        %s4705 = sand.u32 %s275, 1
        %s4706 = scalar_lea.vmem [#allocation9], %s4705
        // Predicated region
        $region77: #{tpu_custom_call.1} parent=63 // pred_check
          %p4707 = pneg %p285
        $region78: #{tpu_custom_call.1} parent=63 // pred_check_branch
          %4709 = sbr.rel (%p4707) target = $region80
        $region79: #{tpu_custom_call.1} parent=63 // pred_region
          %s4711 = ssub.s32 16, 16
          %4712 = vsyncadd %s4704, %s4711
          %s4713 = smul.addr %s31, 16
          %s4714 = scalar_lea.hbm %s11, %s4713
          %s4716 = sshll.u32 %s4706, 4
          %s4717 = int_to_ptr.vmem [resolvable:$true] %s4716
          %4719 = dma.vmem_to_hbm [thread:$0]  %s4717, 16, %s4714, %s4704
        $region80: #{tpu_custom_call.1} parent=63 // pred_fallthru
          _
      $region64: #{tpu_custom_call.1} parent=5 // pred_fallthru
        _
      %p4720 = scmp.le.s32.totalorder 2, %s26
      // Predicated region
      $region81: #{tpu_custom_call.1} parent=5 // pred_check
        %p4721 = pneg %p4720
      $region82: #{tpu_custom_call.1} parent=5 // pred_check_branch
        %4723 = sbr.rel (%p4721) target = $region84
      $region83: #{tpu_custom_call.1} parent=5 // pred_region
        %s4724 = ssub.s32 %s26, 2
        // Predicated region
        $region85: #{tpu_custom_call.1} parent=83 // pred_check
          %p4725 = pneg %p291
        $region86: #{tpu_custom_call.1} parent=83 // pred_check_branch
          %4727 = sbr.rel (%p4725) target = $region88
        $region87: #{tpu_custom_call.1} parent=83 // pred_region
          %s4728 = sand.u32 %s276, 1
          %s4729 = scalar_lea.sflag [#allocation5], %s4728
          %s4730 = sand.u32 %s276, 1
          %s4731 = scalar_lea.vmem [#allocation9], %s4730
          %4732 = dma.done %s4729, 16
        $region88: #{tpu_custom_call.1} parent=83 // pred_fallthru
          _
      $region84: #{tpu_custom_call.1} parent=5 // pred_fallthru
        _
    $region6: #{tpu_custom_call.1} parent=1 // loop_footer
      %s30 = sadd.s32 1, %s26
    $region7: #{tpu_custom_call.1} parent=1 // loop_footer_branch
      %25 = sbr.rel target = $region3
    $region8: #{tpu_custom_call.1} parent=1 // loop_exit
      _
    %4733 = vsyncpa [#allocation4], 1
    %s4734 = scalar_lea.sflag [#allocation4], 1
    %4735 = vsyncpa %s4734, 1
    %4736 = vsyncpa [#allocation7], 1
    %4737 = vsyncpa [#allocation5], 1
    %s4738 = scalar_lea.sflag [#allocation5], 1
    %4739 = vsyncpa %s4738, 1

</llo_original>
